<compile_context>
chip_gen: v5e
topology: v5e:2x2
jax: 0.10.0
libtpu: 0.0.40
codegen_flags: <defaults>
</compile_context>

<pallas_src>
import jax
import jax.numpy as jnp
from jax import lax
from jax.experimental import pallas as pl
from jax.experimental.pallas import tpu as pltpu

# ---------------- config (small, consistent with the module) ----------------
SRC_VOCAB = 20
TRG_VOCAB = 20
EMB = 16
ENC_HID = 32
DEC_HID = 32
BATCH = 2
SRC_LEN = 8
TRG_LEN = 8
DROPOUT = 0.0  # nn.Dropout(p=0.0) is the identity

# Set to jnp.bfloat16 on v6e/v7x for ~3x lower per-matmul MXU latency (review item).
# Kept f32 by default so the argmax->token recurrence and the logits are bit-exact
# w.r.t. the f32 reference (review correctness concern #1).
MXU_DTYPE = jnp.float32


def _vmem():
    # whole-array block resident in VMEM (every tensor here is tiny: total < 0.2 MiB)
    return pl.BlockSpec(memory_space=pltpu.MemorySpace.VMEM)


def _mm(a, b):
    return jnp.dot(a.astype(MXU_DTYPE), b.astype(MXU_DTYPE),
                   preferred_element_type=jnp.float32)


# ---------------- the single fused kernel ----------------
def seq2seq_kernel(src_ref, trg_ref, tf_ref,
                   enc_emb_ref,
                   enc_wi_ref, enc_wh_ref, enc_bi_ref, enc_bh_ref,
                   enc_fc_w_ref, enc_fc_b_ref,
                   w_attn_e_ref, b_attn_ref, v_ref,
                   w_hid_fused_ref, dec_bh_ref,
                   w_w_fused_ref, dec_bi_ref,
                   w_tok_fused_ref, wo_h_ref, bo_ref,
                   out_ref,
                   enc_ref):
    B, S = src_ref.shape
    T = trg_ref.shape[1]
    E = enc_emb_ref.shape[1]
    SRCV = enc_emb_ref.shape[0]
    H = enc_wh_ref.shape[0] // 2
    D = enc_fc_w_ref.shape[1]
    V = w_tok_fused_ref.shape[0]

    # ---- encoder embedding: one-hot @ table (dropout p=0.0 -> identity) ----
    src_i = src_ref[...]                                                   # (B, S) int32
    iota_s = lax.broadcasted_iota(jnp.int32, (B, S, SRCV), 2)
    onehot_src = (src_i[:, :, None] == iota_s).astype(jnp.float32)         # (B, S, SRCV)
    emb = _mm(onehot_src.reshape(B * S, SRCV), enc_emb_ref[...]).reshape(B, S, E)

    # ---- bidirectional GRU as ONE recurrence with block-diagonal fused weights ----
    # hidden = [h_fwd | h_bwd] (B, 2H); gate columns laid out [r_f r_b | z_f z_b | n_f n_b]
    h = jnp.zeros((B, 2 * H), jnp.float32)
    hs = []
    for t in range(S):
        x = jnp.concatenate([emb[:, t, :], emb[:, S - 1 - t, :]], axis=1)  # (B, 2E)
        gx = _mm(x, enc_wi_ref[...]) + enc_bi_ref[...]                     # (B, 6H)
        gh = _mm(h, enc_wh_ref[...]) + enc_bh_ref[...]                     # (B, 6H)
        r = jax.nn.sigmoid(gx[:, 0:2 * H] + gh[:, 0:2 * H])
        z = jax.nn.sigmoid(gx[:, 2 * H:4 * H] + gh[:, 2 * H:4 * H])
        n = jnp.tanh(gx[:, 4 * H:6 * H] + r * gh[:, 4 * H:6 * H])
        h = (1.0 - z) * n + z * h
        hs.append(h)

    # encoder outputs: enc[:, t] = cat(fwd state at t, bwd state at t)
    # (the bwd state for position t was produced at fused step S-1-t)
    for t in range(S):
        enc_ref[:, t, :] = jnp.concatenate(
            [hs[t][:, 0:H], hs[S - 1 - t][:, H:2 * H]], axis=1)
    enc = enc_ref[...]                                                     # (B, S, 2H)

    # decoder initial hidden = tanh(fc(cat(h_fwd_final, h_bwd_final)))
    hidden0 = jnp.tanh(_mm(hs[S - 1], enc_fc_w_ref[...]) + enc_fc_b_ref[...])   # (B, D)

    # ---- constants of the decoder loop (the reference never feeds decoder_hidden
    #      back, so everything depending only on hidden0 / enc is step-invariant) ----
    hid_proj = _mm(hidden0, w_hid_fused_ref[...])            # (B, D+3D): [attn_h | gh]
    attn_hid = hid_proj[:, 0:D]
    gh = hid_proj[:, D:4 * D] + dec_bh_ref[...]              # (B, 3D) constant h-gates

    proj_e = _mm(enc.reshape(B * S, 2 * H), w_attn_e_ref[...]) + b_attn_ref[...]
    energy = jnp.tanh(proj_e.reshape(B, S, D) + attn_hid[:, None, :])      # (B, S, D)
    scores = jnp.sum(energy * v_ref[...][None, :, :], axis=-1)             # (B, S)
    scores = scores - jnp.max(scores, axis=1, keepdims=True)               # softmax(dim=1)
    es = jnp.exp(scores)
    attn = es / jnp.sum(es, axis=1, keepdims=True)                         # (B, S)

    # weighted context = bmm(attn, enc) done as VPU multiply + XLU reduce (no MXU)
    weighted = jnp.sum(attn[:, :, None] * enc, axis=1)                     # (B, 2H)
    w_proj = _mm(weighted, w_w_fused_ref[...])               # (B, 3D+V): [gx_w | pred_w]
    gx_w = w_proj[:, 0:3 * D] + dec_bi_ref[...]
    pred_w = w_proj[:, 3 * D:] + bo_ref[...]

    # ---- decoder token loop (serial dependency is only the token itself) ----
    iota_v = lax.broadcasted_iota(jnp.int32, (B, V), 1).astype(jnp.float32)
    trg_f = trg_ref[...].astype(jnp.float32)                 # exact small integers in f32
    tf_f = tf_ref[...]                                       # (1, T) in {0., 1.}

    tok = trg_f[:, 0:1]                                      # first decoder input
    preds = [jnp.zeros((B, V), jnp.float32)]                 # outputs[0] stays zero

    for t in range(1, T):
        # embedding + its two downstream matmuls fused into one one-hot matmul
        one_hot = (tok == iota_v).astype(jnp.float32)                      # (B, V)
        tok_proj = _mm(one_hot, w_tok_fused_ref[...])                      # (B, 3D+V)

        # decoder GRU step (gh and the 'weighted' gate contribution are constant)
        gx = tok_proj[:, 0:3 * D] + gx_w
        r = jax.nn.sigmoid(gx[:, 0:D] + gh[:, 0:D])
        z = jax.nn.sigmoid(gx[:, D:2 * D] + gh[:, D:2 * D])
        n = jnp.tanh(gx[:, 2 * D:3 * D] + r * gh[:, 2 * D:3 * D])
        h_dec = (1.0 - z) * n + z * hidden0                                # (B, D)

        # fc_out(cat(dec_output, embedded, weighted))
        pred = _mm(h_dec, wo_h_ref[...]) + tok_proj[:, 3 * D:] + pred_w    # (B, V)
        preds.append(pred)

        # next input token: per-step teacher forcing vs greedy argmax (first max index)
        maxv = jnp.max(pred, axis=1, keepdims=True)
        top1 = jnp.min(jnp.where(pred == maxv, iota_v, jnp.float32(V)),
                       axis=1, keepdims=True)                              # (B, 1)
        tf_t = tf_f[:, t:t + 1]                                            # (1, 1)
        tok = tf_t * trg_f[:, t:t + 1] + (1.0 - tf_t) * top1               # exact integers

    # one lane-dense store; wrapper reshapes (T*B, V) -> (T, B, V)
    out_ref[...] = jnp.concatenate(preds, axis=0)


# ---------------- pallas_call wrapper ----------------
def seq2seq_pallas(params, src, trg, teacher_force_flags):
    B, S = src.shape
    T = trg.shape[1]
    tf_f = teacher_force_flags.astype(jnp.float32).reshape(1, T)
    args = (src.astype(jnp.int32), trg.astype(jnp.int32), tf_f,
            params["enc_emb"],
            params["enc_wi"], params["enc_wh"], params["enc_bi"], params["enc_bh"],
            params["enc_fc_w"], params["enc_fc_b"],
            params["w_attn_e"], params["b_attn"], params["v"],
            params["w_hid_fused"], params["dec_bh"],
            params["w_w_fused"], params["dec_bi"],
            params["w_tok_fused"], params["wo_h"], params["fc_out_b"])
    out = pl.pallas_call(
        seq2seq_kernel,
        out_shape=jax.ShapeDtypeStruct((T * B, TRG_VOCAB), jnp.float32),
        in_specs=[_vmem() for _ in args],
        out_specs=_vmem(),
        scratch_shapes=[pltpu.VMEM((B, S, 2 * ENC_HID), jnp.float32)],
    )(*args)
    return out.reshape(T, B, TRG_VOCAB)


seq2seq_forward = jax.jit(seq2seq_pallas)


# ---------------- parameter init (deterministic, synthetic; weights stored transposed,
#                  row-split by cat-order and pre-fused per the performance review) ----
def _uniform(key, shape, scale):
    return jax.random.uniform(key, shape, jnp.float32, -scale, scale)


def _init_gru(key, in_size, hid):
    # PyTorch nn.GRU init U(-1/sqrt(hid), 1/sqrt(hid)); stored transposed (in, 3H),
    # gate order along columns (r, z, n).
    ks = jax.random.split(key, 4)
    s = 1.0 / (hid ** 0.5)
    return dict(wi=_uniform(ks[0], (in_size, 3 * hid), s),
                wh=_uniform(ks[1], (hid, 3 * hid), s),
                bi=_uniform(ks[2], (1, 3 * hid), s),
                bh=_uniform(ks[3], (1, 3 * hid), s))


def _init_linear(key, fin, fout):
    k1, k2 = jax.random.split(key)
    s = 1.0 / (fin ** 0.5)
    return _uniform(k1, (fin, fout), s), _uniform(k2, (1, fout), s)


def _blockdiag_bidir(wf, wb):
    """(in,3H) fwd + (in,3H) bwd -> (2*in, 6H) block-diagonal fused weight.
    Gate columns: [r_f r_b | z_f z_b | n_f n_b]; rows [0:in] consume the fwd-direction
    input, rows [in:2in] the bwd-direction input."""
    din, three_h = wf.shape
    hh = three_h // 3
    out = jnp.zeros((2 * din, 6 * hh), wf.dtype)
    for g in range(3):
        out = out.at[:din, (2 * g) * hh:(2 * g + 1) * hh].set(wf[:, g * hh:(g + 1) * hh])
        out = out.at[din:, (2 * g + 1) * hh:(2 * g + 2) * hh].set(wb[:, g * hh:(g + 1) * hh])
    return out


def _interleave_bias(bf, bb):
    hh = bf.shape[1] // 3
    return jnp.concatenate([bf[:, 0:hh], bb[:, 0:hh],
                            bf[:, hh:2 * hh], bb[:, hh:2 * hh],
                            bf[:, 2 * hh:], bb[:, 2 * hh:]], axis=1)


def init_params(key):
    E, H, D, Vs, Vt = EMB, ENC_HID, DEC_HID, SRC_VOCAB, TRG_VOCAB
    ks = jax.random.split(key, 9)

    enc_emb = jax.random.normal(ks[0], (Vs, E), jnp.float32)
    dec_emb = jax.random.normal(ks[1], (Vt, E), jnp.float32)

    gru_f = _init_gru(ks[2], E, H)                 # encoder forward direction
    gru_b = _init_gru(ks[3], E, H)                 # encoder backward direction
    enc_fc_w, enc_fc_b = _init_linear(ks[4], 2 * H, D)

    # attention Linear(2H + D, D): input is cat(hidden, encoder_outputs) -> row split
    w_attn, b_attn = _init_linear(ks[5], D + 2 * H, D)
    w_attn_h, w_attn_e = w_attn[:D], w_attn[D:]
    v = _uniform(ks[6], (1, D), 1.0 / (D ** 0.5))  # v: Linear(D, 1, bias=False)

    # decoder GRU: input is cat(emb, weighted) -> row split
    dgru = _init_gru(ks[7], E + 2 * H, D)
    wi_e, wi_w = dgru["wi"][:E], dgru["wi"][E:]

    # fc_out Linear(D + E + 2H, Vt): input is cat(dec_hidden, emb, weighted) -> row split
    fc_w, fc_b = _init_linear(ks[8], D + E + 2 * H, Vt)
    wo_h, wo_e, wo_w = fc_w[:D], fc_w[D:D + E], fc_w[D + E:]

    return dict(
        enc_emb=enc_emb,
        # block-diagonal fused bidirectional encoder GRU (review item 2)
        enc_wi=_blockdiag_bidir(gru_f["wi"], gru_b["wi"]),            # (2E, 6H)
        enc_wh=_blockdiag_bidir(gru_f["wh"], gru_b["wh"]),            # (2H, 6H)
        enc_bi=_interleave_bias(gru_f["bi"], gru_b["bi"]),            # (1, 6H)
        enc_bh=_interleave_bias(gru_f["bh"], gru_b["bh"]),            # (1, 6H)
        enc_fc_w=enc_fc_w, enc_fc_b=enc_fc_b,
        # attention encoder-side weight consumes the single (B,S,2H) buffer (item 3)
        w_attn_e=w_attn_e, b_attn=b_attn, v=v,
        # column-concatenated weights for re-used activations (item 6)
        w_hid_fused=jnp.concatenate([w_attn_h, dgru["wh"]], axis=1),  # (D, 4D) = (32,128)
        w_w_fused=jnp.concatenate([wi_w, wo_w], axis=1),              # (2H, 3D+V)
        dec_bi=dgru["bi"], dec_bh=dgru["bh"],
        # decoder embedding folded into its consumers (item 5; exact since dropout=0.0)
        w_tok_fused=jnp.dot(dec_emb, jnp.concatenate([wi_e, wo_e], axis=1)),  # (Vt, 3D+V)
        wo_h=wo_h, fc_out_b=fc_b,
    )


if __name__ == "__main__":
    key = jax.random.PRNGKey(0)
    k_par, k_src, k_trg, k_tf = jax.random.split(key, 4)
    params = init_params(k_par)
    src = jax.random.randint(k_src, (BATCH, SRC_LEN), 0, SRC_VOCAB, dtype=jnp.int32)
    trg = jax.random.randint(k_trg, (BATCH, TRG_LEN), 0, TRG_VOCAB, dtype=jnp.int32)
    # one teacher-forcing decision per step, shared across batch (== random.random()<0.5)
    tf_flags = jax.random.uniform(k_tf, (TRG_LEN,)) < 0.5

    out = seq2seq_forward(params, src, trg, tf_flags)
    out = jax.block_until_ready(out)
    assert out.shape == (TRG_LEN, BATCH, TRG_VOCAB), out.shape
    assert bool(jnp.all(jnp.isfinite(out)))
    assert bool(jnp.all(out[0] == 0.0))   # outputs[0] stays zero, as in the reference
    print("KERNEL_OK")
</pallas_src>

<mosaic_0001>
module attributes {stable_mosaic.version = 11 : i64} {
  func.func @seq2seq_kernel(%arg0: memref<2x8xi32, #tpu.memory_space<vmem>>, %arg1: memref<2x8xi32, #tpu.memory_space<vmem>>, %arg2: memref<1x8xf32, #tpu.memory_space<vmem>>, %arg3: memref<20x16xf32, #tpu.memory_space<vmem>>, %arg4: memref<32x192xf32, #tpu.memory_space<vmem>>, %arg5: memref<64x192xf32, #tpu.memory_space<vmem>>, %arg6: memref<1x192xf32, #tpu.memory_space<vmem>>, %arg7: memref<1x192xf32, #tpu.memory_space<vmem>>, %arg8: memref<64x32xf32, #tpu.memory_space<vmem>>, %arg9: memref<1x32xf32, #tpu.memory_space<vmem>>, %arg10: memref<64x32xf32, #tpu.memory_space<vmem>>, %arg11: memref<1x32xf32, #tpu.memory_space<vmem>>, %arg12: memref<1x32xf32, #tpu.memory_space<vmem>>, %arg13: memref<32x128xf32, #tpu.memory_space<vmem>>, %arg14: memref<1x96xf32, #tpu.memory_space<vmem>>, %arg15: memref<64x116xf32, #tpu.memory_space<vmem>>, %arg16: memref<1x96xf32, #tpu.memory_space<vmem>>, %arg17: memref<20x116xf32, #tpu.memory_space<vmem>>, %arg18: memref<32x20xf32, #tpu.memory_space<vmem>>, %arg19: memref<1x20xf32, #tpu.memory_space<vmem>>, %arg20: memref<16x20xf32, #tpu.memory_space<vmem>>, %arg21: memref<2x8x64xf32, #tpu.memory_space<vmem>>) attributes {dimension_semantics = [], scalar_prefetch = 0 : i64, scratch_operands = 1 : i64, tpu.core_type = #tpu.core_type<tc>} {
    %c0 = arith.constant 0 : index
    %c0_0 = arith.constant 0 : index
    %0 = vector.load %arg0[%c0, %c0_0] : memref<2x8xi32, #tpu.memory_space<vmem>>, vector<2x8xi32>
    %1 = tpu.iota {dimensions = array<i32: 2>} : vector<2x8x20xi32>
    %2 = vector.shape_cast %0 : vector<2x8xi32> to vector<2x8x1xi32>
    %3 = vector.broadcast %2 : vector<2x8x1xi32> to vector<2x8x20xi32>
    %4 = arith.cmpi eq, %3, %1 : vector<2x8x20xi32>
    %5 = arith.extui %4 : vector<2x8x20xi1> to vector<2x8x20xi32>
    %6 = arith.sitofp %5 : vector<2x8x20xi32> to vector<2x8x20xf32>
    %7 = vector.shape_cast %6 : vector<2x8x20xf32> to vector<16x20xf32>
    %c0_1 = arith.constant 0 : index
    %c0_2 = arith.constant 0 : index
    %8 = vector.load %arg3[%c0_1, %c0_2] : memref<20x16xf32, #tpu.memory_space<vmem>>, vector<20x16xf32>
    %cst = arith.constant dense<0.000000e+00> : vector<16x16xf32>
    %9 = tpu.matmul %7, %8, %cst {dimension_numbers = #tpu.dot_dimension_numbers<[1], [0], [0], [1], [0, 0, 1, 1], [], []>} : vector<16x20xf32>, vector<20x16xf32>, vector<16x16xf32> -> vector<16x16xf32>
    %10 = vector.shape_cast %9 : vector<16x16xf32> to vector<2x8x16xf32>
    %cst_3 = arith.constant 0.000000e+00 : f32
    %11 = vector.broadcast %cst_3 : f32 to vector<2x64xf32>
    %12 = vector.extract_strided_slice %10 {offsets = [0, 0, 0], sizes = [2, 1, 16], strides = [1, 1, 1]} : vector<2x8x16xf32> to vector<2x1x16xf32>
    %13 = vector.shape_cast %12 : vector<2x1x16xf32> to vector<2x16xf32>
    %14 = vector.extract_strided_slice %10 {offsets = [0, 7, 0], sizes = [2, 1, 16], strides = [1, 1, 1]} : vector<2x8x16xf32> to vector<2x1x16xf32>
    %15 = vector.shape_cast %14 : vector<2x1x16xf32> to vector<2x16xf32>
    %16 = tpu.concatenate %13, %15 in 1 : vector<2x16xf32>, vector<2x16xf32> -> vector<2x32xf32>
    %c0_4 = arith.constant 0 : index
    %c0_5 = arith.constant 0 : index
    %17 = vector.load %arg4[%c0_4, %c0_5] : memref<32x192xf32, #tpu.memory_space<vmem>>, vector<32x192xf32>
    %cst_6 = arith.constant dense<0.000000e+00> : vector<2x192xf32>
    %18 = tpu.matmul %16, %17, %cst_6 {dimension_numbers = #tpu.dot_dimension_numbers<[1], [0], [0], [1], [0, 0, 1, 1], [], []>} : vector<2x32xf32>, vector<32x192xf32>, vector<2x192xf32> -> vector<2x192xf32>
    %c0_7 = arith.constant 0 : index
    %c0_8 = arith.constant 0 : index
    %19 = vector.load %arg6[%c0_7, %c0_8] : memref<1x192xf32, #tpu.memory_space<vmem>>, vector<1x192xf32>
    %20 = vector.broadcast %19 : vector<1x192xf32> to vector<2x192xf32>
    %21 = arith.addf %18, %20 : vector<2x192xf32>
    %c0_9 = arith.constant 0 : index
    %c0_10 = arith.constant 0 : index
    %22 = vector.load %arg5[%c0_9, %c0_10] : memref<64x192xf32, #tpu.memory_space<vmem>>, vector<64x192xf32>
    %cst_11 = arith.constant dense<0.000000e+00> : vector<2x192xf32>
    %23 = tpu.matmul %11, %22, %cst_11 {dimension_numbers = #tpu.dot_dimension_numbers<[1], [0], [0], [1], [0, 0, 1, 1], [], []>} : vector<2x64xf32>, vector<64x192xf32>, vector<2x192xf32> -> vector<2x192xf32>
    %c0_12 = arith.constant 0 : index
    %c0_13 = arith.constant 0 : index
    %24 = vector.load %arg7[%c0_12, %c0_13] : memref<1x192xf32, #tpu.memory_space<vmem>>, vector<1x192xf32>
    %25 = vector.broadcast %24 : vector<1x192xf32> to vector<2x192xf32>
    %26 = arith.addf %23, %25 : vector<2x192xf32>
    %27 = vector.extract_strided_slice %21 {offsets = [0, 0], sizes = [2, 64], strides = [1, 1]} : vector<2x192xf32> to vector<2x64xf32>
    %28 = vector.extract_strided_slice %26 {offsets = [0, 0], sizes = [2, 64], strides = [1, 1]} : vector<2x192xf32> to vector<2x64xf32>
    %29 = arith.addf %27, %28 : vector<2x64xf32>
    %30 = arith.negf %29 : vector<2x64xf32>
    %31 = math.exp %30 : vector<2x64xf32>
    %cst_14 = arith.constant 1.000000e+00 : f32
    %32 = vector.broadcast %cst_14 : f32 to vector<2x64xf32>
    %33 = arith.addf %32, %31 : vector<2x64xf32>
    %34 = arith.divf %32, %33 : vector<2x64xf32>
    %35 = vector.extract_strided_slice %21 {offsets = [0, 64], sizes = [2, 64], strides = [1, 1]} : vector<2x192xf32> to vector<2x64xf32>
    %36 = vector.extract_strided_slice %26 {offsets = [0, 64], sizes = [2, 64], strides = [1, 1]} : vector<2x192xf32> to vector<2x64xf32>
    %37 = arith.addf %35, %36 : vector<2x64xf32>
    %38 = arith.negf %37 : vector<2x64xf32>
    %39 = math.exp %38 : vector<2x64xf32>
    %cst_15 = arith.constant 1.000000e+00 : f32
    %40 = vector.broadcast %cst_15 : f32 to vector<2x64xf32>
    %41 = arith.addf %40, %39 : vector<2x64xf32>
    %42 = arith.divf %40, %41 : vector<2x64xf32>
    %43 = vector.extract_strided_slice %21 {offsets = [0, 128], sizes = [2, 64], strides = [1, 1]} : vector<2x192xf32> to vector<2x64xf32>
    %44 = vector.extract_strided_slice %26 {offsets = [0, 128], sizes = [2, 64], strides = [1, 1]} : vector<2x192xf32> to vector<2x64xf32>
    %45 = arith.mulf %34, %44 : vector<2x64xf32>
    %46 = arith.addf %43, %45 : vector<2x64xf32>
    %47 = math.tanh %46 : vector<2x64xf32>
    %cst_16 = arith.constant 1.000000e+00 : f32
    %48 = vector.broadcast %cst_16 : f32 to vector<2x64xf32>
    %49 = arith.subf %48, %42 : vector<2x64xf32>
    %50 = arith.mulf %49, %47 : vector<2x64xf32>
    %51 = arith.mulf %42, %11 : vector<2x64xf32>
    %52 = arith.addf %50, %51 : vector<2x64xf32>
    %53 = vector.extract_strided_slice %10 {offsets = [0, 1, 0], sizes = [2, 1, 16], strides = [1, 1, 1]} : vector<2x8x16xf32> to vector<2x1x16xf32>
    %54 = vector.shape_cast %53 : vector<2x1x16xf32> to vector<2x16xf32>
    %55 = vector.extract_strided_slice %10 {offsets = [0, 6, 0], sizes = [2, 1, 16], strides = [1, 1, 1]} : vector<2x8x16xf32> to vector<2x1x16xf32>
    %56 = vector.shape_cast %55 : vector<2x1x16xf32> to vector<2x16xf32>
    %57 = tpu.concatenate %54, %56 in 1 : vector<2x16xf32>, vector<2x16xf32> -> vector<2x32xf32>
    %c0_17 = arith.constant 0 : index
    %c0_18 = arith.constant 0 : index
    %58 = vector.load %arg4[%c0_17, %c0_18] : memref<32x192xf32, #tpu.memory_space<vmem>>, vector<32x192xf32>
    %cst_19 = arith.constant dense<0.000000e+00> : vector<2x192xf32>
    %59 = tpu.matmul %57, %58, %cst_19 {dimension_numbers = #tpu.dot_dimension_numbers<[1], [0], [0], [1], [0, 0, 1, 1], [], []>} : vector<2x32xf32>, vector<32x192xf32>, vector<2x192xf32> -> vector<2x192xf32>
    %c0_20 = arith.constant 0 : index
    %c0_21 = arith.constant 0 : index
    %60 = vector.load %arg6[%c0_20, %c0_21] : memref<1x192xf32, #tpu.memory_space<vmem>>, vector<1x192xf32>
    %61 = vector.broadcast %60 : vector<1x192xf32> to vector<2x192xf32>
    %62 = arith.addf %59, %61 : vector<2x192xf32>
    %c0_22 = arith.constant 0 : index
    %c0_23 = arith.constant 0 : index
    %63 = vector.load %arg5[%c0_22, %c0_23] : memref<64x192xf32, #tpu.memory_space<vmem>>, vector<64x192xf32>
    %cst_24 = arith.constant dense<0.000000e+00> : vector<2x192xf32>
    %64 = tpu.matmul %52, %63, %cst_24 {dimension_numbers = #tpu.dot_dimension_numbers<[1], [0], [0], [1], [0, 0, 1, 1], [], []>} : vector<2x64xf32>, vector<64x192xf32>, vector<2x192xf32> -> vector<2x192xf32>
    %c0_25 = arith.constant 0 : index
    %c0_26 = arith.constant 0 : index
    %65 = vector.load %arg7[%c0_25, %c0_26] : memref<1x192xf32, #tpu.memory_space<vmem>>, vector<1x192xf32>
    %66 = vector.broadcast %65 : vector<1x192xf32> to vector<2x192xf32>
    %67 = arith.addf %64, %66 : vector<2x192xf32>
    %68 = vector.extract_strided_slice %62 {offsets = [0, 0], sizes = [2, 64], strides = [1, 1]} : vector<2x192xf32> to vector<2x64xf32>
    %69 = vector.extract_strided_slice %67 {offsets = [0, 0], sizes = [2, 64], strides = [1, 1]} : vector<2x192xf32> to vector<2x64xf32>
    %70 = arith.addf %68, %69 : vector<2x64xf32>
    %71 = arith.negf %70 : vector<2x64xf32>
    %72 = math.exp %71 : vector<2x64xf32>
    %cst_27 = arith.constant 1.000000e+00 : f32
    %73 = vector.broadcast %cst_27 : f32 to vector<2x64xf32>
    %74 = arith.addf %73, %72 : vector<2x64xf32>
    %75 = arith.divf %73, %74 : vector<2x64xf32>
    %76 = vector.extract_strided_slice %62 {offsets = [0, 64], sizes = [2, 64], strides = [1, 1]} : vector<2x192xf32> to vector<2x64xf32>
    %77 = vector.extract_strided_slice %67 {offsets = [0, 64], sizes = [2, 64], strides = [1, 1]} : vector<2x192xf32> to vector<2x64xf32>
    %78 = arith.addf %76, %77 : vector<2x64xf32>
    %79 = arith.negf %78 : vector<2x64xf32>
    %80 = math.exp %79 : vector<2x64xf32>
    %cst_28 = arith.constant 1.000000e+00 : f32
    %81 = vector.broadcast %cst_28 : f32 to vector<2x64xf32>
    %82 = arith.addf %81, %80 : vector<2x64xf32>
    %83 = arith.divf %81, %82 : vector<2x64xf32>
    %84 = vector.extract_strided_slice %62 {offsets = [0, 128], sizes = [2, 64], strides = [1, 1]} : vector<2x192xf32> to vector<2x64xf32>
    %85 = vector.extract_strided_slice %67 {offsets = [0, 128], sizes = [2, 64], strides = [1, 1]} : vector<2x192xf32> to vector<2x64xf32>
    %86 = arith.mulf %75, %85 : vector<2x64xf32>
    %87 = arith.addf %84, %86 : vector<2x64xf32>
    %88 = math.tanh %87 : vector<2x64xf32>
    %cst_29 = arith.constant 1.000000e+00 : f32
    %89 = vector.broadcast %cst_29 : f32 to vector<2x64xf32>
    %90 = arith.subf %89, %83 : vector<2x64xf32>
    %91 = arith.mulf %90, %88 : vector<2x64xf32>
    %92 = arith.mulf %83, %52 : vector<2x64xf32>
    %93 = arith.addf %91, %92 : vector<2x64xf32>
    %94 = vector.extract_strided_slice %10 {offsets = [0, 2, 0], sizes = [2, 1, 16], strides = [1, 1, 1]} : vector<2x8x16xf32> to vector<2x1x16xf32>
    %95 = vector.shape_cast %94 : vector<2x1x16xf32> to vector<2x16xf32>
    %96 = vector.extract_strided_slice %10 {offsets = [0, 5, 0], sizes = [2, 1, 16], strides = [1, 1, 1]} : vector<2x8x16xf32> to vector<2x1x16xf32>
    %97 = vector.shape_cast %96 : vector<2x1x16xf32> to vector<2x16xf32>
    %98 = tpu.concatenate %95, %97 in 1 : vector<2x16xf32>, vector<2x16xf32> -> vector<2x32xf32>
    %c0_30 = arith.constant 0 : index
    %c0_31 = arith.constant 0 : index
    %99 = vector.load %arg4[%c0_30, %c0_31] : memref<32x192xf32, #tpu.memory_space<vmem>>, vector<32x192xf32>
    %cst_32 = arith.constant dense<0.000000e+00> : vector<2x192xf32>
    %100 = tpu.matmul %98, %99, %cst_32 {dimension_numbers = #tpu.dot_dimension_numbers<[1], [0], [0], [1], [0, 0, 1, 1], [], []>} : vector<2x32xf32>, vector<32x192xf32>, vector<2x192xf32> -> vector<2x192xf32>
    %c0_33 = arith.constant 0 : index
    %c0_34 = arith.constant 0 : index
    %101 = vector.load %arg6[%c0_33, %c0_34] : memref<1x192xf32, #tpu.memory_space<vmem>>, vector<1x192xf32>
    %102 = vector.broadcast %101 : vector<1x192xf32> to vector<2x192xf32>
    %103 = arith.addf %100, %102 : vector<2x192xf32>
    %c0_35 = arith.constant 0 : index
    %c0_36 = arith.constant 0 : index
    %104 = vector.load %arg5[%c0_35, %c0_36] : memref<64x192xf32, #tpu.memory_space<vmem>>, vector<64x192xf32>
    %cst_37 = arith.constant dense<0.000000e+00> : vector<2x192xf32>
    %105 = tpu.matmul %93, %104, %cst_37 {dimension_numbers = #tpu.dot_dimension_numbers<[1], [0], [0], [1], [0, 0, 1, 1], [], []>} : vector<2x64xf32>, vector<64x192xf32>, vector<2x192xf32> -> vector<2x192xf32>
    %c0_38 = arith.constant 0 : index
    %c0_39 = arith.constant 0 : index
    %106 = vector.load %arg7[%c0_38, %c0_39] : memref<1x192xf32, #tpu.memory_space<vmem>>, vector<1x192xf32>
    %107 = vector.broadcast %106 : vector<1x192xf32> to vector<2x192xf32>
    %108 = arith.addf %105, %107 : vector<2x192xf32>
    %109 = vector.extract_strided_slice %103 {offsets = [0, 0], sizes = [2, 64], strides = [1, 1]} : vector<2x192xf32> to vector<2x64xf32>
    %110 = vector.extract_strided_slice %108 {offsets = [0, 0], sizes = [2, 64], strides = [1, 1]} : vector<2x192xf32> to vector<2x64xf32>
    %111 = arith.addf %109, %110 : vector<2x64xf32>
    %112 = arith.negf %111 : vector<2x64xf32>
    %113 = math.exp %112 : vector<2x64xf32>
    %cst_40 = arith.constant 1.000000e+00 : f32
    %114 = vector.broadcast %cst_40 : f32 to vector<2x64xf32>
    %115 = arith.addf %114, %113 : vector<2x64xf32>
    %116 = arith.divf %114, %115 : vector<2x64xf32>
    %117 = vector.extract_strided_slice %103 {offsets = [0, 64], sizes = [2, 64], strides = [1, 1]} : vector<2x192xf32> to vector<2x64xf32>
    %118 = vector.extract_strided_slice %108 {offsets = [0, 64], sizes = [2, 64], strides = [1, 1]} : vector<2x192xf32> to vector<2x64xf32>
    %119 = arith.addf %117, %118 : vector<2x64xf32>
    %120 = arith.negf %119 : vector<2x64xf32>
    %121 = math.exp %120 : vector<2x64xf32>
    %cst_41 = arith.constant 1.000000e+00 : f32
    %122 = vector.broadcast %cst_41 : f32 to vector<2x64xf32>
    %123 = arith.addf %122, %121 : vector<2x64xf32>
    %124 = arith.divf %122, %123 : vector<2x64xf32>
    %125 = vector.extract_strided_slice %103 {offsets = [0, 128], sizes = [2, 64], strides = [1, 1]} : vector<2x192xf32> to vector<2x64xf32>
    %126 = vector.extract_strided_slice %108 {offsets = [0, 128], sizes = [2, 64], strides = [1, 1]} : vector<2x192xf32> to vector<2x64xf32>
    %127 = arith.mulf %116, %126 : vector<2x64xf32>
    %128 = arith.addf %125, %127 : vector<2x64xf32>
    %129 = math.tanh %128 : vector<2x64xf32>
    %cst_42 = arith.constant 1.000000e+00 : f32
    %130 = vector.broadcast %cst_42 : f32 to vector<2x64xf32>
    %131 = arith.subf %130, %124 : vector<2x64xf32>
    %132 = arith.mulf %131, %129 : vector<2x64xf32>
    %133 = arith.mulf %124, %93 : vector<2x64xf32>
    %134 = arith.addf %132, %133 : vector<2x64xf32>
    %135 = vector.extract_strided_slice %10 {offsets = [0, 3, 0], sizes = [2, 1, 16], strides = [1, 1, 1]} : vector<2x8x16xf32> to vector<2x1x16xf32>
    %136 = vector.shape_cast %135 : vector<2x1x16xf32> to vector<2x16xf32>
    %137 = vector.extract_strided_slice %10 {offsets = [0, 4, 0], sizes = [2, 1, 16], strides = [1, 1, 1]} : vector<2x8x16xf32> to vector<2x1x16xf32>
    %138 = vector.shape_cast %137 : vector<2x1x16xf32> to vector<2x16xf32>
    %139 = tpu.concatenate %136, %138 in 1 : vector<2x16xf32>, vector<2x16xf32> -> vector<2x32xf32>
    %c0_43 = arith.constant 0 : index
    %c0_44 = arith.constant 0 : index
    %140 = vector.load %arg4[%c0_43, %c0_44] : memref<32x192xf32, #tpu.memory_space<vmem>>, vector<32x192xf32>
    %cst_45 = arith.constant dense<0.000000e+00> : vector<2x192xf32>
    %141 = tpu.matmul %139, %140, %cst_45 {dimension_numbers = #tpu.dot_dimension_numbers<[1], [0], [0], [1], [0, 0, 1, 1], [], []>} : vector<2x32xf32>, vector<32x192xf32>, vector<2x192xf32> -> vector<2x192xf32>
    %c0_46 = arith.constant 0 : index
    %c0_47 = arith.constant 0 : index
    %142 = vector.load %arg6[%c0_46, %c0_47] : memref<1x192xf32, #tpu.memory_space<vmem>>, vector<1x192xf32>
    %143 = vector.broadcast %142 : vector<1x192xf32> to vector<2x192xf32>
    %144 = arith.addf %141, %143 : vector<2x192xf32>
    %c0_48 = arith.constant 0 : index
    %c0_49 = arith.constant 0 : index
    %145 = vector.load %arg5[%c0_48, %c0_49] : memref<64x192xf32, #tpu.memory_space<vmem>>, vector<64x192xf32>
    %cst_50 = arith.constant dense<0.000000e+00> : vector<2x192xf32>
    %146 = tpu.matmul %134, %145, %cst_50 {dimension_numbers = #tpu.dot_dimension_numbers<[1], [0], [0], [1], [0, 0, 1, 1], [], []>} : vector<2x64xf32>, vector<64x192xf32>, vector<2x192xf32> -> vector<2x192xf32>
    %c0_51 = arith.constant 0 : index
    %c0_52 = arith.constant 0 : index
    %147 = vector.load %arg7[%c0_51, %c0_52] : memref<1x192xf32, #tpu.memory_space<vmem>>, vector<1x192xf32>
    %148 = vector.broadcast %147 : vector<1x192xf32> to vector<2x192xf32>
    %149 = arith.addf %146, %148 : vector<2x192xf32>
    %150 = vector.extract_strided_slice %144 {offsets = [0, 0], sizes = [2, 64], strides = [1, 1]} : vector<2x192xf32> to vector<2x64xf32>
    %151 = vector.extract_strided_slice %149 {offsets = [0, 0], sizes = [2, 64], strides = [1, 1]} : vector<2x192xf32> to vector<2x64xf32>
    %152 = arith.addf %150, %151 : vector<2x64xf32>
    %153 = arith.negf %152 : vector<2x64xf32>
    %154 = math.exp %153 : vector<2x64xf32>
    %cst_53 = arith.constant 1.000000e+00 : f32
    %155 = vector.broadcast %cst_53 : f32 to vector<2x64xf32>
    %156 = arith.addf %155, %154 : vector<2x64xf32>
    %157 = arith.divf %155, %156 : vector<2x64xf32>
    %158 = vector.extract_strided_slice %144 {offsets = [0, 64], sizes = [2, 64], strides = [1, 1]} : vector<2x192xf32> to vector<2x64xf32>
    %159 = vector.extract_strided_slice %149 {offsets = [0, 64], sizes = [2, 64], strides = [1, 1]} : vector<2x192xf32> to vector<2x64xf32>
    %160 = arith.addf %158, %159 : vector<2x64xf32>
    %161 = arith.negf %160 : vector<2x64xf32>
    %162 = math.exp %161 : vector<2x64xf32>
    %cst_54 = arith.constant 1.000000e+00 : f32
    %163 = vector.broadcast %cst_54 : f32 to vector<2x64xf32>
    %164 = arith.addf %163, %162 : vector<2x64xf32>
    %165 = arith.divf %163, %164 : vector<2x64xf32>
    %166 = vector.extract_strided_slice %144 {offsets = [0, 128], sizes = [2, 64], strides = [1, 1]} : vector<2x192xf32> to vector<2x64xf32>
    %167 = vector.extract_strided_slice %149 {offsets = [0, 128], sizes = [2, 64], strides = [1, 1]} : vector<2x192xf32> to vector<2x64xf32>
    %168 = arith.mulf %157, %167 : vector<2x64xf32>
    %169 = arith.addf %166, %168 : vector<2x64xf32>
    %170 = math.tanh %169 : vector<2x64xf32>
    %cst_55 = arith.constant 1.000000e+00 : f32
    %171 = vector.broadcast %cst_55 : f32 to vector<2x64xf32>
    %172 = arith.subf %171, %165 : vector<2x64xf32>
    %173 = arith.mulf %172, %170 : vector<2x64xf32>
    %174 = arith.mulf %165, %134 : vector<2x64xf32>
    %175 = arith.addf %173, %174 : vector<2x64xf32>
    %176 = vector.extract_strided_slice %10 {offsets = [0, 4, 0], sizes = [2, 1, 16], strides = [1, 1, 1]} : vector<2x8x16xf32> to vector<2x1x16xf32>
    %177 = vector.shape_cast %176 : vector<2x1x16xf32> to vector<2x16xf32>
    %178 = vector.extract_strided_slice %10 {offsets = [0, 3, 0], sizes = [2, 1, 16], strides = [1, 1, 1]} : vector<2x8x16xf32> to vector<2x1x16xf32>
    %179 = vector.shape_cast %178 : vector<2x1x16xf32> to vector<2x16xf32>
    %180 = tpu.concatenate %177, %179 in 1 : vector<2x16xf32>, vector<2x16xf32> -> vector<2x32xf32>
    %c0_56 = arith.constant 0 : index
    %c0_57 = arith.constant 0 : index
    %181 = vector.load %arg4[%c0_56, %c0_57] : memref<32x192xf32, #tpu.memory_space<vmem>>, vector<32x192xf32>
    %cst_58 = arith.constant dense<0.000000e+00> : vector<2x192xf32>
    %182 = tpu.matmul %180, %181, %cst_58 {dimension_numbers = #tpu.dot_dimension_numbers<[1], [0], [0], [1], [0, 0, 1, 1], [], []>} : vector<2x32xf32>, vector<32x192xf32>, vector<2x192xf32> -> vector<2x192xf32>
    %c0_59 = arith.constant 0 : index
    %c0_60 = arith.constant 0 : index
    %183 = vector.load %arg6[%c0_59, %c0_60] : memref<1x192xf32, #tpu.memory_space<vmem>>, vector<1x192xf32>
    %184 = vector.broadcast %183 : vector<1x192xf32> to vector<2x192xf32>
    %185 = arith.addf %182, %184 : vector<2x192xf32>
    %c0_61 = arith.constant 0 : index
    %c0_62 = arith.constant 0 : index
    %186 = vector.load %arg5[%c0_61, %c0_62] : memref<64x192xf32, #tpu.memory_space<vmem>>, vector<64x192xf32>
    %cst_63 = arith.constant dense<0.000000e+00> : vector<2x192xf32>
    %187 = tpu.matmul %175, %186, %cst_63 {dimension_numbers = #tpu.dot_dimension_numbers<[1], [0], [0], [1], [0, 0, 1, 1], [], []>} : vector<2x64xf32>, vector<64x192xf32>, vector<2x192xf32> -> vector<2x192xf32>
    %c0_64 = arith.constant 0 : index
    %c0_65 = arith.constant 0 : index
    %188 = vector.load %arg7[%c0_64, %c0_65] : memref<1x192xf32, #tpu.memory_space<vmem>>, vector<1x192xf32>
    %189 = vector.broadcast %188 : vector<1x192xf32> to vector<2x192xf32>
    %190 = arith.addf %187, %189 : vector<2x192xf32>
    %191 = vector.extract_strided_slice %185 {offsets = [0, 0], sizes = [2, 64], strides = [1, 1]} : vector<2x192xf32> to vector<2x64xf32>
    %192 = vector.extract_strided_slice %190 {offsets = [0, 0], sizes = [2, 64], strides = [1, 1]} : vector<2x192xf32> to vector<2x64xf32>
    %193 = arith.addf %191, %192 : vector<2x64xf32>
    %194 = arith.negf %193 : vector<2x64xf32>
    %195 = math.exp %194 : vector<2x64xf32>
    %cst_66 = arith.constant 1.000000e+00 : f32
    %196 = vector.broadcast %cst_66 : f32 to vector<2x64xf32>
    %197 = arith.addf %196, %195 : vector<2x64xf32>
    %198 = arith.divf %196, %197 : vector<2x64xf32>
    %199 = vector.extract_strided_slice %185 {offsets = [0, 64], sizes = [2, 64], strides = [1, 1]} : vector<2x192xf32> to vector<2x64xf32>
    %200 = vector.extract_strided_slice %190 {offsets = [0, 64], sizes = [2, 64], strides = [1, 1]} : vector<2x192xf32> to vector<2x64xf32>
    %201 = arith.addf %199, %200 : vector<2x64xf32>
    %202 = arith.negf %201 : vector<2x64xf32>
    %203 = math.exp %202 : vector<2x64xf32>
    %cst_67 = arith.constant 1.000000e+00 : f32
    %204 = vector.broadcast %cst_67 : f32 to vector<2x64xf32>
    %205 = arith.addf %204, %203 : vector<2x64xf32>
    %206 = arith.divf %204, %205 : vector<2x64xf32>
    %207 = vector.extract_strided_slice %185 {offsets = [0, 128], sizes = [2, 64], strides = [1, 1]} : vector<2x192xf32> to vector<2x64xf32>
    %208 = vector.extract_strided_slice %190 {offsets = [0, 128], sizes = [2, 64], strides = [1, 1]} : vector<2x192xf32> to vector<2x64xf32>
    %209 = arith.mulf %198, %208 : vector<2x64xf32>
    %210 = arith.addf %207, %209 : vector<2x64xf32>
    %211 = math.tanh %210 : vector<2x64xf32>
    %cst_68 = arith.constant 1.000000e+00 : f32
    %212 = vector.broadcast %cst_68 : f32 to vector<2x64xf32>
    %213 = arith.subf %212, %206 : vector<2x64xf32>
    %214 = arith.mulf %213, %211 : vector<2x64xf32>
    %215 = arith.mulf %206, %175 : vector<2x64xf32>
    %216 = arith.addf %214, %215 : vector<2x64xf32>
    %217 = vector.extract_strided_slice %10 {offsets = [0, 5, 0], sizes = [2, 1, 16], strides = [1, 1, 1]} : vector<2x8x16xf32> to vector<2x1x16xf32>
    %218 = vector.shape_cast %217 : vector<2x1x16xf32> to vector<2x16xf32>
    %219 = vector.extract_strided_slice %10 {offsets = [0, 2, 0], sizes = [2, 1, 16], strides = [1, 1, 1]} : vector<2x8x16xf32> to vector<2x1x16xf32>
    %220 = vector.shape_cast %219 : vector<2x1x16xf32> to vector<2x16xf32>
    %221 = tpu.concatenate %218, %220 in 1 : vector<2x16xf32>, vector<2x16xf32> -> vector<2x32xf32>
    %c0_69 = arith.constant 0 : index
    %c0_70 = arith.constant 0 : index
    %222 = vector.load %arg4[%c0_69, %c0_70] : memref<32x192xf32, #tpu.memory_space<vmem>>, vector<32x192xf32>
    %cst_71 = arith.constant dense<0.000000e+00> : vector<2x192xf32>
    %223 = tpu.matmul %221, %222, %cst_71 {dimension_numbers = #tpu.dot_dimension_numbers<[1], [0], [0], [1], [0, 0, 1, 1], [], []>} : vector<2x32xf32>, vector<32x192xf32>, vector<2x192xf32> -> vector<2x192xf32>
    %c0_72 = arith.constant 0 : index
    %c0_73 = arith.constant 0 : index
    %224 = vector.load %arg6[%c0_72, %c0_73] : memref<1x192xf32, #tpu.memory_space<vmem>>, vector<1x192xf32>
    %225 = vector.broadcast %224 : vector<1x192xf32> to vector<2x192xf32>
    %226 = arith.addf %223, %225 : vector<2x192xf32>
    %c0_74 = arith.constant 0 : index
    %c0_75 = arith.constant 0 : index
    %227 = vector.load %arg5[%c0_74, %c0_75] : memref<64x192xf32, #tpu.memory_space<vmem>>, vector<64x192xf32>
    %cst_76 = arith.constant dense<0.000000e+00> : vector<2x192xf32>
    %228 = tpu.matmul %216, %227, %cst_76 {dimension_numbers = #tpu.dot_dimension_numbers<[1], [0], [0], [1], [0, 0, 1, 1], [], []>} : vector<2x64xf32>, vector<64x192xf32>, vector<2x192xf32> -> vector<2x192xf32>
    %c0_77 = arith.constant 0 : index
    %c0_78 = arith.constant 0 : index
    %229 = vector.load %arg7[%c0_77, %c0_78] : memref<1x192xf32, #tpu.memory_space<vmem>>, vector<1x192xf32>
    %230 = vector.broadcast %229 : vector<1x192xf32> to vector<2x192xf32>
    %231 = arith.addf %228, %230 : vector<2x192xf32>
    %232 = vector.extract_strided_slice %226 {offsets = [0, 0], sizes = [2, 64], strides = [1, 1]} : vector<2x192xf32> to vector<2x64xf32>
    %233 = vector.extract_strided_slice %231 {offsets = [0, 0], sizes = [2, 64], strides = [1, 1]} : vector<2x192xf32> to vector<2x64xf32>
    %234 = arith.addf %232, %233 : vector<2x64xf32>
    %235 = arith.negf %234 : vector<2x64xf32>
    %236 = math.exp %235 : vector<2x64xf32>
    %cst_79 = arith.constant 1.000000e+00 : f32
    %237 = vector.broadcast %cst_79 : f32 to vector<2x64xf32>
    %238 = arith.addf %237, %236 : vector<2x64xf32>
    %239 = arith.divf %237, %238 : vector<2x64xf32>
    %240 = vector.extract_strided_slice %226 {offsets = [0, 64], sizes = [2, 64], strides = [1, 1]} : vector<2x192xf32> to vector<2x64xf32>
    %241 = vector.extract_strided_slice %231 {offsets = [0, 64], sizes = [2, 64], strides = [1, 1]} : vector<2x192xf32> to vector<2x64xf32>
    %242 = arith.addf %240, %241 : vector<2x64xf32>
    %243 = arith.negf %242 : vector<2x64xf32>
    %244 = math.exp %243 : vector<2x64xf32>
    %cst_80 = arith.constant 1.000000e+00 : f32
    %245 = vector.broadcast %cst_80 : f32 to vector<2x64xf32>
    %246 = arith.addf %245, %244 : vector<2x64xf32>
    %247 = arith.divf %245, %246 : vector<2x64xf32>
    %248 = vector.extract_strided_slice %226 {offsets = [0, 128], sizes = [2, 64], strides = [1, 1]} : vector<2x192xf32> to vector<2x64xf32>
    %249 = vector.extract_strided_slice %231 {offsets = [0, 128], sizes = [2, 64], strides = [1, 1]} : vector<2x192xf32> to vector<2x64xf32>
    %250 = arith.mulf %239, %249 : vector<2x64xf32>
    %251 = arith.addf %248, %250 : vector<2x64xf32>
    %252 = math.tanh %251 : vector<2x64xf32>
    %cst_81 = arith.constant 1.000000e+00 : f32
    %253 = vector.broadcast %cst_81 : f32 to vector<2x64xf32>
    %254 = arith.subf %253, %247 : vector<2x64xf32>
    %255 = arith.mulf %254, %252 : vector<2x64xf32>
    %256 = arith.mulf %247, %216 : vector<2x64xf32>
    %257 = arith.addf %255, %256 : vector<2x64xf32>
    %258 = vector.extract_strided_slice %10 {offsets = [0, 6, 0], sizes = [2, 1, 16], strides = [1, 1, 1]} : vector<2x8x16xf32> to vector<2x1x16xf32>
    %259 = vector.shape_cast %258 : vector<2x1x16xf32> to vector<2x16xf32>
    %260 = vector.extract_strided_slice %10 {offsets = [0, 1, 0], sizes = [2, 1, 16], strides = [1, 1, 1]} : vector<2x8x16xf32> to vector<2x1x16xf32>
    %261 = vector.shape_cast %260 : vector<2x1x16xf32> to vector<2x16xf32>
    %262 = tpu.concatenate %259, %261 in 1 : vector<2x16xf32>, vector<2x16xf32> -> vector<2x32xf32>
    %c0_82 = arith.constant 0 : index
    %c0_83 = arith.constant 0 : index
    %263 = vector.load %arg4[%c0_82, %c0_83] : memref<32x192xf32, #tpu.memory_space<vmem>>, vector<32x192xf32>
    %cst_84 = arith.constant dense<0.000000e+00> : vector<2x192xf32>
    %264 = tpu.matmul %262, %263, %cst_84 {dimension_numbers = #tpu.dot_dimension_numbers<[1], [0], [0], [1], [0, 0, 1, 1], [], []>} : vector<2x32xf32>, vector<32x192xf32>, vector<2x192xf32> -> vector<2x192xf32>
    %c0_85 = arith.constant 0 : index
    %c0_86 = arith.constant 0 : index
    %265 = vector.load %arg6[%c0_85, %c0_86] : memref<1x192xf32, #tpu.memory_space<vmem>>, vector<1x192xf32>
    %266 = vector.broadcast %265 : vector<1x192xf32> to vector<2x192xf32>
    %267 = arith.addf %264, %266 : vector<2x192xf32>
    %c0_87 = arith.constant 0 : index
    %c0_88 = arith.constant 0 : index
    %268 = vector.load %arg5[%c0_87, %c0_88] : memref<64x192xf32, #tpu.memory_space<vmem>>, vector<64x192xf32>
    %cst_89 = arith.constant dense<0.000000e+00> : vector<2x192xf32>
    %269 = tpu.matmul %257, %268, %cst_89 {dimension_numbers = #tpu.dot_dimension_numbers<[1], [0], [0], [1], [0, 0, 1, 1], [], []>} : vector<2x64xf32>, vector<64x192xf32>, vector<2x192xf32> -> vector<2x192xf32>
    %c0_90 = arith.constant 0 : index
    %c0_91 = arith.constant 0 : index
    %270 = vector.load %arg7[%c0_90, %c0_91] : memref<1x192xf32, #tpu.memory_space<vmem>>, vector<1x192xf32>
    %271 = vector.broadcast %270 : vector<1x192xf32> to vector<2x192xf32>
    %272 = arith.addf %269, %271 : vector<2x192xf32>
    %273 = vector.extract_strided_slice %267 {offsets = [0, 0], sizes = [2, 64], strides = [1, 1]} : vector<2x192xf32> to vector<2x64xf32>
    %274 = vector.extract_strided_slice %272 {offsets = [0, 0], sizes = [2, 64], strides = [1, 1]} : vector<2x192xf32> to vector<2x64xf32>
    %275 = arith.addf %273, %274 : vector<2x64xf32>
    %276 = arith.negf %275 : vector<2x64xf32>
    %277 = math.exp %276 : vector<2x64xf32>
    %cst_92 = arith.constant 1.000000e+00 : f32
    %278 = vector.broadcast %cst_92 : f32 to vector<2x64xf32>
    %279 = arith.addf %278, %277 : vector<2x64xf32>
    %280 = arith.divf %278, %279 : vector<2x64xf32>
    %281 = vector.extract_strided_slice %267 {offsets = [0, 64], sizes = [2, 64], strides = [1, 1]} : vector<2x192xf32> to vector<2x64xf32>
    %282 = vector.extract_strided_slice %272 {offsets = [0, 64], sizes = [2, 64], strides = [1, 1]} : vector<2x192xf32> to vector<2x64xf32>
    %283 = arith.addf %281, %282 : vector<2x64xf32>
    %284 = arith.negf %283 : vector<2x64xf32>
    %285 = math.exp %284 : vector<2x64xf32>
    %cst_93 = arith.constant 1.000000e+00 : f32
    %286 = vector.broadcast %cst_93 : f32 to vector<2x64xf32>
    %287 = arith.addf %286, %285 : vector<2x64xf32>
    %288 = arith.divf %286, %287 : vector<2x64xf32>
    %289 = vector.extract_strided_slice %267 {offsets = [0, 128], sizes = [2, 64], strides = [1, 1]} : vector<2x192xf32> to vector<2x64xf32>
    %290 = vector.extract_strided_slice %272 {offsets = [0, 128], sizes = [2, 64], strides = [1, 1]} : vector<2x192xf32> to vector<2x64xf32>
    %291 = arith.mulf %280, %290 : vector<2x64xf32>
    %292 = arith.addf %289, %291 : vector<2x64xf32>
    %293 = math.tanh %292 : vector<2x64xf32>
    %cst_94 = arith.constant 1.000000e+00 : f32
    %294 = vector.broadcast %cst_94 : f32 to vector<2x64xf32>
    %295 = arith.subf %294, %288 : vector<2x64xf32>
    %296 = arith.mulf %295, %293 : vector<2x64xf32>
    %297 = arith.mulf %288, %257 : vector<2x64xf32>
    %298 = arith.addf %296, %297 : vector<2x64xf32>
    %299 = vector.extract_strided_slice %10 {offsets = [0, 7, 0], sizes = [2, 1, 16], strides = [1, 1, 1]} : vector<2x8x16xf32> to vector<2x1x16xf32>
    %300 = vector.shape_cast %299 : vector<2x1x16xf32> to vector<2x16xf32>
    %301 = vector.extract_strided_slice %10 {offsets = [0, 0, 0], sizes = [2, 1, 16], strides = [1, 1, 1]} : vector<2x8x16xf32> to vector<2x1x16xf32>
    %302 = vector.shape_cast %301 : vector<2x1x16xf32> to vector<2x16xf32>
    %303 = tpu.concatenate %300, %302 in 1 : vector<2x16xf32>, vector<2x16xf32> -> vector<2x32xf32>
    %c0_95 = arith.constant 0 : index
    %c0_96 = arith.constant 0 : index
    %304 = vector.load %arg4[%c0_95, %c0_96] : memref<32x192xf32, #tpu.memory_space<vmem>>, vector<32x192xf32>
    %cst_97 = arith.constant dense<0.000000e+00> : vector<2x192xf32>
    %305 = tpu.matmul %303, %304, %cst_97 {dimension_numbers = #tpu.dot_dimension_numbers<[1], [0], [0], [1], [0, 0, 1, 1], [], []>} : vector<2x32xf32>, vector<32x192xf32>, vector<2x192xf32> -> vector<2x192xf32>
    %c0_98 = arith.constant 0 : index
    %c0_99 = arith.constant 0 : index
    %306 = vector.load %arg6[%c0_98, %c0_99] : memref<1x192xf32, #tpu.memory_space<vmem>>, vector<1x192xf32>
    %307 = vector.broadcast %306 : vector<1x192xf32> to vector<2x192xf32>
    %308 = arith.addf %305, %307 : vector<2x192xf32>
    %c0_100 = arith.constant 0 : index
    %c0_101 = arith.constant 0 : index
    %309 = vector.load %arg5[%c0_100, %c0_101] : memref<64x192xf32, #tpu.memory_space<vmem>>, vector<64x192xf32>
    %cst_102 = arith.constant dense<0.000000e+00> : vector<2x192xf32>
    %310 = tpu.matmul %298, %309, %cst_102 {dimension_numbers = #tpu.dot_dimension_numbers<[1], [0], [0], [1], [0, 0, 1, 1], [], []>} : vector<2x64xf32>, vector<64x192xf32>, vector<2x192xf32> -> vector<2x192xf32>
    %c0_103 = arith.constant 0 : index
    %c0_104 = arith.constant 0 : index
    %311 = vector.load %arg7[%c0_103, %c0_104] : memref<1x192xf32, #tpu.memory_space<vmem>>, vector<1x192xf32>
    %312 = vector.broadcast %311 : vector<1x192xf32> to vector<2x192xf32>
    %313 = arith.addf %310, %312 : vector<2x192xf32>
    %314 = vector.extract_strided_slice %308 {offsets = [0, 0], sizes = [2, 64], strides = [1, 1]} : vector<2x192xf32> to vector<2x64xf32>
    %315 = vector.extract_strided_slice %313 {offsets = [0, 0], sizes = [2, 64], strides = [1, 1]} : vector<2x192xf32> to vector<2x64xf32>
    %316 = arith.addf %314, %315 : vector<2x64xf32>
    %317 = arith.negf %316 : vector<2x64xf32>
    %318 = math.exp %317 : vector<2x64xf32>
    %cst_105 = arith.constant 1.000000e+00 : f32
    %319 = vector.broadcast %cst_105 : f32 to vector<2x64xf32>
    %320 = arith.addf %319, %318 : vector<2x64xf32>
    %321 = arith.divf %319, %320 : vector<2x64xf32>
    %322 = vector.extract_strided_slice %308 {offsets = [0, 64], sizes = [2, 64], strides = [1, 1]} : vector<2x192xf32> to vector<2x64xf32>
    %323 = vector.extract_strided_slice %313 {offsets = [0, 64], sizes = [2, 64], strides = [1, 1]} : vector<2x192xf32> to vector<2x64xf32>
    %324 = arith.addf %322, %323 : vector<2x64xf32>
    %325 = arith.negf %324 : vector<2x64xf32>
    %326 = math.exp %325 : vector<2x64xf32>
    %cst_106 = arith.constant 1.000000e+00 : f32
    %327 = vector.broadcast %cst_106 : f32 to vector<2x64xf32>
    %328 = arith.addf %327, %326 : vector<2x64xf32>
    %329 = arith.divf %327, %328 : vector<2x64xf32>
    %330 = vector.extract_strided_slice %308 {offsets = [0, 128], sizes = [2, 64], strides = [1, 1]} : vector<2x192xf32> to vector<2x64xf32>
    %331 = vector.extract_strided_slice %313 {offsets = [0, 128], sizes = [2, 64], strides = [1, 1]} : vector<2x192xf32> to vector<2x64xf32>
    %332 = arith.mulf %321, %331 : vector<2x64xf32>
    %333 = arith.addf %330, %332 : vector<2x64xf32>
    %334 = math.tanh %333 : vector<2x64xf32>
    %cst_107 = arith.constant 1.000000e+00 : f32
    %335 = vector.broadcast %cst_107 : f32 to vector<2x64xf32>
    %336 = arith.subf %335, %329 : vector<2x64xf32>
    %337 = arith.mulf %336, %334 : vector<2x64xf32>
    %338 = arith.mulf %329, %298 : vector<2x64xf32>
    %339 = arith.addf %337, %338 : vector<2x64xf32>
    %340 = vector.extract_strided_slice %52 {offsets = [0, 0], sizes = [2, 32], strides = [1, 1]} : vector<2x64xf32> to vector<2x32xf32>
    %341 = vector.extract_strided_slice %339 {offsets = [0, 32], sizes = [2, 32], strides = [1, 1]} : vector<2x64xf32> to vector<2x32xf32>
    %342 = tpu.concatenate %340, %341 in 1 : vector<2x32xf32>, vector<2x32xf32> -> vector<2x64xf32>
    %c0_108 = arith.constant 0 : index
    %c0_109 = arith.constant 0 : index
    %c0_110 = arith.constant 0 : index
    %343 = vector.load %arg21[%c0_108, %c0_109, %c0_110] : memref<2x8x64xf32, #tpu.memory_space<vmem>>, vector<2x1x64xf32>
    %344 = vector.shape_cast %343 : vector<2x1x64xf32> to vector<2x64xf32>
    %345 = vector.shape_cast %342 : vector<2x64xf32> to vector<2x1x64xf32>
    tpu.vector_store %arg21[%c0_108, %c0_109, %c0_110], %345 {strides = array<i32>} : memref<2x8x64xf32, #tpu.memory_space<vmem>>, vector<2x1x64xf32>,
    %346 = vector.extract_strided_slice %93 {offsets = [0, 0], sizes = [2, 32], strides = [1, 1]} : vector<2x64xf32> to vector<2x32xf32>
    %347 = vector.extract_strided_slice %298 {offsets = [0, 32], sizes = [2, 32], strides = [1, 1]} : vector<2x64xf32> to vector<2x32xf32>
    %348 = tpu.concatenate %346, %347 in 1 : vector<2x32xf32>, vector<2x32xf32> -> vector<2x64xf32>
    %c0_111 = arith.constant 0 : index
    %c1 = arith.constant 1 : index
    %c0_112 = arith.constant 0 : index
    %349 = vector.load %arg21[%c0_111, %c1, %c0_112] : memref<2x8x64xf32, #tpu.memory_space<vmem>>, vector<2x1x64xf32>
    %350 = vector.shape_cast %349 : vector<2x1x64xf32> to vector<2x64xf32>
    %351 = vector.shape_cast %348 : vector<2x64xf32> to vector<2x1x64xf32>
    tpu.vector_store %arg21[%c0_111, %c1, %c0_112], %351 {strides = array<i32>} : memref<2x8x64xf32, #tpu.memory_space<vmem>>, vector<2x1x64xf32>,
    %352 = vector.extract_strided_slice %134 {offsets = [0, 0], sizes = [2, 32], strides = [1, 1]} : vector<2x64xf32> to vector<2x32xf32>
    %353 = vector.extract_strided_slice %257 {offsets = [0, 32], sizes = [2, 32], strides = [1, 1]} : vector<2x64xf32> to vector<2x32xf32>
    %354 = tpu.concatenate %352, %353 in 1 : vector<2x32xf32>, vector<2x32xf32> -> vector<2x64xf32>
    %c0_113 = arith.constant 0 : index
    %c2 = arith.constant 2 : index
    %c0_114 = arith.constant 0 : index
    %355 = vector.load %arg21[%c0_113, %c2, %c0_114] : memref<2x8x64xf32, #tpu.memory_space<vmem>>, vector<2x1x64xf32>
    %356 = vector.shape_cast %355 : vector<2x1x64xf32> to vector<2x64xf32>
    %357 = vector.shape_cast %354 : vector<2x64xf32> to vector<2x1x64xf32>
    tpu.vector_store %arg21[%c0_113, %c2, %c0_114], %357 {strides = array<i32>} : memref<2x8x64xf32, #tpu.memory_space<vmem>>, vector<2x1x64xf32>,
    %358 = vector.extract_strided_slice %175 {offsets = [0, 0], sizes = [2, 32], strides = [1, 1]} : vector<2x64xf32> to vector<2x32xf32>
    %359 = vector.extract_strided_slice %216 {offsets = [0, 32], sizes = [2, 32], strides = [1, 1]} : vector<2x64xf32> to vector<2x32xf32>
    %360 = tpu.concatenate %358, %359 in 1 : vector<2x32xf32>, vector<2x32xf32> -> vector<2x64xf32>
    %c0_115 = arith.constant 0 : index
    %c3 = arith.constant 3 : index
    %c0_116 = arith.constant 0 : index
    %361 = vector.load %arg21[%c0_115, %c3, %c0_116] : memref<2x8x64xf32, #tpu.memory_space<vmem>>, vector<2x1x64xf32>
    %362 = vector.shape_cast %361 : vector<2x1x64xf32> to vector<2x64xf32>
    %363 = vector.shape_cast %360 : vector<2x64xf32> to vector<2x1x64xf32>
    tpu.vector_store %arg21[%c0_115, %c3, %c0_116], %363 {strides = array<i32>} : memref<2x8x64xf32, #tpu.memory_space<vmem>>, vector<2x1x64xf32>,
    %364 = vector.extract_strided_slice %216 {offsets = [0, 0], sizes = [2, 32], strides = [1, 1]} : vector<2x64xf32> to vector<2x32xf32>
    %365 = vector.extract_strided_slice %175 {offsets = [0, 32], sizes = [2, 32], strides = [1, 1]} : vector<2x64xf32> to vector<2x32xf32>
    %366 = tpu.concatenate %364, %365 in 1 : vector<2x32xf32>, vector<2x32xf32> -> vector<2x64xf32>
    %c0_117 = arith.constant 0 : index
    %c4 = arith.constant 4 : index
    %c0_118 = arith.constant 0 : index
    %367 = vector.load %arg21[%c0_117, %c4, %c0_118] : memref<2x8x64xf32, #tpu.memory_space<vmem>>, vector<2x1x64xf32>
    %368 = vector.shape_cast %367 : vector<2x1x64xf32> to vector<2x64xf32>
    %369 = vector.shape_cast %366 : vector<2x64xf32> to vector<2x1x64xf32>
    tpu.vector_store %arg21[%c0_117, %c4, %c0_118], %369 {strides = array<i32>} : memref<2x8x64xf32, #tpu.memory_space<vmem>>, vector<2x1x64xf32>,
    %370 = vector.extract_strided_slice %257 {offsets = [0, 0], sizes = [2, 32], strides = [1, 1]} : vector<2x64xf32> to vector<2x32xf32>
    %371 = vector.extract_strided_slice %134 {offsets = [0, 32], sizes = [2, 32], strides = [1, 1]} : vector<2x64xf32> to vector<2x32xf32>
    %372 = tpu.concatenate %370, %371 in 1 : vector<2x32xf32>, vector<2x32xf32> -> vector<2x64xf32>
    %c0_119 = arith.constant 0 : index
    %c5 = arith.constant 5 : index
    %c0_120 = arith.constant 0 : index
    %373 = vector.load %arg21[%c0_119, %c5, %c0_120] : memref<2x8x64xf32, #tpu.memory_space<vmem>>, vector<2x1x64xf32>
    %374 = vector.shape_cast %373 : vector<2x1x64xf32> to vector<2x64xf32>
    %375 = vector.shape_cast %372 : vector<2x64xf32> to vector<2x1x64xf32>
    tpu.vector_store %arg21[%c0_119, %c5, %c0_120], %375 {strides = array<i32>} : memref<2x8x64xf32, #tpu.memory_space<vmem>>, vector<2x1x64xf32>,
    %376 = vector.extract_strided_slice %298 {offsets = [0, 0], sizes = [2, 32], strides = [1, 1]} : vector<2x64xf32> to vector<2x32xf32>
    %377 = vector.extract_strided_slice %93 {offsets = [0, 32], sizes = [2, 32], strides = [1, 1]} : vector<2x64xf32> to vector<2x32xf32>
    %378 = tpu.concatenate %376, %377 in 1 : vector<2x32xf32>, vector<2x32xf32> -> vector<2x64xf32>
    %c0_121 = arith.constant 0 : index
    %c6 = arith.constant 6 : index
    %c0_122 = arith.constant 0 : index
    %379 = vector.load %arg21[%c0_121, %c6, %c0_122] : memref<2x8x64xf32, #tpu.memory_space<vmem>>, vector<2x1x64xf32>
    %380 = vector.shape_cast %379 : vector<2x1x64xf32> to vector<2x64xf32>
    %381 = vector.shape_cast %378 : vector<2x64xf32> to vector<2x1x64xf32>
    tpu.vector_store %arg21[%c0_121, %c6, %c0_122], %381 {strides = array<i32>} : memref<2x8x64xf32, #tpu.memory_space<vmem>>, vector<2x1x64xf32>,
    %382 = vector.extract_strided_slice %339 {offsets = [0, 0], sizes = [2, 32], strides = [1, 1]} : vector<2x64xf32> to vector<2x32xf32>
    %383 = vector.extract_strided_slice %52 {offsets = [0, 32], sizes = [2, 32], strides = [1, 1]} : vector<2x64xf32> to vector<2x32xf32>
    %384 = tpu.concatenate %382, %383 in 1 : vector<2x32xf32>, vector<2x32xf32> -> vector<2x64xf32>
    %c0_123 = arith.constant 0 : index
    %c7 = arith.constant 7 : index
    %c0_124 = arith.constant 0 : index
    %385 = vector.load %arg21[%c0_123, %c7, %c0_124] : memref<2x8x64xf32, #tpu.memory_space<vmem>>, vector<2x1x64xf32>
    %386 = vector.shape_cast %385 : vector<2x1x64xf32> to vector<2x64xf32>
    %387 = vector.shape_cast %384 : vector<2x64xf32> to vector<2x1x64xf32>
    tpu.vector_store %arg21[%c0_123, %c7, %c0_124], %387 {strides = array<i32>} : memref<2x8x64xf32, #tpu.memory_space<vmem>>, vector<2x1x64xf32>,
    %c0_125 = arith.constant 0 : index
    %c0_126 = arith.constant 0 : index
    %c0_127 = arith.constant 0 : index
    %388 = vector.load %arg21[%c0_125, %c0_126, %c0_127] : memref<2x8x64xf32, #tpu.memory_space<vmem>>, vector<2x8x64xf32>
    %c0_128 = arith.constant 0 : index
    %c0_129 = arith.constant 0 : index
    %389 = vector.load %arg8[%c0_128, %c0_129] : memref<64x32xf32, #tpu.memory_space<vmem>>, vector<64x32xf32>
    %cst_130 = arith.constant dense<0.000000e+00> : vector<2x32xf32>
    %390 = tpu.matmul %339, %389, %cst_130 {dimension_numbers = #tpu.dot_dimension_numbers<[1], [0], [0], [1], [0, 0, 1, 1], [], []>} : vector<2x64xf32>, vector<64x32xf32>, vector<2x32xf32> -> vector<2x32xf32>
    %c0_131 = arith.constant 0 : index
    %c0_132 = arith.constant 0 : index
    %391 = vector.load %arg9[%c0_131, %c0_132] : memref<1x32xf32, #tpu.memory_space<vmem>>, vector<1x32xf32>
    %392 = vector.broadcast %391 : vector<1x32xf32> to vector<2x32xf32>
    %393 = arith.addf %390, %392 : vector<2x32xf32>
    %394 = math.tanh %393 : vector<2x32xf32>
    %c0_133 = arith.constant 0 : index
    %c0_134 = arith.constant 0 : index
    %395 = vector.load %arg13[%c0_133, %c0_134] : memref<32x128xf32, #tpu.memory_space<vmem>>, vector<32x128xf32>
    %cst_135 = arith.constant dense<0.000000e+00> : vector<2x128xf32>
    %396 = tpu.matmul %394, %395, %cst_135 {dimension_numbers = #tpu.dot_dimension_numbers<[1], [0], [0], [1], [0, 0, 1, 1], [], []>} : vector<2x32xf32>, vector<32x128xf32>, vector<2x128xf32> -> vector<2x128xf32>
    %397 = vector.extract_strided_slice %396 {offsets = [0, 0], sizes = [2, 32], strides = [1, 1]} : vector<2x128xf32> to vector<2x32xf32>
    %398 = vector.extract_strided_slice %396 {offsets = [0, 32], sizes = [2, 96], strides = [1, 1]} : vector<2x128xf32> to vector<2x96xf32>
    %c0_136 = arith.constant 0 : index
    %c0_137 = arith.constant 0 : index
    %399 = vector.load %arg14[%c0_136, %c0_137] : memref<1x96xf32, #tpu.memory_space<vmem>>, vector<1x96xf32>
    %400 = vector.broadcast %399 : vector<1x96xf32> to vector<2x96xf32>
    %401 = arith.addf %398, %400 : vector<2x96xf32>
    %402 = vector.shape_cast %388 : vector<2x8x64xf32> to vector<16x64xf32>
    %c0_138 = arith.constant 0 : index
    %c0_139 = arith.constant 0 : index
    %403 = vector.load %arg10[%c0_138, %c0_139] : memref<64x32xf32, #tpu.memory_space<vmem>>, vector<64x32xf32>
    %cst_140 = arith.constant dense<0.000000e+00> : vector<16x32xf32>
    %404 = tpu.matmul %402, %403, %cst_140 {dimension_numbers = #tpu.dot_dimension_numbers<[1], [0], [0], [1], [0, 0, 1, 1], [], []>} : vector<16x64xf32>, vector<64x32xf32>, vector<16x32xf32> -> vector<16x32xf32>
    %c0_141 = arith.constant 0 : index
    %c0_142 = arith.constant 0 : index
    %405 = vector.load %arg11[%c0_141, %c0_142] : memref<1x32xf32, #tpu.memory_space<vmem>>, vector<1x32xf32>
    %406 = vector.broadcast %405 : vector<1x32xf32> to vector<16x32xf32>
    %407 = arith.addf %404, %406 : vector<16x32xf32>
    %408 = vector.shape_cast %407 : vector<16x32xf32> to vector<2x8x32xf32>
    %409 = vector.shape_cast %397 : vector<2x32xf32> to vector<2x1x32xf32>
    %410 = vector.broadcast %409 : vector<2x1x32xf32> to vector<2x8x32xf32>
    %411 = arith.addf %408, %410 : vector<2x8x32xf32>
    %412 = math.tanh %411 : vector<2x8x32xf32>
    %c0_143 = arith.constant 0 : index
    %c0_144 = arith.constant 0 : index
    %413 = vector.load %arg12[%c0_143, %c0_144] : memref<1x32xf32, #tpu.memory_space<vmem>>, vector<1x32xf32>
    %414 = vector.shape_cast %413 : vector<1x32xf32> to vector<1x1x32xf32>
    %415 = vector.broadcast %414 : vector<1x1x32xf32> to vector<2x8x32xf32>
    %416 = arith.mulf %412, %415 : vector<2x8x32xf32>
    %cst_145 = arith.constant dense<0.000000e+00> : vector<2x8xf32>
    %417 = vector.multi_reduction <add>, %416, %cst_145 [2] : vector<2x8x32xf32> to vector<2x8xf32>
    %cst_146 = arith.constant dense<0xFF800000> : vector<2xf32>
    %418 = vector.multi_reduction <maximumf>, %417, %cst_146 [1] : vector<2x8xf32> to vector<2xf32>
    %419 = vector.shape_cast %418 : vector<2xf32> to vector<2x1xf32>
    %420 = vector.broadcast %419 : vector<2x1xf32> to vector<2x8xf32>
    %421 = arith.subf %417, %420 : vector<2x8xf32>
    %422 = math.exp %421 : vector<2x8xf32>
    %cst_147 = arith.constant dense<0.000000e+00> : vector<2xf32>
    %423 = vector.multi_reduction <add>, %422, %cst_147 [1] : vector<2x8xf32> to vector<2xf32>
    %424 = vector.shape_cast %423 : vector<2xf32> to vector<2x1xf32>
    %425 = vector.broadcast %424 : vector<2x1xf32> to vector<2x8xf32>
    %426 = arith.divf %422, %425 : vector<2x8xf32>
    %427 = vector.shape_cast %426 : vector<2x8xf32> to vector<2x8x1xf32>
    %428 = vector.broadcast %427 : vector<2x8x1xf32> to vector<2x8x64xf32>
    %429 = arith.mulf %428, %388 : vector<2x8x64xf32>
    %cst_148 = arith.constant dense<0.000000e+00> : vector<2x64xf32>
    %430 = vector.multi_reduction <add>, %429, %cst_148 [1] : vector<2x8x64xf32> to vector<2x64xf32>
    %c0_149 = arith.constant 0 : index
    %c0_150 = arith.constant 0 : index
    %431 = vector.load %arg15[%c0_149, %c0_150] : memref<64x116xf32, #tpu.memory_space<vmem>>, vector<64x116xf32>
    %cst_151 = arith.constant dense<0.000000e+00> : vector<2x116xf32>
    %432 = tpu.matmul %430, %431, %cst_151 {dimension_numbers = #tpu.dot_dimension_numbers<[1], [0], [0], [1], [0, 0, 1, 1], [], []>} : vector<2x64xf32>, vector<64x116xf32>, vector<2x116xf32> -> vector<2x116xf32>
    %433 = vector.extract_strided_slice %432 {offsets = [0, 0], sizes = [2, 96], strides = [1, 1]} : vector<2x116xf32> to vector<2x96xf32>
    %c0_152 = arith.constant 0 : index
    %c0_153 = arith.constant 0 : index
    %434 = vector.load %arg16[%c0_152, %c0_153] : memref<1x96xf32, #tpu.memory_space<vmem>>, vector<1x96xf32>
    %435 = vector.broadcast %434 : vector<1x96xf32> to vector<2x96xf32>
    %436 = arith.addf %433, %435 : vector<2x96xf32>
    %437 = vector.extract_strided_slice %432 {offsets = [0, 96], sizes = [2, 20], strides = [1, 1]} : vector<2x116xf32> to vector<2x20xf32>
    %c0_154 = arith.constant 0 : index
    %c0_155 = arith.constant 0 : index
    %438 = vector.load %arg19[%c0_154, %c0_155] : memref<1x20xf32, #tpu.memory_space<vmem>>, vector<1x20xf32>
    %439 = vector.broadcast %438 : vector<1x20xf32> to vector<2x20xf32>
    %440 = arith.addf %437, %439 : vector<2x20xf32>
    %441 = tpu.iota {dimensions = array<i32: 1>} : vector<2x20xi32>
    %442 = arith.sitofp %441 : vector<2x20xi32> to vector<2x20xf32>
    %c0_156 = arith.constant 0 : index
    %c0_157 = arith.constant 0 : index
    %443 = vector.load %arg1[%c0_156, %c0_157] : memref<2x8xi32, #tpu.memory_space<vmem>>, vector<2x8xi32>
    %444 = arith.sitofp %443 : vector<2x8xi32> to vector<2x8xf32>
    %c0_158 = arith.constant 0 : index
    %c0_159 = arith.constant 0 : index
    %445 = vector.load %arg2[%c0_158, %c0_159] : memref<1x8xf32, #tpu.memory_space<vmem>>, vector<1x8xf32>
    %446 = vector.extract_strided_slice %444 {offsets = [0, 0], sizes = [2, 1], strides = [1, 1]} : vector<2x8xf32> to vector<2x1xf32>
    %cst_160 = arith.constant 0.000000e+00 : f32
    %447 = vector.broadcast %cst_160 : f32 to vector<2x20xf32>
    %448 = vector.broadcast %446 : vector<2x1xf32> to vector<2x20xf32>
    %449 = arith.cmpf oeq, %448, %442 : vector<2x20xf32>
    %450 = arith.extui %449 : vector<2x20xi1> to vector<2x20xi32>
    %451 = arith.sitofp %450 : vector<2x20xi32> to vector<2x20xf32>
    %c0_161 = arith.constant 0 : index
    %c0_162 = arith.constant 0 : index
    %452 = vector.load %arg17[%c0_161, %c0_162] : memref<20x116xf32, #tpu.memory_space<vmem>>, vector<20x116xf32>
    %cst_163 = arith.constant dense<0.000000e+00> : vector<2x116xf32>
    %453 = tpu.matmul %451, %452, %cst_163 {dimension_numbers = #tpu.dot_dimension_numbers<[1], [0], [0], [1], [0, 0, 1, 1], [], []>} : vector<2x20xf32>, vector<20x116xf32>, vector<2x116xf32> -> vector<2x116xf32>
    %454 = vector.extract_strided_slice %453 {offsets = [0, 0], sizes = [2, 96], strides = [1, 1]} : vector<2x116xf32> to vector<2x96xf32>
    %455 = arith.addf %454, %436 : vector<2x96xf32>
    %456 = vector.extract_strided_slice %455 {offsets = [0, 0], sizes = [2, 32], strides = [1, 1]} : vector<2x96xf32> to vector<2x32xf32>
    %457 = vector.extract_strided_slice %401 {offsets = [0, 0], sizes = [2, 32], strides = [1, 1]} : vector<2x96xf32> to vector<2x32xf32>
    %458 = arith.addf %456, %457 : vector<2x32xf32>
    %459 = arith.negf %458 : vector<2x32xf32>
    %460 = math.exp %459 : vector<2x32xf32>
    %cst_164 = arith.constant 1.000000e+00 : f32
    %461 = vector.broadcast %cst_164 : f32 to vector<2x32xf32>
    %462 = arith.addf %461, %460 : vector<2x32xf32>
    %463 = arith.divf %461, %462 : vector<2x32xf32>
    %464 = vector.extract_strided_slice %455 {offsets = [0, 32], sizes = [2, 32], strides = [1, 1]} : vector<2x96xf32> to vector<2x32xf32>
    %465 = vector.extract_strided_slice %401 {offsets = [0, 32], sizes = [2, 32], strides = [1, 1]} : vector<2x96xf32> to vector<2x32xf32>
    %466 = arith.addf %464, %465 : vector<2x32xf32>
    %467 = arith.negf %466 : vector<2x32xf32>
    %468 = math.exp %467 : vector<2x32xf32>
    %cst_165 = arith.constant 1.000000e+00 : f32
    %469 = vector.broadcast %cst_165 : f32 to vector<2x32xf32>
    %470 = arith.addf %469, %468 : vector<2x32xf32>
    %471 = arith.divf %469, %470 : vector<2x32xf32>
    %472 = vector.extract_strided_slice %455 {offsets = [0, 64], sizes = [2, 32], strides = [1, 1]} : vector<2x96xf32> to vector<2x32xf32>
    %473 = vector.extract_strided_slice %401 {offsets = [0, 64], sizes = [2, 32], strides = [1, 1]} : vector<2x96xf32> to vector<2x32xf32>
    %474 = arith.mulf %463, %473 : vector<2x32xf32>
    %475 = arith.addf %472, %474 : vector<2x32xf32>
    %476 = math.tanh %475 : vector<2x32xf32>
    %cst_166 = arith.constant 1.000000e+00 : f32
    %477 = vector.broadcast %cst_166 : f32 to vector<2x32xf32>
    %478 = arith.subf %477, %471 : vector<2x32xf32>
    %479 = arith.mulf %478, %476 : vector<2x32xf32>
    %480 = arith.mulf %471, %394 : vector<2x32xf32>
    %481 = arith.addf %479, %480 : vector<2x32xf32>
    %c0_167 = arith.constant 0 : index
    %c0_168 = arith.constant 0 : index
    %482 = vector.load %arg18[%c0_167, %c0_168] : memref<32x20xf32, #tpu.memory_space<vmem>>, vector<32x20xf32>
    %cst_169 = arith.constant dense<0.000000e+00> : vector<2x20xf32>
    %483 = tpu.matmul %481, %482, %cst_169 {dimension_numbers = #tpu.dot_dimension_numbers<[1], [0], [0], [1], [0, 0, 1, 1], [], []>} : vector<2x32xf32>, vector<32x20xf32>, vector<2x20xf32> -> vector<2x20xf32>
    %484 = vector.extract_strided_slice %453 {offsets = [0, 96], sizes = [2, 20], strides = [1, 1]} : vector<2x116xf32> to vector<2x20xf32>
    %485 = arith.addf %483, %484 : vector<2x20xf32>
    %486 = arith.addf %485, %440 : vector<2x20xf32>
    %cst_170 = arith.constant dense<0xFF800000> : vector<2xf32>
    %487 = vector.multi_reduction <maximumf>, %486, %cst_170 [1] : vector<2x20xf32> to vector<2xf32>
    %488 = vector.shape_cast %487 : vector<2xf32> to vector<2x1xf32>
    %489 = vector.broadcast %488 : vector<2x1xf32> to vector<2x20xf32>
    %490 = arith.cmpf oeq, %486, %489 : vector<2x20xf32>
    %cst_171 = arith.constant 2.000000e+01 : f32
    %491 = vector.broadcast %cst_171 : f32 to vector<2x20xf32>
    %492 = arith.select %490, %442, %491 : vector<2x20xi1>, vector<2x20xf32>
    %cst_172 = arith.constant dense<0x7F800000> : vector<2xf32>
    %493 = vector.multi_reduction <minimumf>, %492, %cst_172 [1] : vector<2x20xf32> to vector<2xf32>
    %494 = vector.shape_cast %493 : vector<2xf32> to vector<2x1xf32>
    %495 = vector.extract_strided_slice %445 {offsets = [0, 1], sizes = [1, 1], strides = [1, 1]} : vector<1x8xf32> to vector<1x1xf32>
    %496 = vector.extract_strided_slice %444 {offsets = [0, 1], sizes = [2, 1], strides = [1, 1]} : vector<2x8xf32> to vector<2x1xf32>
    %497 = vector.broadcast %495 : vector<1x1xf32> to vector<2x1xf32>
    %498 = arith.mulf %497, %496 : vector<2x1xf32>
    %cst_173 = arith.constant 1.000000e+00 : f32
    %499 = vector.broadcast %cst_173 : f32 to vector<1x1xf32>
    %500 = arith.subf %499, %495 : vector<1x1xf32>
    %501 = vector.broadcast %500 : vector<1x1xf32> to vector<2x1xf32>
    %502 = arith.mulf %501, %494 : vector<2x1xf32>
    %503 = arith.addf %498, %502 : vector<2x1xf32>
    %504 = vector.broadcast %503 : vector<2x1xf32> to vector<2x20xf32>
    %505 = arith.cmpf oeq, %504, %442 : vector<2x20xf32>
    %506 = arith.extui %505 : vector<2x20xi1> to vector<2x20xi32>
    %507 = arith.sitofp %506 : vector<2x20xi32> to vector<2x20xf32>
    %c0_174 = arith.constant 0 : index
    %c0_175 = arith.constant 0 : index
    %508 = vector.load %arg17[%c0_174, %c0_175] : memref<20x116xf32, #tpu.memory_space<vmem>>, vector<20x116xf32>
    %cst_176 = arith.constant dense<0.000000e+00> : vector<2x116xf32>
    %509 = tpu.matmul %507, %508, %cst_176 {dimension_numbers = #tpu.dot_dimension_numbers<[1], [0], [0], [1], [0, 0, 1, 1], [], []>} : vector<2x20xf32>, vector<20x116xf32>, vector<2x116xf32> -> vector<2x116xf32>
    %510 = vector.extract_strided_slice %509 {offsets = [0, 0], sizes = [2, 96], strides = [1, 1]} : vector<2x116xf32> to vector<2x96xf32>
    %511 = arith.addf %510, %436 : vector<2x96xf32>
    %512 = vector.extract_strided_slice %511 {offsets = [0, 0], sizes = [2, 32], strides = [1, 1]} : vector<2x96xf32> to vector<2x32xf32>
    %513 = vector.extract_strided_slice %401 {offsets = [0, 0], sizes = [2, 32], strides = [1, 1]} : vector<2x96xf32> to vector<2x32xf32>
    %514 = arith.addf %512, %513 : vector<2x32xf32>
    %515 = arith.negf %514 : vector<2x32xf32>
    %516 = math.exp %515 : vector<2x32xf32>
    %cst_177 = arith.constant 1.000000e+00 : f32
    %517 = vector.broadcast %cst_177 : f32 to vector<2x32xf32>
    %518 = arith.addf %517, %516 : vector<2x32xf32>
    %519 = arith.divf %517, %518 : vector<2x32xf32>
    %520 = vector.extract_strided_slice %511 {offsets = [0, 32], sizes = [2, 32], strides = [1, 1]} : vector<2x96xf32> to vector<2x32xf32>
    %521 = vector.extract_strided_slice %401 {offsets = [0, 32], sizes = [2, 32], strides = [1, 1]} : vector<2x96xf32> to vector<2x32xf32>
    %522 = arith.addf %520, %521 : vector<2x32xf32>
    %523 = arith.negf %522 : vector<2x32xf32>
    %524 = math.exp %523 : vector<2x32xf32>
    %cst_178 = arith.constant 1.000000e+00 : f32
    %525 = vector.broadcast %cst_178 : f32 to vector<2x32xf32>
    %526 = arith.addf %525, %524 : vector<2x32xf32>
    %527 = arith.divf %525, %526 : vector<2x32xf32>
    %528 = vector.extract_strided_slice %511 {offsets = [0, 64], sizes = [2, 32], strides = [1, 1]} : vector<2x96xf32> to vector<2x32xf32>
    %529 = vector.extract_strided_slice %401 {offsets = [0, 64], sizes = [2, 32], strides = [1, 1]} : vector<2x96xf32> to vector<2x32xf32>
    %530 = arith.mulf %519, %529 : vector<2x32xf32>
    %531 = arith.addf %528, %530 : vector<2x32xf32>
    %532 = math.tanh %531 : vector<2x32xf32>
    %cst_179 = arith.constant 1.000000e+00 : f32
    %533 = vector.broadcast %cst_179 : f32 to vector<2x32xf32>
    %534 = arith.subf %533, %527 : vector<2x32xf32>
    %535 = arith.mulf %534, %532 : vector<2x32xf32>
    %536 = arith.mulf %527, %394 : vector<2x32xf32>
    %537 = arith.addf %535, %536 : vector<2x32xf32>
    %c0_180 = arith.constant 0 : index
    %c0_181 = arith.constant 0 : index
    %538 = vector.load %arg18[%c0_180, %c0_181] : memref<32x20xf32, #tpu.memory_space<vmem>>, vector<32x20xf32>
    %cst_182 = arith.constant dense<0.000000e+00> : vector<2x20xf32>
    %539 = tpu.matmul %537, %538, %cst_182 {dimension_numbers = #tpu.dot_dimension_numbers<[1], [0], [0], [1], [0, 0, 1, 1], [], []>} : vector<2x32xf32>, vector<32x20xf32>, vector<2x20xf32> -> vector<2x20xf32>
    %540 = vector.extract_strided_slice %509 {offsets = [0, 96], sizes = [2, 20], strides = [1, 1]} : vector<2x116xf32> to vector<2x20xf32>
    %541 = arith.addf %539, %540 : vector<2x20xf32>
    %542 = arith.addf %541, %440 : vector<2x20xf32>
    %cst_183 = arith.constant dense<0xFF800000> : vector<2xf32>
    %543 = vector.multi_reduction <maximumf>, %542, %cst_183 [1] : vector<2x20xf32> to vector<2xf32>
    %544 = vector.shape_cast %543 : vector<2xf32> to vector<2x1xf32>
    %545 = vector.broadcast %544 : vector<2x1xf32> to vector<2x20xf32>
    %546 = arith.cmpf oeq, %542, %545 : vector<2x20xf32>
    %cst_184 = arith.constant 2.000000e+01 : f32
    %547 = vector.broadcast %cst_184 : f32 to vector<2x20xf32>
    %548 = arith.select %546, %442, %547 : vector<2x20xi1>, vector<2x20xf32>
    %cst_185 = arith.constant dense<0x7F800000> : vector<2xf32>
    %549 = vector.multi_reduction <minimumf>, %548, %cst_185 [1] : vector<2x20xf32> to vector<2xf32>
    %550 = vector.shape_cast %549 : vector<2xf32> to vector<2x1xf32>
    %551 = vector.extract_strided_slice %445 {offsets = [0, 2], sizes = [1, 1], strides = [1, 1]} : vector<1x8xf32> to vector<1x1xf32>
    %552 = vector.extract_strided_slice %444 {offsets = [0, 2], sizes = [2, 1], strides = [1, 1]} : vector<2x8xf32> to vector<2x1xf32>
    %553 = vector.broadcast %551 : vector<1x1xf32> to vector<2x1xf32>
    %554 = arith.mulf %553, %552 : vector<2x1xf32>
    %cst_186 = arith.constant 1.000000e+00 : f32
    %555 = vector.broadcast %cst_186 : f32 to vector<1x1xf32>
    %556 = arith.subf %555, %551 : vector<1x1xf32>
    %557 = vector.broadcast %556 : vector<1x1xf32> to vector<2x1xf32>
    %558 = arith.mulf %557, %550 : vector<2x1xf32>
    %559 = arith.addf %554, %558 : vector<2x1xf32>
    %560 = vector.broadcast %559 : vector<2x1xf32> to vector<2x20xf32>
    %561 = arith.cmpf oeq, %560, %442 : vector<2x20xf32>
    %562 = arith.extui %561 : vector<2x20xi1> to vector<2x20xi32>
    %563 = arith.sitofp %562 : vector<2x20xi32> to vector<2x20xf32>
    %c0_187 = arith.constant 0 : index
    %c0_188 = arith.constant 0 : index
    %564 = vector.load %arg17[%c0_187, %c0_188] : memref<20x116xf32, #tpu.memory_space<vmem>>, vector<20x116xf32>
    %cst_189 = arith.constant dense<0.000000e+00> : vector<2x116xf32>
    %565 = tpu.matmul %563, %564, %cst_189 {dimension_numbers = #tpu.dot_dimension_numbers<[1], [0], [0], [1], [0, 0, 1, 1], [], []>} : vector<2x20xf32>, vector<20x116xf32>, vector<2x116xf32> -> vector<2x116xf32>
    %566 = vector.extract_strided_slice %565 {offsets = [0, 0], sizes = [2, 96], strides = [1, 1]} : vector<2x116xf32> to vector<2x96xf32>
    %567 = arith.addf %566, %436 : vector<2x96xf32>
    %568 = vector.extract_strided_slice %567 {offsets = [0, 0], sizes = [2, 32], strides = [1, 1]} : vector<2x96xf32> to vector<2x32xf32>
    %569 = vector.extract_strided_slice %401 {offsets = [0, 0], sizes = [2, 32], strides = [1, 1]} : vector<2x96xf32> to vector<2x32xf32>
    %570 = arith.addf %568, %569 : vector<2x32xf32>
    %571 = arith.negf %570 : vector<2x32xf32>
    %572 = math.exp %571 : vector<2x32xf32>
    %cst_190 = arith.constant 1.000000e+00 : f32
    %573 = vector.broadcast %cst_190 : f32 to vector<2x32xf32>
    %574 = arith.addf %573, %572 : vector<2x32xf32>
    %575 = arith.divf %573, %574 : vector<2x32xf32>
    %576 = vector.extract_strided_slice %567 {offsets = [0, 32], sizes = [2, 32], strides = [1, 1]} : vector<2x96xf32> to vector<2x32xf32>
    %577 = vector.extract_strided_slice %401 {offsets = [0, 32], sizes = [2, 32], strides = [1, 1]} : vector<2x96xf32> to vector<2x32xf32>
    %578 = arith.addf %576, %577 : vector<2x32xf32>
    %579 = arith.negf %578 : vector<2x32xf32>
    %580 = math.exp %579 : vector<2x32xf32>
    %cst_191 = arith.constant 1.000000e+00 : f32
    %581 = vector.broadcast %cst_191 : f32 to vector<2x32xf32>
    %582 = arith.addf %581, %580 : vector<2x32xf32>
    %583 = arith.divf %581, %582 : vector<2x32xf32>
    %584 = vector.extract_strided_slice %567 {offsets = [0, 64], sizes = [2, 32], strides = [1, 1]} : vector<2x96xf32> to vector<2x32xf32>
    %585 = vector.extract_strided_slice %401 {offsets = [0, 64], sizes = [2, 32], strides = [1, 1]} : vector<2x96xf32> to vector<2x32xf32>
    %586 = arith.mulf %575, %585 : vector<2x32xf32>
    %587 = arith.addf %584, %586 : vector<2x32xf32>
    %588 = math.tanh %587 : vector<2x32xf32>
    %cst_192 = arith.constant 1.000000e+00 : f32
    %589 = vector.broadcast %cst_192 : f32 to vector<2x32xf32>
    %590 = arith.subf %589, %583 : vector<2x32xf32>
    %591 = arith.mulf %590, %588 : vector<2x32xf32>
    %592 = arith.mulf %583, %394 : vector<2x32xf32>
    %593 = arith.addf %591, %592 : vector<2x32xf32>
    %c0_193 = arith.constant 0 : index
    %c0_194 = arith.constant 0 : index
    %594 = vector.load %arg18[%c0_193, %c0_194] : memref<32x20xf32, #tpu.memory_space<vmem>>, vector<32x20xf32>
    %cst_195 = arith.constant dense<0.000000e+00> : vector<2x20xf32>
    %595 = tpu.matmul %593, %594, %cst_195 {dimension_numbers = #tpu.dot_dimension_numbers<[1], [0], [0], [1], [0, 0, 1, 1], [], []>} : vector<2x32xf32>, vector<32x20xf32>, vector<2x20xf32> -> vector<2x20xf32>
    %596 = vector.extract_strided_slice %565 {offsets = [0, 96], sizes = [2, 20], strides = [1, 1]} : vector<2x116xf32> to vector<2x20xf32>
    %597 = arith.addf %595, %596 : vector<2x20xf32>
    %598 = arith.addf %597, %440 : vector<2x20xf32>
    %cst_196 = arith.constant dense<0xFF800000> : vector<2xf32>
    %599 = vector.multi_reduction <maximumf>, %598, %cst_196 [1] : vector<2x20xf32> to vector<2xf32>
    %600 = vector.shape_cast %599 : vector<2xf32> to vector<2x1xf32>
    %601 = vector.broadcast %600 : vector<2x1xf32> to vector<2x20xf32>
    %602 = arith.cmpf oeq, %598, %601 : vector<2x20xf32>
    %cst_197 = arith.constant 2.000000e+01 : f32
    %603 = vector.broadcast %cst_197 : f32 to vector<2x20xf32>
    %604 = arith.select %602, %442, %603 : vector<2x20xi1>, vector<2x20xf32>
    %cst_198 = arith.constant dense<0x7F800000> : vector<2xf32>
    %605 = vector.multi_reduction <minimumf>, %604, %cst_198 [1] : vector<2x20xf32> to vector<2xf32>
    %606 = vector.shape_cast %605 : vector<2xf32> to vector<2x1xf32>
    %607 = vector.extract_strided_slice %445 {offsets = [0, 3], sizes = [1, 1], strides = [1, 1]} : vector<1x8xf32> to vector<1x1xf32>
    %608 = vector.extract_strided_slice %444 {offsets = [0, 3], sizes = [2, 1], strides = [1, 1]} : vector<2x8xf32> to vector<2x1xf32>
    %609 = vector.broadcast %607 : vector<1x1xf32> to vector<2x1xf32>
    %610 = arith.mulf %609, %608 : vector<2x1xf32>
    %cst_199 = arith.constant 1.000000e+00 : f32
    %611 = vector.broadcast %cst_199 : f32 to vector<1x1xf32>
    %612 = arith.subf %611, %607 : vector<1x1xf32>
    %613 = vector.broadcast %612 : vector<1x1xf32> to vector<2x1xf32>
    %614 = arith.mulf %613, %606 : vector<2x1xf32>
    %615 = arith.addf %610, %614 : vector<2x1xf32>
    %616 = vector.broadcast %615 : vector<2x1xf32> to vector<2x20xf32>
    %617 = arith.cmpf oeq, %616, %442 : vector<2x20xf32>
    %618 = arith.extui %617 : vector<2x20xi1> to vector<2x20xi32>
    %619 = arith.sitofp %618 : vector<2x20xi32> to vector<2x20xf32>
    %c0_200 = arith.constant 0 : index
    %c0_201 = arith.constant 0 : index
    %620 = vector.load %arg17[%c0_200, %c0_201] : memref<20x116xf32, #tpu.memory_space<vmem>>, vector<20x116xf32>
    %cst_202 = arith.constant dense<0.000000e+00> : vector<2x116xf32>
    %621 = tpu.matmul %619, %620, %cst_202 {dimension_numbers = #tpu.dot_dimension_numbers<[1], [0], [0], [1], [0, 0, 1, 1], [], []>} : vector<2x20xf32>, vector<20x116xf32>, vector<2x116xf32> -> vector<2x116xf32>
    %622 = vector.extract_strided_slice %621 {offsets = [0, 0], sizes = [2, 96], strides = [1, 1]} : vector<2x116xf32> to vector<2x96xf32>
    %623 = arith.addf %622, %436 : vector<2x96xf32>
    %624 = vector.extract_strided_slice %623 {offsets = [0, 0], sizes = [2, 32], strides = [1, 1]} : vector<2x96xf32> to vector<2x32xf32>
    %625 = vector.extract_strided_slice %401 {offsets = [0, 0], sizes = [2, 32], strides = [1, 1]} : vector<2x96xf32> to vector<2x32xf32>
    %626 = arith.addf %624, %625 : vector<2x32xf32>
    %627 = arith.negf %626 : vector<2x32xf32>
    %628 = math.exp %627 : vector<2x32xf32>
    %cst_203 = arith.constant 1.000000e+00 : f32
    %629 = vector.broadcast %cst_203 : f32 to vector<2x32xf32>
    %630 = arith.addf %629, %628 : vector<2x32xf32>
    %631 = arith.divf %629, %630 : vector<2x32xf32>
    %632 = vector.extract_strided_slice %623 {offsets = [0, 32], sizes = [2, 32], strides = [1, 1]} : vector<2x96xf32> to vector<2x32xf32>
    %633 = vector.extract_strided_slice %401 {offsets = [0, 32], sizes = [2, 32], strides = [1, 1]} : vector<2x96xf32> to vector<2x32xf32>
    %634 = arith.addf %632, %633 : vector<2x32xf32>
    %635 = arith.negf %634 : vector<2x32xf32>
    %636 = math.exp %635 : vector<2x32xf32>
    %cst_204 = arith.constant 1.000000e+00 : f32
    %637 = vector.broadcast %cst_204 : f32 to vector<2x32xf32>
    %638 = arith.addf %637, %636 : vector<2x32xf32>
    %639 = arith.divf %637, %638 : vector<2x32xf32>
    %640 = vector.extract_strided_slice %623 {offsets = [0, 64], sizes = [2, 32], strides = [1, 1]} : vector<2x96xf32> to vector<2x32xf32>
    %641 = vector.extract_strided_slice %401 {offsets = [0, 64], sizes = [2, 32], strides = [1, 1]} : vector<2x96xf32> to vector<2x32xf32>
    %642 = arith.mulf %631, %641 : vector<2x32xf32>
    %643 = arith.addf %640, %642 : vector<2x32xf32>
    %644 = math.tanh %643 : vector<2x32xf32>
    %cst_205 = arith.constant 1.000000e+00 : f32
    %645 = vector.broadcast %cst_205 : f32 to vector<2x32xf32>
    %646 = arith.subf %645, %639 : vector<2x32xf32>
    %647 = arith.mulf %646, %644 : vector<2x32xf32>
    %648 = arith.mulf %639, %394 : vector<2x32xf32>
    %649 = arith.addf %647, %648 : vector<2x32xf32>
    %c0_206 = arith.constant 0 : index
    %c0_207 = arith.constant 0 : index
    %650 = vector.load %arg18[%c0_206, %c0_207] : memref<32x20xf32, #tpu.memory_space<vmem>>, vector<32x20xf32>
    %cst_208 = arith.constant dense<0.000000e+00> : vector<2x20xf32>
    %651 = tpu.matmul %649, %650, %cst_208 {dimension_numbers = #tpu.dot_dimension_numbers<[1], [0], [0], [1], [0, 0, 1, 1], [], []>} : vector<2x32xf32>, vector<32x20xf32>, vector<2x20xf32> -> vector<2x20xf32>
    %652 = vector.extract_strided_slice %621 {offsets = [0, 96], sizes = [2, 20], strides = [1, 1]} : vector<2x116xf32> to vector<2x20xf32>
    %653 = arith.addf %651, %652 : vector<2x20xf32>
    %654 = arith.addf %653, %440 : vector<2x20xf32>
    %cst_209 = arith.constant dense<0xFF800000> : vector<2xf32>
    %655 = vector.multi_reduction <maximumf>, %654, %cst_209 [1] : vector<2x20xf32> to vector<2xf32>
    %656 = vector.shape_cast %655 : vector<2xf32> to vector<2x1xf32>
    %657 = vector.broadcast %656 : vector<2x1xf32> to vector<2x20xf32>
    %658 = arith.cmpf oeq, %654, %657 : vector<2x20xf32>
    %cst_210 = arith.constant 2.000000e+01 : f32
    %659 = vector.broadcast %cst_210 : f32 to vector<2x20xf32>
    %660 = arith.select %658, %442, %659 : vector<2x20xi1>, vector<2x20xf32>
    %cst_211 = arith.constant dense<0x7F800000> : vector<2xf32>
    %661 = vector.multi_reduction <minimumf>, %660, %cst_211 [1] : vector<2x20xf32> to vector<2xf32>
    %662 = vector.shape_cast %661 : vector<2xf32> to vector<2x1xf32>
    %663 = vector.extract_strided_slice %445 {offsets = [0, 4], sizes = [1, 1], strides = [1, 1]} : vector<1x8xf32> to vector<1x1xf32>
    %664 = vector.extract_strided_slice %444 {offsets = [0, 4], sizes = [2, 1], strides = [1, 1]} : vector<2x8xf32> to vector<2x1xf32>
    %665 = vector.broadcast %663 : vector<1x1xf32> to vector<2x1xf32>
    %666 = arith.mulf %665, %664 : vector<2x1xf32>
    %cst_212 = arith.constant 1.000000e+00 : f32
    %667 = vector.broadcast %cst_212 : f32 to vector<1x1xf32>
    %668 = arith.subf %667, %663 : vector<1x1xf32>
    %669 = vector.broadcast %668 : vector<1x1xf32> to vector<2x1xf32>
    %670 = arith.mulf %669, %662 : vector<2x1xf32>
    %671 = arith.addf %666, %670 : vector<2x1xf32>
    %672 = vector.broadcast %671 : vector<2x1xf32> to vector<2x20xf32>
    %673 = arith.cmpf oeq, %672, %442 : vector<2x20xf32>
    %674 = arith.extui %673 : vector<2x20xi1> to vector<2x20xi32>
    %675 = arith.sitofp %674 : vector<2x20xi32> to vector<2x20xf32>
    %c0_213 = arith.constant 0 : index
    %c0_214 = arith.constant 0 : index
    %676 = vector.load %arg17[%c0_213, %c0_214] : memref<20x116xf32, #tpu.memory_space<vmem>>, vector<20x116xf32>
    %cst_215 = arith.constant dense<0.000000e+00> : vector<2x116xf32>
    %677 = tpu.matmul %675, %676, %cst_215 {dimension_numbers = #tpu.dot_dimension_numbers<[1], [0], [0], [1], [0, 0, 1, 1], [], []>} : vector<2x20xf32>, vector<20x116xf32>, vector<2x116xf32> -> vector<2x116xf32>
    %678 = vector.extract_strided_slice %677 {offsets = [0, 0], sizes = [2, 96], strides = [1, 1]} : vector<2x116xf32> to vector<2x96xf32>
    %679 = arith.addf %678, %436 : vector<2x96xf32>
    %680 = vector.extract_strided_slice %679 {offsets = [0, 0], sizes = [2, 32], strides = [1, 1]} : vector<2x96xf32> to vector<2x32xf32>
    %681 = vector.extract_strided_slice %401 {offsets = [0, 0], sizes = [2, 32], strides = [1, 1]} : vector<2x96xf32> to vector<2x32xf32>
    %682 = arith.addf %680, %681 : vector<2x32xf32>
    %683 = arith.negf %682 : vector<2x32xf32>
    %684 = math.exp %683 : vector<2x32xf32>
    %cst_216 = arith.constant 1.000000e+00 : f32
    %685 = vector.broadcast %cst_216 : f32 to vector<2x32xf32>
    %686 = arith.addf %685, %684 : vector<2x32xf32>
    %687 = arith.divf %685, %686 : vector<2x32xf32>
    %688 = vector.extract_strided_slice %679 {offsets = [0, 32], sizes = [2, 32], strides = [1, 1]} : vector<2x96xf32> to vector<2x32xf32>
    %689 = vector.extract_strided_slice %401 {offsets = [0, 32], sizes = [2, 32], strides = [1, 1]} : vector<2x96xf32> to vector<2x32xf32>
    %690 = arith.addf %688, %689 : vector<2x32xf32>
    %691 = arith.negf %690 : vector<2x32xf32>
    %692 = math.exp %691 : vector<2x32xf32>
    %cst_217 = arith.constant 1.000000e+00 : f32
    %693 = vector.broadcast %cst_217 : f32 to vector<2x32xf32>
    %694 = arith.addf %693, %692 : vector<2x32xf32>
    %695 = arith.divf %693, %694 : vector<2x32xf32>
    %696 = vector.extract_strided_slice %679 {offsets = [0, 64], sizes = [2, 32], strides = [1, 1]} : vector<2x96xf32> to vector<2x32xf32>
    %697 = vector.extract_strided_slice %401 {offsets = [0, 64], sizes = [2, 32], strides = [1, 1]} : vector<2x96xf32> to vector<2x32xf32>
    %698 = arith.mulf %687, %697 : vector<2x32xf32>
    %699 = arith.addf %696, %698 : vector<2x32xf32>
    %700 = math.tanh %699 : vector<2x32xf32>
    %cst_218 = arith.constant 1.000000e+00 : f32
    %701 = vector.broadcast %cst_218 : f32 to vector<2x32xf32>
    %702 = arith.subf %701, %695 : vector<2x32xf32>
    %703 = arith.mulf %702, %700 : vector<2x32xf32>
    %704 = arith.mulf %695, %394 : vector<2x32xf32>
    %705 = arith.addf %703, %704 : vector<2x32xf32>
    %c0_219 = arith.constant 0 : index
    %c0_220 = arith.constant 0 : index
    %706 = vector.load %arg18[%c0_219, %c0_220] : memref<32x20xf32, #tpu.memory_space<vmem>>, vector<32x20xf32>
    %cst_221 = arith.constant dense<0.000000e+00> : vector<2x20xf32>
    %707 = tpu.matmul %705, %706, %cst_221 {dimension_numbers = #tpu.dot_dimension_numbers<[1], [0], [0], [1], [0, 0, 1, 1], [], []>} : vector<2x32xf32>, vector<32x20xf32>, vector<2x20xf32> -> vector<2x20xf32>
    %708 = vector.extract_strided_slice %677 {offsets = [0, 96], sizes = [2, 20], strides = [1, 1]} : vector<2x116xf32> to vector<2x20xf32>
    %709 = arith.addf %707, %708 : vector<2x20xf32>
    %710 = arith.addf %709, %440 : vector<2x20xf32>
    %cst_222 = arith.constant dense<0xFF800000> : vector<2xf32>
    %711 = vector.multi_reduction <maximumf>, %710, %cst_222 [1] : vector<2x20xf32> to vector<2xf32>
    %712 = vector.shape_cast %711 : vector<2xf32> to vector<2x1xf32>
    %713 = vector.broadcast %712 : vector<2x1xf32> to vector<2x20xf32>
    %714 = arith.cmpf oeq, %710, %713 : vector<2x20xf32>
    %cst_223 = arith.constant 2.000000e+01 : f32
    %715 = vector.broadcast %cst_223 : f32 to vector<2x20xf32>
    %716 = arith.select %714, %442, %715 : vector<2x20xi1>, vector<2x20xf32>
    %cst_224 = arith.constant dense<0x7F800000> : vector<2xf32>
    %717 = vector.multi_reduction <minimumf>, %716, %cst_224 [1] : vector<2x20xf32> to vector<2xf32>
    %718 = vector.shape_cast %717 : vector<2xf32> to vector<2x1xf32>
    %719 = vector.extract_strided_slice %445 {offsets = [0, 5], sizes = [1, 1], strides = [1, 1]} : vector<1x8xf32> to vector<1x1xf32>
    %720 = vector.extract_strided_slice %444 {offsets = [0, 5], sizes = [2, 1], strides = [1, 1]} : vector<2x8xf32> to vector<2x1xf32>
    %721 = vector.broadcast %719 : vector<1x1xf32> to vector<2x1xf32>
    %722 = arith.mulf %721, %720 : vector<2x1xf32>
    %cst_225 = arith.constant 1.000000e+00 : f32
    %723 = vector.broadcast %cst_225 : f32 to vector<1x1xf32>
    %724 = arith.subf %723, %719 : vector<1x1xf32>
    %725 = vector.broadcast %724 : vector<1x1xf32> to vector<2x1xf32>
    %726 = arith.mulf %725, %718 : vector<2x1xf32>
    %727 = arith.addf %722, %726 : vector<2x1xf32>
    %728 = vector.broadcast %727 : vector<2x1xf32> to vector<2x20xf32>
    %729 = arith.cmpf oeq, %728, %442 : vector<2x20xf32>
    %730 = arith.extui %729 : vector<2x20xi1> to vector<2x20xi32>
    %731 = arith.sitofp %730 : vector<2x20xi32> to vector<2x20xf32>
    %c0_226 = arith.constant 0 : index
    %c0_227 = arith.constant 0 : index
    %732 = vector.load %arg17[%c0_226, %c0_227] : memref<20x116xf32, #tpu.memory_space<vmem>>, vector<20x116xf32>
    %cst_228 = arith.constant dense<0.000000e+00> : vector<2x116xf32>
    %733 = tpu.matmul %731, %732, %cst_228 {dimension_numbers = #tpu.dot_dimension_numbers<[1], [0], [0], [1], [0, 0, 1, 1], [], []>} : vector<2x20xf32>, vector<20x116xf32>, vector<2x116xf32> -> vector<2x116xf32>
    %734 = vector.extract_strided_slice %733 {offsets = [0, 0], sizes = [2, 96], strides = [1, 1]} : vector<2x116xf32> to vector<2x96xf32>
    %735 = arith.addf %734, %436 : vector<2x96xf32>
    %736 = vector.extract_strided_slice %735 {offsets = [0, 0], sizes = [2, 32], strides = [1, 1]} : vector<2x96xf32> to vector<2x32xf32>
    %737 = vector.extract_strided_slice %401 {offsets = [0, 0], sizes = [2, 32], strides = [1, 1]} : vector<2x96xf32> to vector<2x32xf32>
    %738 = arith.addf %736, %737 : vector<2x32xf32>
    %739 = arith.negf %738 : vector<2x32xf32>
    %740 = math.exp %739 : vector<2x32xf32>
    %cst_229 = arith.constant 1.000000e+00 : f32
    %741 = vector.broadcast %cst_229 : f32 to vector<2x32xf32>
    %742 = arith.addf %741, %740 : vector<2x32xf32>
    %743 = arith.divf %741, %742 : vector<2x32xf32>
    %744 = vector.extract_strided_slice %735 {offsets = [0, 32], sizes = [2, 32], strides = [1, 1]} : vector<2x96xf32> to vector<2x32xf32>
    %745 = vector.extract_strided_slice %401 {offsets = [0, 32], sizes = [2, 32], strides = [1, 1]} : vector<2x96xf32> to vector<2x32xf32>
    %746 = arith.addf %744, %745 : vector<2x32xf32>
    %747 = arith.negf %746 : vector<2x32xf32>
    %748 = math.exp %747 : vector<2x32xf32>
    %cst_230 = arith.constant 1.000000e+00 : f32
    %749 = vector.broadcast %cst_230 : f32 to vector<2x32xf32>
    %750 = arith.addf %749, %748 : vector<2x32xf32>
    %751 = arith.divf %749, %750 : vector<2x32xf32>
    %752 = vector.extract_strided_slice %735 {offsets = [0, 64], sizes = [2, 32], strides = [1, 1]} : vector<2x96xf32> to vector<2x32xf32>
    %753 = vector.extract_strided_slice %401 {offsets = [0, 64], sizes = [2, 32], strides = [1, 1]} : vector<2x96xf32> to vector<2x32xf32>
    %754 = arith.mulf %743, %753 : vector<2x32xf32>
    %755 = arith.addf %752, %754 : vector<2x32xf32>
    %756 = math.tanh %755 : vector<2x32xf32>
    %cst_231 = arith.constant 1.000000e+00 : f32
    %757 = vector.broadcast %cst_231 : f32 to vector<2x32xf32>
    %758 = arith.subf %757, %751 : vector<2x32xf32>
    %759 = arith.mulf %758, %756 : vector<2x32xf32>
    %760 = arith.mulf %751, %394 : vector<2x32xf32>
    %761 = arith.addf %759, %760 : vector<2x32xf32>
    %c0_232 = arith.constant 0 : index
    %c0_233 = arith.constant 0 : index
    %762 = vector.load %arg18[%c0_232, %c0_233] : memref<32x20xf32, #tpu.memory_space<vmem>>, vector<32x20xf32>
    %cst_234 = arith.constant dense<0.000000e+00> : vector<2x20xf32>
    %763 = tpu.matmul %761, %762, %cst_234 {dimension_numbers = #tpu.dot_dimension_numbers<[1], [0], [0], [1], [0, 0, 1, 1], [], []>} : vector<2x32xf32>, vector<32x20xf32>, vector<2x20xf32> -> vector<2x20xf32>
    %764 = vector.extract_strided_slice %733 {offsets = [0, 96], sizes = [2, 20], strides = [1, 1]} : vector<2x116xf32> to vector<2x20xf32>
    %765 = arith.addf %763, %764 : vector<2x20xf32>
    %766 = arith.addf %765, %440 : vector<2x20xf32>
    %cst_235 = arith.constant dense<0xFF800000> : vector<2xf32>
    %767 = vector.multi_reduction <maximumf>, %766, %cst_235 [1] : vector<2x20xf32> to vector<2xf32>
    %768 = vector.shape_cast %767 : vector<2xf32> to vector<2x1xf32>
    %769 = vector.broadcast %768 : vector<2x1xf32> to vector<2x20xf32>
    %770 = arith.cmpf oeq, %766, %769 : vector<2x20xf32>
    %cst_236 = arith.constant 2.000000e+01 : f32
    %771 = vector.broadcast %cst_236 : f32 to vector<2x20xf32>
    %772 = arith.select %770, %442, %771 : vector<2x20xi1>, vector<2x20xf32>
    %cst_237 = arith.constant dense<0x7F800000> : vector<2xf32>
    %773 = vector.multi_reduction <minimumf>, %772, %cst_237 [1] : vector<2x20xf32> to vector<2xf32>
    %774 = vector.shape_cast %773 : vector<2xf32> to vector<2x1xf32>
    %775 = vector.extract_strided_slice %445 {offsets = [0, 6], sizes = [1, 1], strides = [1, 1]} : vector<1x8xf32> to vector<1x1xf32>
    %776 = vector.extract_strided_slice %444 {offsets = [0, 6], sizes = [2, 1], strides = [1, 1]} : vector<2x8xf32> to vector<2x1xf32>
    %777 = vector.broadcast %775 : vector<1x1xf32> to vector<2x1xf32>
    %778 = arith.mulf %777, %776 : vector<2x1xf32>
    %cst_238 = arith.constant 1.000000e+00 : f32
    %779 = vector.broadcast %cst_238 : f32 to vector<1x1xf32>
    %780 = arith.subf %779, %775 : vector<1x1xf32>
    %781 = vector.broadcast %780 : vector<1x1xf32> to vector<2x1xf32>
    %782 = arith.mulf %781, %774 : vector<2x1xf32>
    %783 = arith.addf %778, %782 : vector<2x1xf32>
    %784 = vector.broadcast %783 : vector<2x1xf32> to vector<2x20xf32>
    %785 = arith.cmpf oeq, %784, %442 : vector<2x20xf32>
    %786 = arith.extui %785 : vector<2x20xi1> to vector<2x20xi32>
    %787 = arith.sitofp %786 : vector<2x20xi32> to vector<2x20xf32>
    %c0_239 = arith.constant 0 : index
    %c0_240 = arith.constant 0 : index
    %788 = vector.load %arg17[%c0_239, %c0_240] : memref<20x116xf32, #tpu.memory_space<vmem>>, vector<20x116xf32>
    %cst_241 = arith.constant dense<0.000000e+00> : vector<2x116xf32>
    %789 = tpu.matmul %787, %788, %cst_241 {dimension_numbers = #tpu.dot_dimension_numbers<[1], [0], [0], [1], [0, 0, 1, 1], [], []>} : vector<2x20xf32>, vector<20x116xf32>, vector<2x116xf32> -> vector<2x116xf32>
    %790 = vector.extract_strided_slice %789 {offsets = [0, 0], sizes = [2, 96], strides = [1, 1]} : vector<2x116xf32> to vector<2x96xf32>
    %791 = arith.addf %790, %436 : vector<2x96xf32>
    %792 = vector.extract_strided_slice %791 {offsets = [0, 0], sizes = [2, 32], strides = [1, 1]} : vector<2x96xf32> to vector<2x32xf32>
    %793 = vector.extract_strided_slice %401 {offsets = [0, 0], sizes = [2, 32], strides = [1, 1]} : vector<2x96xf32> to vector<2x32xf32>
    %794 = arith.addf %792, %793 : vector<2x32xf32>
    %795 = arith.negf %794 : vector<2x32xf32>
    %796 = math.exp %795 : vector<2x32xf32>
    %cst_242 = arith.constant 1.000000e+00 : f32
    %797 = vector.broadcast %cst_242 : f32 to vector<2x32xf32>
    %798 = arith.addf %797, %796 : vector<2x32xf32>
    %799 = arith.divf %797, %798 : vector<2x32xf32>
    %800 = vector.extract_strided_slice %791 {offsets = [0, 32], sizes = [2, 32], strides = [1, 1]} : vector<2x96xf32> to vector<2x32xf32>
    %801 = vector.extract_strided_slice %401 {offsets = [0, 32], sizes = [2, 32], strides = [1, 1]} : vector<2x96xf32> to vector<2x32xf32>
    %802 = arith.addf %800, %801 : vector<2x32xf32>
    %803 = arith.negf %802 : vector<2x32xf32>
    %804 = math.exp %803 : vector<2x32xf32>
    %cst_243 = arith.constant 1.000000e+00 : f32
    %805 = vector.broadcast %cst_243 : f32 to vector<2x32xf32>
    %806 = arith.addf %805, %804 : vector<2x32xf32>
    %807 = arith.divf %805, %806 : vector<2x32xf32>
    %808 = vector.extract_strided_slice %791 {offsets = [0, 64], sizes = [2, 32], strides = [1, 1]} : vector<2x96xf32> to vector<2x32xf32>
    %809 = vector.extract_strided_slice %401 {offsets = [0, 64], sizes = [2, 32], strides = [1, 1]} : vector<2x96xf32> to vector<2x32xf32>
    %810 = arith.mulf %799, %809 : vector<2x32xf32>
    %811 = arith.addf %808, %810 : vector<2x32xf32>
    %812 = math.tanh %811 : vector<2x32xf32>
    %cst_244 = arith.constant 1.000000e+00 : f32
    %813 = vector.broadcast %cst_244 : f32 to vector<2x32xf32>
    %814 = arith.subf %813, %807 : vector<2x32xf32>
    %815 = arith.mulf %814, %812 : vector<2x32xf32>
    %816 = arith.mulf %807, %394 : vector<2x32xf32>
    %817 = arith.addf %815, %816 : vector<2x32xf32>
    %c0_245 = arith.constant 0 : index
    %c0_246 = arith.constant 0 : index
    %818 = vector.load %arg18[%c0_245, %c0_246] : memref<32x20xf32, #tpu.memory_space<vmem>>, vector<32x20xf32>
    %cst_247 = arith.constant dense<0.000000e+00> : vector<2x20xf32>
    %819 = tpu.matmul %817, %818, %cst_247 {dimension_numbers = #tpu.dot_dimension_numbers<[1], [0], [0], [1], [0, 0, 1, 1], [], []>} : vector<2x32xf32>, vector<32x20xf32>, vector<2x20xf32> -> vector<2x20xf32>
    %820 = vector.extract_strided_slice %789 {offsets = [0, 96], sizes = [2, 20], strides = [1, 1]} : vector<2x116xf32> to vector<2x20xf32>
    %821 = arith.addf %819, %820 : vector<2x20xf32>
    %822 = arith.addf %821, %440 : vector<2x20xf32>
    %823 = tpu.concatenate %447, %486, %542, %598, %654, %710, %766, %822 in 0 : vector<2x20xf32>, vector<2x20xf32>, vector<2x20xf32>, vector<2x20xf32>, vector<2x20xf32>, vector<2x20xf32>, vector<2x20xf32>, vector<2x20xf32> -> vector<16x20xf32>
    %c0_248 = arith.constant 0 : index
    %c0_249 = arith.constant 0 : index
    %824 = vector.load %arg20[%c0_248, %c0_249] : memref<16x20xf32, #tpu.memory_space<vmem>>, vector<16x20xf32>
    tpu.vector_store %arg20[%c0_248, %c0_249], %823 {strides = array<i32>} : memref<16x20xf32, #tpu.memory_space<vmem>>, vector<16x20xf32>,
    return
  }
}

</mosaic_0001>

<llo_original>
// kernel: seq2seq_pallas.1
$region0: #{seq2seq_pallas.1}
  #allocation0 [shape = 'u32[]', space=smem, size = 0x4, offset = 0x4, fixed_abs, tag = 'smem constant byte address 0x4 - core index']
  #allocation1 [shape = 'u32[72,128]{1,0:T(1,128)}', space=vmem, size = 0x9000, scoped, tag = 'internal scratch']
  #allocation2 [shape = 'f32[2,8,64]{2,1,0:T(8,128)}', space=vmem, size = 0x2000, scoped, tag = 'scratch operand']
  %s0 = inlined_call_operand.vmem [shape: s32[2,8], index: 0, kind: input, shape index: {}]
  %s1 = inlined_call_operand.vmem [shape: s32[2,8], index: 1, kind: input, shape index: {}]
  %s2 = inlined_call_operand.vmem [shape: f32[1,8], index: 2, kind: input, shape index: {}]
  %s3 = inlined_call_operand.vmem [shape: f32[20,16], index: 3, kind: input, shape index: {}]
  %s4 = inlined_call_operand.hbm [shape: f32[32,192], index: 4, kind: input, shape index: {}]
  %s5 = inlined_call_operand.vmem [shape: f32[64,192], index: 5, kind: input, shape index: {}]
  %s6 = inlined_call_operand.vmem [shape: f32[1,192], index: 6, kind: input, shape index: {}]
  %s7 = inlined_call_operand.vmem [shape: f32[1,192], index: 7, kind: input, shape index: {}]
  %s8 = inlined_call_operand.vmem [shape: f32[64,32], index: 8, kind: input, shape index: {}]
  %s9 = inlined_call_operand.vmem [shape: f32[1,32], index: 9, kind: input, shape index: {}]
  %s10 = inlined_call_operand.vmem [shape: f32[64,32], index: 10, kind: input, shape index: {}]
  %s11 = inlined_call_operand.vmem [shape: f32[1,32], index: 11, kind: input, shape index: {}]
  %s12 = inlined_call_operand.vmem [shape: f32[1,32], index: 12, kind: input, shape index: {}]
  %s13 = inlined_call_operand.vmem [shape: f32[32,128], index: 13, kind: input, shape index: {}]
  %s14 = inlined_call_operand.vmem [shape: f32[1,96], index: 14, kind: input, shape index: {}]
  %s15 = inlined_call_operand.hbm [shape: f32[64,116], index: 15, kind: input, shape index: {}]
  %s16 = inlined_call_operand.vmem [shape: f32[1,96], index: 16, kind: input, shape index: {}]
  %s17 = inlined_call_operand.vmem [shape: f32[20,116], index: 17, kind: input, shape index: {}]
  %s18 = inlined_call_operand.vmem [shape: f32[32,20], index: 18, kind: input, shape index: {}]
  %s19 = inlined_call_operand.vmem [shape: f32[1,20], index: 19, kind: input, shape index: {}]
  %s20 = inlined_call_operand.hbm [shape: f32[16,20], index: 20, kind: output, shape index: {}]
  %s21 = sld [smem:[#allocation0]]
  $region98: #{seq2seq_pallas.1} parent=0
    _
  %s23 = ssub.s32 1, %s21
  %s24 = scalar_select 0, %s23, %s21
  $region1: #{seq2seq_pallas.1} parent=0
    #allocation3 [shape = 'u8[32768]{0}', space=vmem, size = 0x8000, scoped, tag = 'input window, operand 4, single buffered']
    #allocation4 [shape = 's32[1]{0}', space=sflag, size = 0x4, scoped, tag = 'scoped memory for seq2seq_pallas.1']
    #allocation5 [shape = 's32[1]{0}', space=sflag, size = 0x4, scoped, tag = 'scoped memory for seq2seq_pallas.1']
    #allocation6 [shape = 'u8[32768]{0}', space=vmem, size = 0x8000, scoped, tag = 'input window, operand 15, single buffered']
    #allocation7 [shape = 's32[1]{0}', space=sflag, size = 0x4, scoped, tag = 'scoped memory for seq2seq_pallas.1']
    #allocation8 [shape = 'u8[8192]{0}', space=vmem, size = 0x2000, scoped, tag = 'output window, operand 0, single buffered']
    %25 = vsyncpa [#allocation4], 0
    %26 = vsyncpa [#allocation7], 0
    %27 = vsyncpa [#allocation5], 0
    // Predicated region
    $region2: #{seq2seq_pallas.1} parent=1 // pred_check
      _
    $region3: #{seq2seq_pallas.1} parent=1 // pred_check_branch
      %29 = sbr.rel (0) target = $region5
    $region4: #{seq2seq_pallas.1} parent=1 // pred_region
      _
    $region5: #{seq2seq_pallas.1} parent=1 // pred_fallthru
      _
    // Predicated region
    $region6: #{seq2seq_pallas.1} parent=1 // pred_check
      _
    $region7: #{seq2seq_pallas.1} parent=1 // pred_check_branch
      %31 = sbr.rel (0) target = $region9
    $region8: #{seq2seq_pallas.1} parent=1 // pred_region
      _
    $region9: #{seq2seq_pallas.1} parent=1 // pred_fallthru
      _
    // Predicated region
    $region10: #{seq2seq_pallas.1} parent=1 // pred_check
      _
    $region11: #{seq2seq_pallas.1} parent=1 // pred_check_branch
      %33 = sbr.rel (0) target = $region13
    $region12: #{seq2seq_pallas.1} parent=1 // pred_region
      _
    $region13: #{seq2seq_pallas.1} parent=1 // pred_fallthru
      _
    // Predicated region
    $region14: #{seq2seq_pallas.1} parent=1 // pred_check
      _
    $region15: #{seq2seq_pallas.1} parent=1 // pred_check_branch
      %35 = sbr.rel (0) target = $region17
    $region16: #{seq2seq_pallas.1} parent=1 // pred_region
      _
    $region17: #{seq2seq_pallas.1} parent=1 // pred_fallthru
      _
    // Predicated region
    $region18: #{seq2seq_pallas.1} parent=1 // pred_check
      _
    $region19: #{seq2seq_pallas.1} parent=1 // pred_check_branch
      %37 = sbr.rel (0) target = $region21
    $region20: #{seq2seq_pallas.1} parent=1 // pred_region
      %39 = vsyncadd [#allocation4], 0
      %s40 = sshll.u32 %s4, 4
      %s41 = int_to_ptr.hbm [resolvable:$true] %s40
      %s42 = sshll.u32 [#allocation3], 4
      %s43 = int_to_ptr.vmem [resolvable:$true] %s42
      %48 = dma.hbm_to_vmem [thread:$0]  %s41, 1024, %s43, [#allocation4], 256, 256, 16
    $region21: #{seq2seq_pallas.1} parent=1 // pred_fallthru
      _
    // Predicated region
    $region22: #{seq2seq_pallas.1} parent=1 // pred_check
      _
    $region23: #{seq2seq_pallas.1} parent=1 // pred_check_branch
      %50 = sbr.rel (0) target = $region25
    $region24: #{seq2seq_pallas.1} parent=1 // pred_region
      _
    $region25: #{seq2seq_pallas.1} parent=1 // pred_fallthru
      _
    // Predicated region
    $region26: #{seq2seq_pallas.1} parent=1 // pred_check
      _
    $region27: #{seq2seq_pallas.1} parent=1 // pred_check_branch
      %52 = sbr.rel (0) target = $region29
    $region28: #{seq2seq_pallas.1} parent=1 // pred_region
      _
    $region29: #{seq2seq_pallas.1} parent=1 // pred_fallthru
      _
    // Predicated region
    $region30: #{seq2seq_pallas.1} parent=1 // pred_check
      _
    $region31: #{seq2seq_pallas.1} parent=1 // pred_check_branch
      %54 = sbr.rel (0) target = $region33
    $region32: #{seq2seq_pallas.1} parent=1 // pred_region
      _
    $region33: #{seq2seq_pallas.1} parent=1 // pred_fallthru
      _
    // Predicated region
    $region34: #{seq2seq_pallas.1} parent=1 // pred_check
      _
    $region35: #{seq2seq_pallas.1} parent=1 // pred_check_branch
      %56 = sbr.rel (0) target = $region37
    $region36: #{seq2seq_pallas.1} parent=1 // pred_region
      _
    $region37: #{seq2seq_pallas.1} parent=1 // pred_fallthru
      _
    // Predicated region
    $region38: #{seq2seq_pallas.1} parent=1 // pred_check
      _
    $region39: #{seq2seq_pallas.1} parent=1 // pred_check_branch
      %58 = sbr.rel (0) target = $region41
    $region40: #{seq2seq_pallas.1} parent=1 // pred_region
      _
    $region41: #{seq2seq_pallas.1} parent=1 // pred_fallthru
      _
    // Predicated region
    $region42: #{seq2seq_pallas.1} parent=1 // pred_check
      _
    $region43: #{seq2seq_pallas.1} parent=1 // pred_check_branch
      %60 = sbr.rel (0) target = $region45
    $region44: #{seq2seq_pallas.1} parent=1 // pred_region
      _
    $region45: #{seq2seq_pallas.1} parent=1 // pred_fallthru
      _
    // Predicated region
    $region46: #{seq2seq_pallas.1} parent=1 // pred_check
      _
    $region47: #{seq2seq_pallas.1} parent=1 // pred_check_branch
      %62 = sbr.rel (0) target = $region49
    $region48: #{seq2seq_pallas.1} parent=1 // pred_region
      _
    $region49: #{seq2seq_pallas.1} parent=1 // pred_fallthru
      _
    // Predicated region
    $region50: #{seq2seq_pallas.1} parent=1 // pred_check
      _
    $region51: #{seq2seq_pallas.1} parent=1 // pred_check_branch
      %64 = sbr.rel (0) target = $region53
    $region52: #{seq2seq_pallas.1} parent=1 // pred_region
      _
    $region53: #{seq2seq_pallas.1} parent=1 // pred_fallthru
      _
    // Predicated region
    $region54: #{seq2seq_pallas.1} parent=1 // pred_check
      _
    $region55: #{seq2seq_pallas.1} parent=1 // pred_check_branch
      %66 = sbr.rel (0) target = $region57
    $region56: #{seq2seq_pallas.1} parent=1 // pred_region
      _
    $region57: #{seq2seq_pallas.1} parent=1 // pred_fallthru
      _
    // Predicated region
    $region58: #{seq2seq_pallas.1} parent=1 // pred_check
      _
    $region59: #{seq2seq_pallas.1} parent=1 // pred_check_branch
      %68 = sbr.rel (0) target = $region61
    $region60: #{seq2seq_pallas.1} parent=1 // pred_region
      _
    $region61: #{seq2seq_pallas.1} parent=1 // pred_fallthru
      _
    // Predicated region
    $region62: #{seq2seq_pallas.1} parent=1 // pred_check
      _
    $region63: #{seq2seq_pallas.1} parent=1 // pred_check_branch
      %70 = sbr.rel (0) target = $region65
    $region64: #{seq2seq_pallas.1} parent=1 // pred_region
      %72 = vsyncadd [#allocation7], 0
      %s73 = sshll.u32 %s15, 4
      %s74 = int_to_ptr.hbm [resolvable:$true] %s73
      %s75 = sshll.u32 [#allocation6], 4
      %s76 = int_to_ptr.vmem [resolvable:$true] %s75
      %81 = dma.hbm_to_vmem [thread:$0]  %s74, 1024, %s76, [#allocation7], 128, 128, 8
    $region65: #{seq2seq_pallas.1} parent=1 // pred_fallthru
      _
    // Predicated region
    $region66: #{seq2seq_pallas.1} parent=1 // pred_check
      _
    $region67: #{seq2seq_pallas.1} parent=1 // pred_check_branch
      %83 = sbr.rel (0) target = $region69
    $region68: #{seq2seq_pallas.1} parent=1 // pred_region
      _
    $region69: #{seq2seq_pallas.1} parent=1 // pred_fallthru
      _
    // Predicated region
    $region70: #{seq2seq_pallas.1} parent=1 // pred_check
      _
    $region71: #{seq2seq_pallas.1} parent=1 // pred_check_branch
      %85 = sbr.rel (0) target = $region73
    $region72: #{seq2seq_pallas.1} parent=1 // pred_region
      _
    $region73: #{seq2seq_pallas.1} parent=1 // pred_fallthru
      _
    // Predicated region
    $region74: #{seq2seq_pallas.1} parent=1 // pred_check
      _
    $region75: #{seq2seq_pallas.1} parent=1 // pred_check_branch
      %87 = sbr.rel (0) target = $region77
    $region76: #{seq2seq_pallas.1} parent=1 // pred_region
      _
    $region77: #{seq2seq_pallas.1} parent=1 // pred_fallthru
      _
    // Predicated region
    $region78: #{seq2seq_pallas.1} parent=1 // pred_check
      _
    $region79: #{seq2seq_pallas.1} parent=1 // pred_check_branch
      %89 = sbr.rel (0) target = $region81
    $region80: #{seq2seq_pallas.1} parent=1 // pred_region
      _
    $region81: #{seq2seq_pallas.1} parent=1 // pred_fallthru
      _
    // Predicated region
    $region82: #{seq2seq_pallas.1} parent=1 // pred_check
      _
    $region83: #{seq2seq_pallas.1} parent=1 // pred_check_branch
      %91 = sbr.rel (0) target = $region85
    $region84: #{seq2seq_pallas.1} parent=1 // pred_region
      %93 = dma.done [#allocation4], 1024
    $region85: #{seq2seq_pallas.1} parent=1 // pred_fallthru
      _
    // Predicated region
    $region86: #{seq2seq_pallas.1} parent=1 // pred_check
      _
    $region87: #{seq2seq_pallas.1} parent=1 // pred_check_branch
      %95 = sbr.rel (0) target = $region89
    $region88: #{seq2seq_pallas.1} parent=1 // pred_region
      %97 = dma.done [#allocation7], 1024
    $region89: #{seq2seq_pallas.1} parent=1 // pred_fallthru
      _
    %v98 = vld [vmem:[%s0] sm:$0x3]
    %v99 = vlaneseq
    %v100 = vand.u32 %v99, 127
    %v101 = vperm.slane %v98, 0
    %v102 = vlaneseq
    %v103 = vshrl.u32 %v102, 7
    %105 = vset.pattern.permute.xlu0 %v103
    %106 = vperm.xlu0 %105, %v101
    %v107 = vpop.permute.xlu0 %106
    %v108 = vperm.slane %v98, 1
    %v109 = vlaneseq
    %v110 = vshrl.u32 %v109, 7
    %112 = vset.pattern.permute.xlu0 %v110
    %113 = vperm.xlu0 %112, %v108
    %v114 = vpop.permute.xlu0 %113
    %vm115 = vcmp.eq.s32.totalorder %v107, %v100
    %vm116 = vcmp.eq.s32.totalorder %v114, %v100
    %v117 = vsel %vm115, 1, 0
    %v118 = vsel %vm116, 1, 0
    %v119 = vcvt.s32.f32 %v117
    %v120 = vcvt.s32.f32 %v118
    %v121 = vld [vmem:[%s3] sm:$0xff]
    %v122 = vld [vmem:[%s3 + $0x8] sm:$0xff]
    %v123 = vld [vmem:[%s3 + $0x10] sm:$0xf]
    %vm124 = vcmask 162816
    %v126 = vsel %vm124, %v119, 0
    %v129 = vsel %vm124, %v120, 0
    %vm131 = vcmask 1043456
    %v133 = vsel %vm131, %v123, 0
    %135 = vmatpush.msra.mxu0 0.0
    %136 = vmatpush.msra.mxu0 0.0
    %137 = vmatpush.msra.mxu0 0.0
    %138 = vmatpush.msra.mxu0 0.0
    %139 = vmatpush.msra.mxu0 0.0
    %140 = vmatpush.msra.mxu0 0.0
    %141 = vmatpush.msra.mxu0 0.0
    %142 = vmatpush.msra.mxu0 0.0
    %143 = vmatpush.msra.mxu0 0.0
    %144 = vmatpush.msra.mxu0 0.0
    %145 = vmatpush.msra.mxu0 0.0
    %146 = vmatpush.msra.mxu0 0.0
    %147 = vmatpush.msra.mxu0 0.0
    %148 = vmatpush.msra.mxu0 %v133
    %149 = vmatpush.msra.mxu0 %v122
    %150 = vmatpush.msra.mxu0 %v121
    %151 = vmatmul.f32.gmra.mxu0 %v126
    %v152 = vpop.f32.mrf.mxu0
    %v153 = vadd.f32 0.0, %v152
    %154 = vmatmul.f32.gmra.mxu0 %v129
    %v155 = vpop.f32.mrf.mxu0
    %v156 = vadd.f32 0.0, %v155
    %157 = vdwg.mxu0
    %v160 = vrot.slane %v156, 7
    %vm161 = vcmask 1041409
    %v162 = vsel %vm161, %v160, %v153
    %v164 = vrot.slane %v153, 7
    %v165 = vrot.slane %v156, 6
    %v166 = vsel %vm161, %v165, %v164
    %167 = vrot.lane.b32.xlu0 %v166, 16
    %v168 = vpop.permute.xlu0 %167
    %vm170 = vcmask 130048
    %v171 = vsel %vm170, %v162, %v168
    %v172 = vld [vmem:[#allocation3] sm:$0xff]
    %v173 = vld [vmem:[#allocation3 + $0x8] sm:$0xff]
    %v174 = vld [vmem:[#allocation3 + $0x10] sm:$0xff]
    %v175 = vld [vmem:[#allocation3 + $0x18] sm:$0xff]
    %v176 = vld [vmem:[#allocation3 + $0x20] sm:$0xff]
    %v177 = vld [vmem:[#allocation3 + $0x28] sm:$0xff]
    %v178 = vld [vmem:[#allocation3 + $0x30] sm:$0xff]
    %v179 = vld [vmem:[#allocation3 + $0x38] sm:$0xff]
    %v180 = vld [vmem:[%s6] sm:$0x3]
    %v182 = vperm.slane %v180, 0
    %v183 = vperm.slane %v180, 1
    %vm186 = vcmask 261120
    %v188 = vsel %vm186, %v171, 0
    %190 = vmatpush.msra.mxu0 0.0
    %191 = vmatpush.msra.mxu0 0.0
    %192 = vmatpush.msra.mxu0 0.0
    %193 = vmatpush.msra.mxu0 0.0
    %194 = vmatpush.msra.mxu0 0.0
    %195 = vmatpush.msra.mxu0 0.0
    %196 = vmatpush.msra.mxu0 0.0
    %197 = vmatpush.msra.mxu0 0.0
    %198 = vmatpush.msra.mxu0 0.0
    %199 = vmatpush.msra.mxu0 0.0
    %200 = vmatpush.msra.mxu0 0.0
    %201 = vmatpush.msra.mxu0 0.0
    %202 = vmatpush.msra.mxu0 %v178
    %203 = vmatpush.msra.mxu0 %v176
    %204 = vmatpush.msra.mxu0 %v174
    %205 = vmatpush.msra.mxu0 %v172
    %206 = vmatmul.f32.gmra.mxu0 %v188
    %v207 = vpop.f32.mrf.mxu0
    %v208 = vadd.f32 %v182, %v207
    %209 = vdwg.mxu0
    %210 = vmatpush.msra.mxu0 0.0
    %211 = vmatpush.msra.mxu0 0.0
    %212 = vmatpush.msra.mxu0 0.0
    %213 = vmatpush.msra.mxu0 0.0
    %214 = vmatpush.msra.mxu0 0.0
    %215 = vmatpush.msra.mxu0 0.0
    %216 = vmatpush.msra.mxu0 0.0
    %217 = vmatpush.msra.mxu0 0.0
    %218 = vmatpush.msra.mxu0 0.0
    %219 = vmatpush.msra.mxu0 0.0
    %220 = vmatpush.msra.mxu0 0.0
    %221 = vmatpush.msra.mxu0 0.0
    %222 = vmatpush.msra.mxu0 %v179
    %223 = vmatpush.msra.mxu0 %v177
    %224 = vmatpush.msra.mxu0 %v175
    %225 = vmatpush.msra.mxu0 %v173
    %226 = vmatmul.f32.gmra.mxu0 %v188
    %v227 = vpop.f32.mrf.mxu0
    %v228 = vadd.f32 %v183, %v227
    %229 = vdwg.mxu0
    %v230 = vld [vmem:[%s5] sm:$0xff]
    %v231 = vld [vmem:[%s5 + $0x8] sm:$0xff]
    %v232 = vld [vmem:[%s5 + $0x10] sm:$0xff]
    %v233 = vld [vmem:[%s5 + $0x18] sm:$0xff]
    %v234 = vld [vmem:[%s5 + $0x20] sm:$0xff]
    %v235 = vld [vmem:[%s5 + $0x28] sm:$0xff]
    %v236 = vld [vmem:[%s5 + $0x30] sm:$0xff]
    %v237 = vld [vmem:[%s5 + $0x38] sm:$0xff]
    %v238 = vld [vmem:[%s5 + $0x40] sm:$0xff]
    %v239 = vld [vmem:[%s5 + $0x48] sm:$0xff]
    %v240 = vld [vmem:[%s5 + $0x50] sm:$0xff]
    %v241 = vld [vmem:[%s5 + $0x58] sm:$0xff]
    %v242 = vld [vmem:[%s5 + $0x60] sm:$0xff]
    %v243 = vld [vmem:[%s5 + $0x68] sm:$0xff]
    %v244 = vld [vmem:[%s5 + $0x70] sm:$0xff]
    %v245 = vld [vmem:[%s5 + $0x78] sm:$0xff]
    %v246 = vld [vmem:[%s7] sm:$0x3]
    %v248 = vperm.slane %v246, 0
    %v249 = vperm.slane %v246, 1
    %vm252 = vcmask 523264
    %v254 = vsel %vm252, 0.0, 0
    %256 = vmatpush.msra.mxu0 0.0
    %257 = vmatpush.msra.mxu0 0.0
    %258 = vmatpush.msra.mxu0 0.0
    %259 = vmatpush.msra.mxu0 0.0
    %260 = vmatpush.msra.mxu0 0.0
    %261 = vmatpush.msra.mxu0 0.0
    %262 = vmatpush.msra.mxu0 0.0
    %263 = vmatpush.msra.mxu0 0.0
    %264 = vmatpush.msra.mxu0 %v244
    %265 = vmatpush.msra.mxu0 %v242
    %266 = vmatpush.msra.mxu0 %v240
    %267 = vmatpush.msra.mxu0 %v238
    %268 = vmatpush.msra.mxu0 %v236
    %269 = vmatpush.msra.mxu0 %v234
    %270 = vmatpush.msra.mxu0 %v232
    %271 = vmatpush.msra.mxu0 %v230
    %272 = vmatmul.f32.gmra.mxu0 %v254
    %v273 = vpop.f32.mrf.mxu0
    %v274 = vadd.f32 %v248, %v273
    %275 = vdwg.mxu0
    %276 = vmatpush.msra.mxu0 0.0
    %277 = vmatpush.msra.mxu0 0.0
    %278 = vmatpush.msra.mxu0 0.0
    %279 = vmatpush.msra.mxu0 0.0
    %280 = vmatpush.msra.mxu0 0.0
    %281 = vmatpush.msra.mxu0 0.0
    %282 = vmatpush.msra.mxu0 0.0
    %283 = vmatpush.msra.mxu0 0.0
    %284 = vmatpush.msra.mxu0 %v245
    %285 = vmatpush.msra.mxu0 %v243
    %286 = vmatpush.msra.mxu0 %v241
    %287 = vmatpush.msra.mxu0 %v239
    %288 = vmatpush.msra.mxu0 %v237
    %289 = vmatpush.msra.mxu0 %v235
    %290 = vmatpush.msra.mxu0 %v233
    %291 = vmatpush.msra.mxu0 %v231
    %292 = vmatmul.f32.gmra.mxu0 %v254
    %v293 = vpop.f32.mrf.mxu0
    %v294 = vadd.f32 %v249, %v293
    %295 = vdwg.mxu0
    %v296 = vadd.f32 %v208, %v274
    %v297 = vxor.u32 %v296, 2147483648
    %v298 = vmul.f32 %v297, 1.442695
    %v299 = vpow.pop %v298
    %v300 = vadd.f32 %v299, 1.0
    %v301 = vrcp.pop %v300
    %v302 = vmul.f32 %v300, %v301
    %v303 = vsub.f32 1.0, %v302
    %v304 = vmul.f32 %v301, %v303
    %v305 = vadd.f32 %v301, %v304
    %vm306 = vweird.f32 %v300
    %vm307 = vweird.f32 %v301
    %vm308 = vmor %vm306, %vm307
    %v309 = vsel %vm308, %v301, %v305
    %v310 = vand.u32 2147483647, %v300
    %vm311 = vcmp.eq.f32.partialorder %v310, 8.507059e+37
    %v312 = vand.u32 %v300, 2147483648
    %v313 = vor.u32 1.1754944e-38, %v312
    %v314 = vsel %vm311, %v313, %v309
    %v315 = vmul.f32 1.0, %v314
    %v316 = vmul.f32 %v315, %v294
    %v317 = vadd.f32 %v228, %v316
    %v318 = vtanh.pop %v317
    %v319 = vsub.f32 1.0, %v315
    %321 = vrot.lane.b32.xlu0 %v318, 64
    %v322 = vpop.permute.xlu0 %321
    %v324 = vmul.f32 %v319, %v322
    %v325 = vmul.f32 %v315, 0.0
    %v326 = vadd.f32 %v324, %v325
    %vm327 = vcmask 1042434
    %v328 = vsel %vm327, %v160, %v153
    %v330 = vrot.slane %v153, 5
    %v331 = vrot.slane %v156, 4
    %v332 = vsel %vm327, %v331, %v330
    %333 = vrot.lane.b32.xlu0 %v332, 16
    %v334 = vpop.permute.xlu0 %333
    %v336 = vsel %vm170, %v328, %v334
    %v338 = vrot.slane %v336, 1
    %v339 = vsel %vm186, %v338, 0
    %341 = vmatpush.msra.mxu0 0.0
    %342 = vmatpush.msra.mxu0 0.0
    %343 = vmatpush.msra.mxu0 0.0
    %344 = vmatpush.msra.mxu0 0.0
    %345 = vmatpush.msra.mxu0 0.0
    %346 = vmatpush.msra.mxu0 0.0
    %347 = vmatpush.msra.mxu0 0.0
    %348 = vmatpush.msra.mxu0 0.0
    %349 = vmatpush.msra.mxu0 0.0
    %350 = vmatpush.msra.mxu0 0.0
    %351 = vmatpush.msra.mxu0 0.0
    %352 = vmatpush.msra.mxu0 0.0
    %353 = vmatpush.msra.mxu0 %v178
    %354 = vmatpush.msra.mxu0 %v176
    %355 = vmatpush.msra.mxu0 %v174
    %356 = vmatpush.msra.mxu0 %v172
    %357 = vmatmul.f32.gmra.mxu0 %v339
    %v358 = vpop.f32.mrf.mxu0
    %v359 = vadd.f32 %v182, %v358
    %360 = vdwg.mxu0
    %361 = vmatpush.msra.mxu0 0.0
    %362 = vmatpush.msra.mxu0 0.0
    %363 = vmatpush.msra.mxu0 0.0
    %364 = vmatpush.msra.mxu0 0.0
    %365 = vmatpush.msra.mxu0 0.0
    %366 = vmatpush.msra.mxu0 0.0
    %367 = vmatpush.msra.mxu0 0.0
    %368 = vmatpush.msra.mxu0 0.0
    %369 = vmatpush.msra.mxu0 0.0
    %370 = vmatpush.msra.mxu0 0.0
    %371 = vmatpush.msra.mxu0 0.0
    %372 = vmatpush.msra.mxu0 0.0
    %373 = vmatpush.msra.mxu0 %v179
    %374 = vmatpush.msra.mxu0 %v177
    %375 = vmatpush.msra.mxu0 %v175
    %376 = vmatpush.msra.mxu0 %v173
    %377 = vmatmul.f32.gmra.mxu0 %v339
    %v378 = vpop.f32.mrf.mxu0
    %v379 = vadd.f32 %v183, %v378
    %380 = vdwg.mxu0
    %382 = vrot.lane.b32.xlu0 %v326, 64
    %v383 = vpop.permute.xlu0 %382
    %v384 = vsel %vm252, %v383, 0
    %386 = vmatpush.msra.mxu0 0.0
    %387 = vmatpush.msra.mxu0 0.0
    %388 = vmatpush.msra.mxu0 0.0
    %389 = vmatpush.msra.mxu0 0.0
    %390 = vmatpush.msra.mxu0 0.0
    %391 = vmatpush.msra.mxu0 0.0
    %392 = vmatpush.msra.mxu0 0.0
    %393 = vmatpush.msra.mxu0 0.0
    %394 = vmatpush.msra.mxu0 %v244
    %395 = vmatpush.msra.mxu0 %v242
    %396 = vmatpush.msra.mxu0 %v240
    %397 = vmatpush.msra.mxu0 %v238
    %398 = vmatpush.msra.mxu0 %v236
    %399 = vmatpush.msra.mxu0 %v234
    %400 = vmatpush.msra.mxu0 %v232
    %401 = vmatpush.msra.mxu0 %v230
    %402 = vmatmul.f32.gmra.mxu0 %v384
    %v403 = vpop.f32.mrf.mxu0
    %v404 = vadd.f32 %v248, %v403
    %405 = vdwg.mxu0
    %406 = vmatpush.msra.mxu0 0.0
    %407 = vmatpush.msra.mxu0 0.0
    %408 = vmatpush.msra.mxu0 0.0
    %409 = vmatpush.msra.mxu0 0.0
    %410 = vmatpush.msra.mxu0 0.0
    %411 = vmatpush.msra.mxu0 0.0
    %412 = vmatpush.msra.mxu0 0.0
    %413 = vmatpush.msra.mxu0 0.0
    %414 = vmatpush.msra.mxu0 %v245
    %415 = vmatpush.msra.mxu0 %v243
    %416 = vmatpush.msra.mxu0 %v241
    %417 = vmatpush.msra.mxu0 %v239
    %418 = vmatpush.msra.mxu0 %v237
    %419 = vmatpush.msra.mxu0 %v235
    %420 = vmatpush.msra.mxu0 %v233
    %421 = vmatpush.msra.mxu0 %v231
    %422 = vmatmul.f32.gmra.mxu0 %v384
    %v423 = vpop.f32.mrf.mxu0
    %v424 = vadd.f32 %v249, %v423
    %425 = vdwg.mxu0
    %v426 = vadd.f32 %v359, %v404
    %v427 = vxor.u32 %v426, 2147483648
    %v428 = vmul.f32 %v427, 1.442695
    %v429 = vpow.pop %v428
    %v430 = vadd.f32 %v429, 1.0
    %v431 = vrcp.pop %v430
    %v432 = vmul.f32 %v430, %v431
    %v433 = vsub.f32 1.0, %v432
    %v434 = vmul.f32 %v431, %v433
    %v435 = vadd.f32 %v431, %v434
    %vm436 = vweird.f32 %v430
    %vm437 = vweird.f32 %v431
    %vm438 = vmor %vm436, %vm437
    %v439 = vsel %vm438, %v431, %v435
    %v440 = vand.u32 2147483647, %v430
    %vm441 = vcmp.eq.f32.partialorder %v440, 8.507059e+37
    %v442 = vand.u32 %v430, 2147483648
    %v443 = vor.u32 1.1754944e-38, %v442
    %v444 = vsel %vm441, %v443, %v439
    %v445 = vmul.f32 1.0, %v444
    %v446 = vmul.f32 %v445, %v424
    %v447 = vadd.f32 %v379, %v446
    %v448 = vtanh.pop %v447
    %v449 = vsub.f32 1.0, %v445
    %451 = vrot.lane.b32.xlu0 %v448, 64
    %v452 = vpop.permute.xlu0 %451
    %v454 = vmul.f32 %v449, %v452
    %v455 = vmul.f32 %v445, %v326
    %v456 = vadd.f32 %v454, %v455
    %vm457 = vcmask 1043459
    %v458 = vsel %vm457, %v160, %v153
    %v460 = vrot.slane %v153, 3
    %v461 = vrot.slane %v156, 2
    %v462 = vsel %vm457, %v461, %v460
    %463 = vrot.lane.b32.xlu0 %v462, 16
    %v464 = vpop.permute.xlu0 %463
    %v466 = vsel %vm170, %v458, %v464
    %v468 = vrot.slane %v466, 2
    %v469 = vsel %vm186, %v468, 0
    %471 = vmatpush.msra.mxu0 0.0
    %472 = vmatpush.msra.mxu0 0.0
    %473 = vmatpush.msra.mxu0 0.0
    %474 = vmatpush.msra.mxu0 0.0
    %475 = vmatpush.msra.mxu0 0.0
    %476 = vmatpush.msra.mxu0 0.0
    %477 = vmatpush.msra.mxu0 0.0
    %478 = vmatpush.msra.mxu0 0.0
    %479 = vmatpush.msra.mxu0 0.0
    %480 = vmatpush.msra.mxu0 0.0
    %481 = vmatpush.msra.mxu0 0.0
    %482 = vmatpush.msra.mxu0 0.0
    %483 = vmatpush.msra.mxu0 %v178
    %484 = vmatpush.msra.mxu0 %v176
    %485 = vmatpush.msra.mxu0 %v174
    %486 = vmatpush.msra.mxu0 %v172
    %487 = vmatmul.f32.gmra.mxu0 %v469
    %v488 = vpop.f32.mrf.mxu0
    %v489 = vadd.f32 %v182, %v488
    %490 = vdwg.mxu0
    %491 = vmatpush.msra.mxu0 0.0
    %492 = vmatpush.msra.mxu0 0.0
    %493 = vmatpush.msra.mxu0 0.0
    %494 = vmatpush.msra.mxu0 0.0
    %495 = vmatpush.msra.mxu0 0.0
    %496 = vmatpush.msra.mxu0 0.0
    %497 = vmatpush.msra.mxu0 0.0
    %498 = vmatpush.msra.mxu0 0.0
    %499 = vmatpush.msra.mxu0 0.0
    %500 = vmatpush.msra.mxu0 0.0
    %501 = vmatpush.msra.mxu0 0.0
    %502 = vmatpush.msra.mxu0 0.0
    %503 = vmatpush.msra.mxu0 %v179
    %504 = vmatpush.msra.mxu0 %v177
    %505 = vmatpush.msra.mxu0 %v175
    %506 = vmatpush.msra.mxu0 %v173
    %507 = vmatmul.f32.gmra.mxu0 %v469
    %v508 = vpop.f32.mrf.mxu0
    %v509 = vadd.f32 %v183, %v508
    %510 = vdwg.mxu0
    %512 = vrot.lane.b32.xlu0 %v456, 64
    %v513 = vpop.permute.xlu0 %512
    %v514 = vsel %vm252, %v513, 0
    %516 = vmatpush.msra.mxu0 0.0
    %517 = vmatpush.msra.mxu0 0.0
    %518 = vmatpush.msra.mxu0 0.0
    %519 = vmatpush.msra.mxu0 0.0
    %520 = vmatpush.msra.mxu0 0.0
    %521 = vmatpush.msra.mxu0 0.0
    %522 = vmatpush.msra.mxu0 0.0
    %523 = vmatpush.msra.mxu0 0.0
    %524 = vmatpush.msra.mxu0 %v244
    %525 = vmatpush.msra.mxu0 %v242
    %526 = vmatpush.msra.mxu0 %v240
    %527 = vmatpush.msra.mxu0 %v238
    %528 = vmatpush.msra.mxu0 %v236
    %529 = vmatpush.msra.mxu0 %v234
    %530 = vmatpush.msra.mxu0 %v232
    %531 = vmatpush.msra.mxu0 %v230
    %532 = vmatmul.f32.gmra.mxu0 %v514
    %v533 = vpop.f32.mrf.mxu0
    %v534 = vadd.f32 %v248, %v533
    %535 = vdwg.mxu0
    %536 = vmatpush.msra.mxu0 0.0
    %537 = vmatpush.msra.mxu0 0.0
    %538 = vmatpush.msra.mxu0 0.0
    %539 = vmatpush.msra.mxu0 0.0
    %540 = vmatpush.msra.mxu0 0.0
    %541 = vmatpush.msra.mxu0 0.0
    %542 = vmatpush.msra.mxu0 0.0
    %543 = vmatpush.msra.mxu0 0.0
    %544 = vmatpush.msra.mxu0 %v245
    %545 = vmatpush.msra.mxu0 %v243
    %546 = vmatpush.msra.mxu0 %v241
    %547 = vmatpush.msra.mxu0 %v239
    %548 = vmatpush.msra.mxu0 %v237
    %549 = vmatpush.msra.mxu0 %v235
    %550 = vmatpush.msra.mxu0 %v233
    %551 = vmatpush.msra.mxu0 %v231
    %552 = vmatmul.f32.gmra.mxu0 %v514
    %v553 = vpop.f32.mrf.mxu0
    %v554 = vadd.f32 %v249, %v553
    %555 = vdwg.mxu0
    %v556 = vadd.f32 %v489, %v534
    %v557 = vxor.u32 %v556, 2147483648
    %v558 = vmul.f32 %v557, 1.442695
    %v559 = vpow.pop %v558
    %v560 = vadd.f32 %v559, 1.0
    %v561 = vrcp.pop %v560
    %v562 = vmul.f32 %v560, %v561
    %v563 = vsub.f32 1.0, %v562
    %v564 = vmul.f32 %v561, %v563
    %v565 = vadd.f32 %v561, %v564
    %vm566 = vweird.f32 %v560
    %vm567 = vweird.f32 %v561
    %vm568 = vmor %vm566, %vm567
    %v569 = vsel %vm568, %v561, %v565
    %v570 = vand.u32 2147483647, %v560
    %vm571 = vcmp.eq.f32.partialorder %v570, 8.507059e+37
    %v572 = vand.u32 %v560, 2147483648
    %v573 = vor.u32 1.1754944e-38, %v572
    %v574 = vsel %vm571, %v573, %v569
    %v575 = vmul.f32 1.0, %v574
    %v576 = vmul.f32 %v575, %v554
    %v577 = vadd.f32 %v509, %v576
    %v578 = vtanh.pop %v577
    %v579 = vsub.f32 1.0, %v575
    %581 = vrot.lane.b32.xlu0 %v578, 64
    %v582 = vpop.permute.xlu0 %581
    %v584 = vmul.f32 %v579, %v582
    %v585 = vmul.f32 %v575, %v456
    %v586 = vadd.f32 %v584, %v585
    %vm587 = vcmask 1044484
    %v588 = vsel %vm587, %v160, %v153
    %v590 = vrot.slane %v153, 1
    %v591 = vsel %vm587, %v156, %v590
    %592 = vrot.lane.b32.xlu0 %v591, 16
    %v593 = vpop.permute.xlu0 %592
    %v595 = vsel %vm170, %v588, %v593
    %v597 = vrot.slane %v595, 3
    %v598 = vsel %vm186, %v597, 0
    %600 = vmatpush.msra.mxu0 0.0
    %601 = vmatpush.msra.mxu0 0.0
    %602 = vmatpush.msra.mxu0 0.0
    %603 = vmatpush.msra.mxu0 0.0
    %604 = vmatpush.msra.mxu0 0.0
    %605 = vmatpush.msra.mxu0 0.0
    %606 = vmatpush.msra.mxu0 0.0
    %607 = vmatpush.msra.mxu0 0.0
    %608 = vmatpush.msra.mxu0 0.0
    %609 = vmatpush.msra.mxu0 0.0
    %610 = vmatpush.msra.mxu0 0.0
    %611 = vmatpush.msra.mxu0 0.0
    %612 = vmatpush.msra.mxu0 %v178
    %613 = vmatpush.msra.mxu0 %v176
    %614 = vmatpush.msra.mxu0 %v174
    %615 = vmatpush.msra.mxu0 %v172
    %616 = vmatmul.f32.gmra.mxu0 %v598
    %v617 = vpop.f32.mrf.mxu0
    %v618 = vadd.f32 %v182, %v617
    %619 = vdwg.mxu0
    %620 = vmatpush.msra.mxu0 0.0
    %621 = vmatpush.msra.mxu0 0.0
    %622 = vmatpush.msra.mxu0 0.0
    %623 = vmatpush.msra.mxu0 0.0
    %624 = vmatpush.msra.mxu0 0.0
    %625 = vmatpush.msra.mxu0 0.0
    %626 = vmatpush.msra.mxu0 0.0
    %627 = vmatpush.msra.mxu0 0.0
    %628 = vmatpush.msra.mxu0 0.0
    %629 = vmatpush.msra.mxu0 0.0
    %630 = vmatpush.msra.mxu0 0.0
    %631 = vmatpush.msra.mxu0 0.0
    %632 = vmatpush.msra.mxu0 %v179
    %633 = vmatpush.msra.mxu0 %v177
    %634 = vmatpush.msra.mxu0 %v175
    %635 = vmatpush.msra.mxu0 %v173
    %636 = vmatmul.f32.gmra.mxu0 %v598
    %v637 = vpop.f32.mrf.mxu0
    %v638 = vadd.f32 %v183, %v637
    %639 = vdwg.mxu0
    %641 = vrot.lane.b32.xlu0 %v586, 64
    %v642 = vpop.permute.xlu0 %641
    %v643 = vsel %vm252, %v642, 0
    %645 = vmatpush.msra.mxu0 0.0
    %646 = vmatpush.msra.mxu0 0.0
    %647 = vmatpush.msra.mxu0 0.0
    %648 = vmatpush.msra.mxu0 0.0
    %649 = vmatpush.msra.mxu0 0.0
    %650 = vmatpush.msra.mxu0 0.0
    %651 = vmatpush.msra.mxu0 0.0
    %652 = vmatpush.msra.mxu0 0.0
    %653 = vmatpush.msra.mxu0 %v244
    %654 = vmatpush.msra.mxu0 %v242
    %655 = vmatpush.msra.mxu0 %v240
    %656 = vmatpush.msra.mxu0 %v238
    %657 = vmatpush.msra.mxu0 %v236
    %658 = vmatpush.msra.mxu0 %v234
    %659 = vmatpush.msra.mxu0 %v232
    %660 = vmatpush.msra.mxu0 %v230
    %661 = vmatmul.f32.gmra.mxu0 %v643
    %v662 = vpop.f32.mrf.mxu0
    %v663 = vadd.f32 %v248, %v662
    %664 = vdwg.mxu0
    %665 = vmatpush.msra.mxu0 0.0
    %666 = vmatpush.msra.mxu0 0.0
    %667 = vmatpush.msra.mxu0 0.0
    %668 = vmatpush.msra.mxu0 0.0
    %669 = vmatpush.msra.mxu0 0.0
    %670 = vmatpush.msra.mxu0 0.0
    %671 = vmatpush.msra.mxu0 0.0
    %672 = vmatpush.msra.mxu0 0.0
    %673 = vmatpush.msra.mxu0 %v245
    %674 = vmatpush.msra.mxu0 %v243
    %675 = vmatpush.msra.mxu0 %v241
    %676 = vmatpush.msra.mxu0 %v239
    %677 = vmatpush.msra.mxu0 %v237
    %678 = vmatpush.msra.mxu0 %v235
    %679 = vmatpush.msra.mxu0 %v233
    %680 = vmatpush.msra.mxu0 %v231
    %681 = vmatmul.f32.gmra.mxu0 %v643
    %v682 = vpop.f32.mrf.mxu0
    %v683 = vadd.f32 %v249, %v682
    %684 = vdwg.mxu0
    %v685 = vadd.f32 %v618, %v663
    %v686 = vxor.u32 %v685, 2147483648
    %v687 = vmul.f32 %v686, 1.442695
    %v688 = vpow.pop %v687
    %v689 = vadd.f32 %v688, 1.0
    %v690 = vrcp.pop %v689
    %v691 = vmul.f32 %v689, %v690
    %v692 = vsub.f32 1.0, %v691
    %v693 = vmul.f32 %v690, %v692
    %v694 = vadd.f32 %v690, %v693
    %vm695 = vweird.f32 %v689
    %vm696 = vweird.f32 %v690
    %vm697 = vmor %vm695, %vm696
    %v698 = vsel %vm697, %v690, %v694
    %v699 = vand.u32 2147483647, %v689
    %vm700 = vcmp.eq.f32.partialorder %v699, 8.507059e+37
    %v701 = vand.u32 %v689, 2147483648
    %v702 = vor.u32 1.1754944e-38, %v701
    %v703 = vsel %vm700, %v702, %v698
    %v704 = vmul.f32 1.0, %v703
    %v705 = vmul.f32 %v704, %v683
    %v706 = vadd.f32 %v638, %v705
    %v707 = vtanh.pop %v706
    %v708 = vsub.f32 1.0, %v704
    %710 = vrot.lane.b32.xlu0 %v707, 64
    %v711 = vpop.permute.xlu0 %710
    %v713 = vmul.f32 %v708, %v711
    %v714 = vmul.f32 %v704, %v586
    %v715 = vadd.f32 %v713, %v714
    %vm716 = vcmask 1045509
    %v717 = vsel %vm716, %v160, %v153
    %v719 = vsel %vm716, %v165, %v164
    %720 = vrot.lane.b32.xlu0 %v719, 16
    %v721 = vpop.permute.xlu0 %720
    %v723 = vsel %vm170, %v717, %v721
    %v725 = vrot.slane %v723, 4
    %v726 = vsel %vm186, %v725, 0
    %728 = vmatpush.msra.mxu0 0.0
    %729 = vmatpush.msra.mxu0 0.0
    %730 = vmatpush.msra.mxu0 0.0
    %731 = vmatpush.msra.mxu0 0.0
    %732 = vmatpush.msra.mxu0 0.0
    %733 = vmatpush.msra.mxu0 0.0
    %734 = vmatpush.msra.mxu0 0.0
    %735 = vmatpush.msra.mxu0 0.0
    %736 = vmatpush.msra.mxu0 0.0
    %737 = vmatpush.msra.mxu0 0.0
    %738 = vmatpush.msra.mxu0 0.0
    %739 = vmatpush.msra.mxu0 0.0
    %740 = vmatpush.msra.mxu0 %v178
    %741 = vmatpush.msra.mxu0 %v176
    %742 = vmatpush.msra.mxu0 %v174
    %743 = vmatpush.msra.mxu0 %v172
    %744 = vmatmul.f32.gmra.mxu0 %v726
    %v745 = vpop.f32.mrf.mxu0
    %v746 = vadd.f32 %v182, %v745
    %747 = vdwg.mxu0
    %748 = vmatpush.msra.mxu0 0.0
    %749 = vmatpush.msra.mxu0 0.0
    %750 = vmatpush.msra.mxu0 0.0
    %751 = vmatpush.msra.mxu0 0.0
    %752 = vmatpush.msra.mxu0 0.0
    %753 = vmatpush.msra.mxu0 0.0
    %754 = vmatpush.msra.mxu0 0.0
    %755 = vmatpush.msra.mxu0 0.0
    %756 = vmatpush.msra.mxu0 0.0
    %757 = vmatpush.msra.mxu0 0.0
    %758 = vmatpush.msra.mxu0 0.0
    %759 = vmatpush.msra.mxu0 0.0
    %760 = vmatpush.msra.mxu0 %v179
    %761 = vmatpush.msra.mxu0 %v177
    %762 = vmatpush.msra.mxu0 %v175
    %763 = vmatpush.msra.mxu0 %v173
    %764 = vmatmul.f32.gmra.mxu0 %v726
    %v765 = vpop.f32.mrf.mxu0
    %v766 = vadd.f32 %v183, %v765
    %767 = vdwg.mxu0
    %769 = vrot.lane.b32.xlu0 %v715, 64
    %v770 = vpop.permute.xlu0 %769
    %v771 = vsel %vm252, %v770, 0
    %773 = vmatpush.msra.mxu0 0.0
    %774 = vmatpush.msra.mxu0 0.0
    %775 = vmatpush.msra.mxu0 0.0
    %776 = vmatpush.msra.mxu0 0.0
    %777 = vmatpush.msra.mxu0 0.0
    %778 = vmatpush.msra.mxu0 0.0
    %779 = vmatpush.msra.mxu0 0.0
    %780 = vmatpush.msra.mxu0 0.0
    %781 = vmatpush.msra.mxu0 %v244
    %782 = vmatpush.msra.mxu0 %v242
    %783 = vmatpush.msra.mxu0 %v240
    %784 = vmatpush.msra.mxu0 %v238
    %785 = vmatpush.msra.mxu0 %v236
    %786 = vmatpush.msra.mxu0 %v234
    %787 = vmatpush.msra.mxu0 %v232
    %788 = vmatpush.msra.mxu0 %v230
    %789 = vmatmul.f32.gmra.mxu0 %v771
    %v790 = vpop.f32.mrf.mxu0
    %v791 = vadd.f32 %v248, %v790
    %792 = vdwg.mxu0
    %793 = vmatpush.msra.mxu0 0.0
    %794 = vmatpush.msra.mxu0 0.0
    %795 = vmatpush.msra.mxu0 0.0
    %796 = vmatpush.msra.mxu0 0.0
    %797 = vmatpush.msra.mxu0 0.0
    %798 = vmatpush.msra.mxu0 0.0
    %799 = vmatpush.msra.mxu0 0.0
    %800 = vmatpush.msra.mxu0 0.0
    %801 = vmatpush.msra.mxu0 %v245
    %802 = vmatpush.msra.mxu0 %v243
    %803 = vmatpush.msra.mxu0 %v241
    %804 = vmatpush.msra.mxu0 %v239
    %805 = vmatpush.msra.mxu0 %v237
    %806 = vmatpush.msra.mxu0 %v235
    %807 = vmatpush.msra.mxu0 %v233
    %808 = vmatpush.msra.mxu0 %v231
    %809 = vmatmul.f32.gmra.mxu0 %v771
    %v810 = vpop.f32.mrf.mxu0
    %v811 = vadd.f32 %v249, %v810
    %812 = vdwg.mxu0
    %v813 = vadd.f32 %v746, %v791
    %v814 = vxor.u32 %v813, 2147483648
    %v815 = vmul.f32 %v814, 1.442695
    %v816 = vpow.pop %v815
    %v817 = vadd.f32 %v816, 1.0
    %v818 = vrcp.pop %v817
    %v819 = vmul.f32 %v817, %v818
    %v820 = vsub.f32 1.0, %v819
    %v821 = vmul.f32 %v818, %v820
    %v822 = vadd.f32 %v818, %v821
    %vm823 = vweird.f32 %v817
    %vm824 = vweird.f32 %v818
    %vm825 = vmor %vm823, %vm824
    %v826 = vsel %vm825, %v818, %v822
    %v827 = vand.u32 2147483647, %v817
    %vm828 = vcmp.eq.f32.partialorder %v827, 8.507059e+37
    %v829 = vand.u32 %v817, 2147483648
    %v830 = vor.u32 1.1754944e-38, %v829
    %v831 = vsel %vm828, %v830, %v826
    %v832 = vmul.f32 1.0, %v831
    %v833 = vmul.f32 %v832, %v811
    %v834 = vadd.f32 %v766, %v833
    %v835 = vtanh.pop %v834
    %v836 = vsub.f32 1.0, %v832
    %838 = vrot.lane.b32.xlu0 %v835, 64
    %v839 = vpop.permute.xlu0 %838
    %v841 = vmul.f32 %v836, %v839
    %v842 = vmul.f32 %v832, %v715
    %v843 = vadd.f32 %v841, %v842
    %vm844 = vcmask 1046534
    %v845 = vsel %vm844, %v160, %v153
    %v847 = vsel %vm844, %v331, %v330
    %848 = vrot.lane.b32.xlu0 %v847, 16
    %v849 = vpop.permute.xlu0 %848
    %v851 = vsel %vm170, %v845, %v849
    %v853 = vrot.slane %v851, 5
    %v854 = vsel %vm186, %v853, 0
    %856 = vmatpush.msra.mxu0 0.0
    %857 = vmatpush.msra.mxu0 0.0
    %858 = vmatpush.msra.mxu0 0.0
    %859 = vmatpush.msra.mxu0 0.0
    %860 = vmatpush.msra.mxu0 0.0
    %861 = vmatpush.msra.mxu0 0.0
    %862 = vmatpush.msra.mxu0 0.0
    %863 = vmatpush.msra.mxu0 0.0
    %864 = vmatpush.msra.mxu0 0.0
    %865 = vmatpush.msra.mxu0 0.0
    %866 = vmatpush.msra.mxu0 0.0
    %867 = vmatpush.msra.mxu0 0.0
    %868 = vmatpush.msra.mxu0 %v178
    %869 = vmatpush.msra.mxu0 %v176
    %870 = vmatpush.msra.mxu0 %v174
    %871 = vmatpush.msra.mxu0 %v172
    %872 = vmatmul.f32.gmra.mxu0 %v854
    %v873 = vpop.f32.mrf.mxu0
    %v874 = vadd.f32 %v182, %v873
    %875 = vdwg.mxu0
    %876 = vmatpush.msra.mxu0 0.0
    %877 = vmatpush.msra.mxu0 0.0
    %878 = vmatpush.msra.mxu0 0.0
    %879 = vmatpush.msra.mxu0 0.0
    %880 = vmatpush.msra.mxu0 0.0
    %881 = vmatpush.msra.mxu0 0.0
    %882 = vmatpush.msra.mxu0 0.0
    %883 = vmatpush.msra.mxu0 0.0
    %884 = vmatpush.msra.mxu0 0.0
    %885 = vmatpush.msra.mxu0 0.0
    %886 = vmatpush.msra.mxu0 0.0
    %887 = vmatpush.msra.mxu0 0.0
    %888 = vmatpush.msra.mxu0 %v179
    %889 = vmatpush.msra.mxu0 %v177
    %890 = vmatpush.msra.mxu0 %v175
    %891 = vmatpush.msra.mxu0 %v173
    %892 = vmatmul.f32.gmra.mxu0 %v854
    %v893 = vpop.f32.mrf.mxu0
    %v894 = vadd.f32 %v183, %v893
    %895 = vdwg.mxu0
    %897 = vrot.lane.b32.xlu0 %v843, 64
    %v898 = vpop.permute.xlu0 %897
    %v899 = vsel %vm252, %v898, 0
    %901 = vmatpush.msra.mxu0 0.0
    %902 = vmatpush.msra.mxu0 0.0
    %903 = vmatpush.msra.mxu0 0.0
    %904 = vmatpush.msra.mxu0 0.0
    %905 = vmatpush.msra.mxu0 0.0
    %906 = vmatpush.msra.mxu0 0.0
    %907 = vmatpush.msra.mxu0 0.0
    %908 = vmatpush.msra.mxu0 0.0
    %909 = vmatpush.msra.mxu0 %v244
    %910 = vmatpush.msra.mxu0 %v242
    %911 = vmatpush.msra.mxu0 %v240
    %912 = vmatpush.msra.mxu0 %v238
    %913 = vmatpush.msra.mxu0 %v236
    %914 = vmatpush.msra.mxu0 %v234
    %915 = vmatpush.msra.mxu0 %v232
    %916 = vmatpush.msra.mxu0 %v230
    %917 = vmatmul.f32.gmra.mxu0 %v899
    %v918 = vpop.f32.mrf.mxu0
    %v919 = vadd.f32 %v248, %v918
    %920 = vdwg.mxu0
    %921 = vmatpush.msra.mxu0 0.0
    %922 = vmatpush.msra.mxu0 0.0
    %923 = vmatpush.msra.mxu0 0.0
    %924 = vmatpush.msra.mxu0 0.0
    %925 = vmatpush.msra.mxu0 0.0
    %926 = vmatpush.msra.mxu0 0.0
    %927 = vmatpush.msra.mxu0 0.0
    %928 = vmatpush.msra.mxu0 0.0
    %929 = vmatpush.msra.mxu0 %v245
    %930 = vmatpush.msra.mxu0 %v243
    %931 = vmatpush.msra.mxu0 %v241
    %932 = vmatpush.msra.mxu0 %v239
    %933 = vmatpush.msra.mxu0 %v237
    %934 = vmatpush.msra.mxu0 %v235
    %935 = vmatpush.msra.mxu0 %v233
    %936 = vmatpush.msra.mxu0 %v231
    %937 = vmatmul.f32.gmra.mxu0 %v899
    %v938 = vpop.f32.mrf.mxu0
    %v939 = vadd.f32 %v249, %v938
    %940 = vdwg.mxu0
    %v941 = vadd.f32 %v874, %v919
    %v942 = vxor.u32 %v941, 2147483648
    %v943 = vmul.f32 %v942, 1.442695
    %v944 = vpow.pop %v943
    %v945 = vadd.f32 %v944, 1.0
    %v946 = vrcp.pop %v945
    %v947 = vmul.f32 %v945, %v946
    %v948 = vsub.f32 1.0, %v947
    %v949 = vmul.f32 %v946, %v948
    %v950 = vadd.f32 %v946, %v949
    %vm951 = vweird.f32 %v945
    %vm952 = vweird.f32 %v946
    %vm953 = vmor %vm951, %vm952
    %v954 = vsel %vm953, %v946, %v950
    %v955 = vand.u32 2147483647, %v945
    %vm956 = vcmp.eq.f32.partialorder %v955, 8.507059e+37
    %v957 = vand.u32 %v945, 2147483648
    %v958 = vor.u32 1.1754944e-38, %v957
    %v959 = vsel %vm956, %v958, %v954
    %v960 = vmul.f32 1.0, %v959
    %v961 = vmul.f32 %v960, %v939
    %v962 = vadd.f32 %v894, %v961
    %v963 = vtanh.pop %v962
    %v964 = vsub.f32 1.0, %v960
    %966 = vrot.lane.b32.xlu0 %v963, 64
    %v967 = vpop.permute.xlu0 %966
    %v969 = vmul.f32 %v964, %v967
    %v970 = vmul.f32 %v960, %v843
    %v971 = vadd.f32 %v969, %v970
    %vm972 = vcmask 1047559
    %v973 = vsel %vm972, %v160, %v153
    %v975 = vsel %vm972, %v461, %v460
    %976 = vrot.lane.b32.xlu0 %v975, 16
    %v977 = vpop.permute.xlu0 %976
    %v979 = vsel %vm170, %v973, %v977
    %v981 = vrot.slane %v979, 6
    %v982 = vsel %vm186, %v981, 0
    %984 = vmatpush.msra.mxu0 0.0
    %985 = vmatpush.msra.mxu0 0.0
    %986 = vmatpush.msra.mxu0 0.0
    %987 = vmatpush.msra.mxu0 0.0
    %988 = vmatpush.msra.mxu0 0.0
    %989 = vmatpush.msra.mxu0 0.0
    %990 = vmatpush.msra.mxu0 0.0
    %991 = vmatpush.msra.mxu0 0.0
    %992 = vmatpush.msra.mxu0 0.0
    %993 = vmatpush.msra.mxu0 0.0
    %994 = vmatpush.msra.mxu0 0.0
    %995 = vmatpush.msra.mxu0 0.0
    %996 = vmatpush.msra.mxu0 %v178
    %997 = vmatpush.msra.mxu0 %v176
    %998 = vmatpush.msra.mxu0 %v174
    %999 = vmatpush.msra.mxu0 %v172
    %1000 = vmatmul.f32.gmra.mxu0 %v982
    %v1001 = vpop.f32.mrf.mxu0
    %v1002 = vadd.f32 %v182, %v1001
    %1003 = vdwg.mxu0
    %1004 = vmatpush.msra.mxu0 0.0
    %1005 = vmatpush.msra.mxu0 0.0
    %1006 = vmatpush.msra.mxu0 0.0
    %1007 = vmatpush.msra.mxu0 0.0
    %1008 = vmatpush.msra.mxu0 0.0
    %1009 = vmatpush.msra.mxu0 0.0
    %1010 = vmatpush.msra.mxu0 0.0
    %1011 = vmatpush.msra.mxu0 0.0
    %1012 = vmatpush.msra.mxu0 0.0
    %1013 = vmatpush.msra.mxu0 0.0
    %1014 = vmatpush.msra.mxu0 0.0
    %1015 = vmatpush.msra.mxu0 0.0
    %1016 = vmatpush.msra.mxu0 %v179
    %1017 = vmatpush.msra.mxu0 %v177
    %1018 = vmatpush.msra.mxu0 %v175
    %1019 = vmatpush.msra.mxu0 %v173
    %1020 = vmatmul.f32.gmra.mxu0 %v982
    %v1021 = vpop.f32.mrf.mxu0
    %v1022 = vadd.f32 %v183, %v1021
    %1023 = vdwg.mxu0
    %1025 = vrot.lane.b32.xlu0 %v971, 64
    %v1026 = vpop.permute.xlu0 %1025
    %v1027 = vsel %vm252, %v1026, 0
    %1029 = vmatpush.msra.mxu0 0.0
    %1030 = vmatpush.msra.mxu0 0.0
    %1031 = vmatpush.msra.mxu0 0.0
    %1032 = vmatpush.msra.mxu0 0.0
    %1033 = vmatpush.msra.mxu0 0.0
    %1034 = vmatpush.msra.mxu0 0.0
    %1035 = vmatpush.msra.mxu0 0.0
    %1036 = vmatpush.msra.mxu0 0.0
    %1037 = vmatpush.msra.mxu0 %v244
    %1038 = vmatpush.msra.mxu0 %v242
    %1039 = vmatpush.msra.mxu0 %v240
    %1040 = vmatpush.msra.mxu0 %v238
    %1041 = vmatpush.msra.mxu0 %v236
    %1042 = vmatpush.msra.mxu0 %v234
    %1043 = vmatpush.msra.mxu0 %v232
    %1044 = vmatpush.msra.mxu0 %v230
    %1045 = vmatmul.f32.gmra.mxu0 %v1027
    %v1046 = vpop.f32.mrf.mxu0
    %v1047 = vadd.f32 %v248, %v1046
    %1048 = vdwg.mxu0
    %1049 = vmatpush.msra.mxu0 0.0
    %1050 = vmatpush.msra.mxu0 0.0
    %1051 = vmatpush.msra.mxu0 0.0
    %1052 = vmatpush.msra.mxu0 0.0
    %1053 = vmatpush.msra.mxu0 0.0
    %1054 = vmatpush.msra.mxu0 0.0
    %1055 = vmatpush.msra.mxu0 0.0
    %1056 = vmatpush.msra.mxu0 0.0
    %1057 = vmatpush.msra.mxu0 %v245
    %1058 = vmatpush.msra.mxu0 %v243
    %1059 = vmatpush.msra.mxu0 %v241
    %1060 = vmatpush.msra.mxu0 %v239
    %1061 = vmatpush.msra.mxu0 %v237
    %1062 = vmatpush.msra.mxu0 %v235
    %1063 = vmatpush.msra.mxu0 %v233
    %1064 = vmatpush.msra.mxu0 %v231
    %1065 = vmatmul.f32.gmra.mxu0 %v1027
    %v1066 = vpop.f32.mrf.mxu0
    %v1067 = vadd.f32 %v249, %v1066
    %1068 = vdwg.mxu0
    %v1069 = vadd.f32 %v1002, %v1047
    %v1070 = vxor.u32 %v1069, 2147483648
    %v1071 = vmul.f32 %v1070, 1.442695
    %v1072 = vpow.pop %v1071
    %v1073 = vadd.f32 %v1072, 1.0
    %v1074 = vrcp.pop %v1073
    %v1075 = vmul.f32 %v1073, %v1074
    %v1076 = vsub.f32 1.0, %v1075
    %v1077 = vmul.f32 %v1074, %v1076
    %v1078 = vadd.f32 %v1074, %v1077
    %vm1079 = vweird.f32 %v1073
    %vm1080 = vweird.f32 %v1074
    %vm1081 = vmor %vm1079, %vm1080
    %v1082 = vsel %vm1081, %v1074, %v1078
    %v1083 = vand.u32 2147483647, %v1073
    %vm1084 = vcmp.eq.f32.partialorder %v1083, 8.507059e+37
    %v1085 = vand.u32 %v1073, 2147483648
    %v1086 = vor.u32 1.1754944e-38, %v1085
    %v1087 = vsel %vm1084, %v1086, %v1082
    %v1088 = vmul.f32 1.0, %v1087
    %v1089 = vmul.f32 %v1088, %v1067
    %v1090 = vadd.f32 %v1022, %v1089
    %v1091 = vtanh.pop %v1090
    %v1092 = vsub.f32 1.0, %v1088
    %1094 = vrot.lane.b32.xlu0 %v1091, 64
    %v1095 = vpop.permute.xlu0 %1094
    %v1097 = vmul.f32 %v1092, %v1095
    %v1098 = vmul.f32 %v1088, %v971
    %v1099 = vadd.f32 %v1097, %v1098
    %1102 = vrot.lane.b32.xlu0 %v590, 16
    %v1103 = vpop.permute.xlu0 %1102
    %1104 = vrot.lane.b32.xlu0 %v156, 16
    %v1105 = vpop.permute.xlu0 %1104
    %v1108 = vsel %vm170, %v153, %v1103
    %v1109 = vsel %vm170, %v160, %v1105
    %vm1112 = vcmask 1040384
    %v1113 = vrot.slane %v1108, 7
    %v1114 = vrot.slane %v1109, 7
    %v1115 = vsel %vm1112, %v1113, %v1114
    %v1116 = vsel %vm186, %v1115, 0
    %1118 = vmatpush.msra.mxu0 0.0
    %1119 = vmatpush.msra.mxu0 0.0
    %1120 = vmatpush.msra.mxu0 0.0
    %1121 = vmatpush.msra.mxu0 0.0
    %1122 = vmatpush.msra.mxu0 0.0
    %1123 = vmatpush.msra.mxu0 0.0
    %1124 = vmatpush.msra.mxu0 0.0
    %1125 = vmatpush.msra.mxu0 0.0
    %1126 = vmatpush.msra.mxu0 0.0
    %1127 = vmatpush.msra.mxu0 0.0
    %1128 = vmatpush.msra.mxu0 0.0
    %1129 = vmatpush.msra.mxu0 0.0
    %1130 = vmatpush.msra.mxu0 %v178
    %1131 = vmatpush.msra.mxu0 %v176
    %1132 = vmatpush.msra.mxu0 %v174
    %1133 = vmatpush.msra.mxu0 %v172
    %1134 = vmatmul.f32.gmra.mxu0 %v1116
    %v1135 = vpop.f32.mrf.mxu0
    %v1136 = vadd.f32 %v182, %v1135
    %1137 = vdwg.mxu0
    %1138 = vmatpush.msra.mxu0 0.0
    %1139 = vmatpush.msra.mxu0 0.0
    %1140 = vmatpush.msra.mxu0 0.0
    %1141 = vmatpush.msra.mxu0 0.0
    %1142 = vmatpush.msra.mxu0 0.0
    %1143 = vmatpush.msra.mxu0 0.0
    %1144 = vmatpush.msra.mxu0 0.0
    %1145 = vmatpush.msra.mxu0 0.0
    %1146 = vmatpush.msra.mxu0 0.0
    %1147 = vmatpush.msra.mxu0 0.0
    %1148 = vmatpush.msra.mxu0 0.0
    %1149 = vmatpush.msra.mxu0 0.0
    %1150 = vmatpush.msra.mxu0 %v179
    %1151 = vmatpush.msra.mxu0 %v177
    %1152 = vmatpush.msra.mxu0 %v175
    %1153 = vmatpush.msra.mxu0 %v173
    %1154 = vmatmul.f32.gmra.mxu0 %v1116
    %v1155 = vpop.f32.mrf.mxu0
    %v1156 = vadd.f32 %v183, %v1155
    %1157 = vdwg.mxu0
    %1159 = vrot.lane.b32.xlu0 %v1099, 64
    %v1160 = vpop.permute.xlu0 %1159
    %v1161 = vsel %vm252, %v1160, 0
    %1163 = vmatpush.msra.mxu0 0.0
    %1164 = vmatpush.msra.mxu0 0.0
    %1165 = vmatpush.msra.mxu0 0.0
    %1166 = vmatpush.msra.mxu0 0.0
    %1167 = vmatpush.msra.mxu0 0.0
    %1168 = vmatpush.msra.mxu0 0.0
    %1169 = vmatpush.msra.mxu0 0.0
    %1170 = vmatpush.msra.mxu0 0.0
    %1171 = vmatpush.msra.mxu0 %v244
    %1172 = vmatpush.msra.mxu0 %v242
    %1173 = vmatpush.msra.mxu0 %v240
    %1174 = vmatpush.msra.mxu0 %v238
    %1175 = vmatpush.msra.mxu0 %v236
    %1176 = vmatpush.msra.mxu0 %v234
    %1177 = vmatpush.msra.mxu0 %v232
    %1178 = vmatpush.msra.mxu0 %v230
    %1179 = vmatmul.f32.gmra.mxu0 %v1161
    %v1180 = vpop.f32.mrf.mxu0
    %v1181 = vadd.f32 %v248, %v1180
    %1182 = vdwg.mxu0
    %1183 = vmatpush.msra.mxu0 0.0
    %1184 = vmatpush.msra.mxu0 0.0
    %1185 = vmatpush.msra.mxu0 0.0
    %1186 = vmatpush.msra.mxu0 0.0
    %1187 = vmatpush.msra.mxu0 0.0
    %1188 = vmatpush.msra.mxu0 0.0
    %1189 = vmatpush.msra.mxu0 0.0
    %1190 = vmatpush.msra.mxu0 0.0
    %1191 = vmatpush.msra.mxu0 %v245
    %1192 = vmatpush.msra.mxu0 %v243
    %1193 = vmatpush.msra.mxu0 %v241
    %1194 = vmatpush.msra.mxu0 %v239
    %1195 = vmatpush.msra.mxu0 %v237
    %1196 = vmatpush.msra.mxu0 %v235
    %1197 = vmatpush.msra.mxu0 %v233
    %1198 = vmatpush.msra.mxu0 %v231
    %1199 = vmatmul.f32.gmra.mxu0 %v1161
    %v1200 = vpop.f32.mrf.mxu0
    %v1201 = vadd.f32 %v249, %v1200
    %1202 = vdwg.mxu0
    %v1203 = vadd.f32 %v1136, %v1181
    %v1204 = vxor.u32 %v1203, 2147483648
    %v1205 = vmul.f32 %v1204, 1.442695
    %v1206 = vpow.pop %v1205
    %v1207 = vadd.f32 %v1206, 1.0
    %v1208 = vrcp.pop %v1207
    %v1209 = vmul.f32 %v1207, %v1208
    %v1210 = vsub.f32 1.0, %v1209
    %v1211 = vmul.f32 %v1208, %v1210
    %v1212 = vadd.f32 %v1208, %v1211
    %vm1213 = vweird.f32 %v1207
    %vm1214 = vweird.f32 %v1208
    %vm1215 = vmor %vm1213, %vm1214
    %v1216 = vsel %vm1215, %v1208, %v1212
    %v1217 = vand.u32 2147483647, %v1207
    %vm1218 = vcmp.eq.f32.partialorder %v1217, 8.507059e+37
    %v1219 = vand.u32 %v1207, 2147483648
    %v1220 = vor.u32 1.1754944e-38, %v1219
    %v1221 = vsel %vm1218, %v1220, %v1216
    %v1222 = vmul.f32 1.0, %v1221
    %v1223 = vmul.f32 %v1222, %v1201
    %v1224 = vadd.f32 %v1156, %v1223
    %v1225 = vtanh.pop %v1224
    %v1226 = vsub.f32 1.0, %v1222
    %1228 = vrot.lane.b32.xlu0 %v1225, 64
    %v1229 = vpop.permute.xlu0 %1228
    %v1231 = vmul.f32 %v1226, %v1229
    %v1232 = vmul.f32 %v1222, %v1099
    %v1233 = vadd.f32 %v1231, %v1232
    %1236 = vrot.lane.b32.xlu0 %v1233, 64
    %v1237 = vpop.permute.xlu0 %1236
    %v1239 = vsel %vm186, %v383, %v1237
    %v1241 = vrot.slane %v1239, 1
    %vm1243 = vcmask 516096
    %1244 = vst.msk [vmem:[#allocation2] sm:$0x1] %vm1243, %v1239
    %1245 = vst.msk [vmem:[#allocation2 + $0x8] sm:$0x1] %vm1243, %v1241
    %v1248 = vsel %vm186, %v513, %v1160
    %v1250 = vrot.slane %v1248, 1
    %1252 = vst.msk [vmem:[#allocation2 + $0x1] sm:$0x1] %vm1243, %v1248
    %1253 = vst.msk [vmem:[#allocation2 + $0x9] sm:$0x1] %vm1243, %v1250
    %v1256 = vsel %vm186, %v642, %v1026
    %v1258 = vrot.slane %v1256, 1
    %1260 = vst.msk [vmem:[#allocation2 + $0x2] sm:$0x1] %vm1243, %v1256
    %1261 = vst.msk [vmem:[#allocation2 + $0xa] sm:$0x1] %vm1243, %v1258
    %v1264 = vsel %vm186, %v770, %v898
    %v1266 = vrot.slane %v1264, 1
    %1268 = vst.msk [vmem:[#allocation2 + $0x3] sm:$0x1] %vm1243, %v1264
    %1269 = vst.msk [vmem:[#allocation2 + $0xb] sm:$0x1] %vm1243, %v1266
    %v1270 = vsel %vm186, %v898, %v770
    %v1272 = vrot.slane %v1270, 1
    %1274 = vst.msk [vmem:[#allocation2 + $0x4] sm:$0x1] %vm1243, %v1270
    %1275 = vst.msk [vmem:[#allocation2 + $0xc] sm:$0x1] %vm1243, %v1272
    %v1276 = vsel %vm186, %v1026, %v642
    %v1278 = vrot.slane %v1276, 1
    %1280 = vst.msk [vmem:[#allocation2 + $0x5] sm:$0x1] %vm1243, %v1276
    %1281 = vst.msk [vmem:[#allocation2 + $0xd] sm:$0x1] %vm1243, %v1278
    %v1282 = vsel %vm186, %v1160, %v513
    %v1284 = vrot.slane %v1282, 1
    %1286 = vst.msk [vmem:[#allocation2 + $0x6] sm:$0x1] %vm1243, %v1282
    %1287 = vst.msk [vmem:[#allocation2 + $0xe] sm:$0x1] %vm1243, %v1284
    %v1288 = vsel %vm186, %v1237, %v383
    %v1290 = vrot.slane %v1288, 1
    %1292 = vst.msk [vmem:[#allocation2 + $0x7] sm:$0x1] %vm1243, %v1288
    %1293 = vst.msk [vmem:[#allocation2 + $0xf] sm:$0x1] %vm1243, %v1290
    %v1294 = vld [vmem:[#allocation2] sm:$0xff]
    %v1295 = vld [vmem:[#allocation2 + $0x8] sm:$0xff]
    %v1296 = vld [vmem:[%s8] sm:$0xff]
    %v1297 = vld [vmem:[%s8 + $0x8] sm:$0xff]
    %v1298 = vld [vmem:[%s8 + $0x10] sm:$0xff]
    %v1299 = vld [vmem:[%s8 + $0x18] sm:$0xff]
    %v1300 = vld [vmem:[%s8 + $0x20] sm:$0xff]
    %v1301 = vld [vmem:[%s8 + $0x28] sm:$0xff]
    %v1302 = vld [vmem:[%s8 + $0x30] sm:$0xff]
    %v1303 = vld [vmem:[%s8 + $0x38] sm:$0xff]
    %v1304 = vld [vmem:[%s9] sm:$0x1]
    %v1306 = vperm.slane %v1304, 0
    %v1308 = vsel %vm252, %v1237, 0
    %1310 = vmatpush.msra.mxu0 0.0
    %1311 = vmatpush.msra.mxu0 0.0
    %1312 = vmatpush.msra.mxu0 0.0
    %1313 = vmatpush.msra.mxu0 0.0
    %1314 = vmatpush.msra.mxu0 0.0
    %1315 = vmatpush.msra.mxu0 0.0
    %1316 = vmatpush.msra.mxu0 0.0
    %1317 = vmatpush.msra.mxu0 0.0
    %1318 = vmatpush.msra.mxu0 %v1303
    %1319 = vmatpush.msra.mxu0 %v1302
    %1320 = vmatpush.msra.mxu0 %v1301
    %1321 = vmatpush.msra.mxu0 %v1300
    %1322 = vmatpush.msra.mxu0 %v1299
    %1323 = vmatpush.msra.mxu0 %v1298
    %1324 = vmatpush.msra.mxu0 %v1297
    %1325 = vmatpush.msra.mxu0 %v1296
    %1326 = vmatmul.f32.gmra.mxu0 %v1308
    %v1327 = vpop.f32.mrf.mxu0
    %v1328 = vadd.f32 %v1306, %v1327
    %1329 = vdwg.mxu0
    %v1330 = vtanh.pop %v1328
    %v1331 = vld [vmem:[%s13] sm:$0xff]
    %v1332 = vld [vmem:[%s13 + $0x8] sm:$0xff]
    %v1333 = vld [vmem:[%s13 + $0x10] sm:$0xff]
    %v1334 = vld [vmem:[%s13 + $0x18] sm:$0xff]
    %v1336 = vsel %vm186, %v1330, 0
    %1338 = vmatpush.msra.mxu0 0.0
    %1339 = vmatpush.msra.mxu0 0.0
    %1340 = vmatpush.msra.mxu0 0.0
    %1341 = vmatpush.msra.mxu0 0.0
    %1342 = vmatpush.msra.mxu0 0.0
    %1343 = vmatpush.msra.mxu0 0.0
    %1344 = vmatpush.msra.mxu0 0.0
    %1345 = vmatpush.msra.mxu0 0.0
    %1346 = vmatpush.msra.mxu0 0.0
    %1347 = vmatpush.msra.mxu0 0.0
    %1348 = vmatpush.msra.mxu0 0.0
    %1349 = vmatpush.msra.mxu0 0.0
    %1350 = vmatpush.msra.mxu0 %v1334
    %1351 = vmatpush.msra.mxu0 %v1333
    %1352 = vmatpush.msra.mxu0 %v1332
    %1353 = vmatpush.msra.mxu0 %v1331
    %1354 = vmatmul.f32.gmra.mxu0 %v1336
    %v1355 = vpop.f32.mrf.mxu0
    %v1356 = vadd.f32 0.0, %v1355
    %1357 = vdwg.mxu0
    %v1358 = vld [vmem:[%s14] sm:$0x1]
    %v1360 = vperm.slane %v1358, 0
    %1361 = vrot.lane.b32.xlu0 %v1360, 32
    %v1362 = vpop.permute.xlu0 %1361
    %v1364 = vadd.f32 %v1356, %v1362
    %v1365 = vld [vmem:[%s10] sm:$0xff]
    %v1366 = vld [vmem:[%s10 + $0x8] sm:$0xff]
    %v1367 = vld [vmem:[%s10 + $0x10] sm:$0xff]
    %v1368 = vld [vmem:[%s10 + $0x18] sm:$0xff]
    %v1369 = vld [vmem:[%s10 + $0x20] sm:$0xff]
    %v1370 = vld [vmem:[%s10 + $0x28] sm:$0xff]
    %v1371 = vld [vmem:[%s10 + $0x30] sm:$0xff]
    %v1372 = vld [vmem:[%s10 + $0x38] sm:$0xff]
    %v1373 = vld [vmem:[%s11] sm:$0x1]
    %v1375 = vperm.slane %v1373, 0
    %v1378 = vsel %vm252, %v1294, 0
    %v1381 = vsel %vm252, %v1295, 0
    %1383 = vmatpush.msra.mxu0 0.0
    %1384 = vmatpush.msra.mxu0 0.0
    %1385 = vmatpush.msra.mxu0 0.0
    %1386 = vmatpush.msra.mxu0 0.0
    %1387 = vmatpush.msra.mxu0 0.0
    %1388 = vmatpush.msra.mxu0 0.0
    %1389 = vmatpush.msra.mxu0 0.0
    %1390 = vmatpush.msra.mxu0 0.0
    %1391 = vmatpush.msra.mxu0 %v1372
    %1392 = vmatpush.msra.mxu0 %v1371
    %1393 = vmatpush.msra.mxu0 %v1370
    %1394 = vmatpush.msra.mxu0 %v1369
    %1395 = vmatpush.msra.mxu0 %v1368
    %1396 = vmatpush.msra.mxu0 %v1367
    %1397 = vmatpush.msra.mxu0 %v1366
    %1398 = vmatpush.msra.mxu0 %v1365
    %1399 = vmatmul.f32.gmra.mxu0 %v1378
    %v1400 = vpop.f32.mrf.mxu0
    %v1401 = vadd.f32 %v1375, %v1400
    %1402 = vmatmul.f32.gmra.mxu0 %v1381
    %v1403 = vpop.f32.mrf.mxu0
    %v1404 = vadd.f32 %v1375, %v1403
    %1405 = vdwg.mxu0
    %v1407 = vrot.slane %v1356, 1
    %v1408 = vperm.slane %v1356, 0
    %v1409 = vperm.slane %v1407, 0
    %v1412 = vadd.f32 %v1401, %v1408
    %v1413 = vadd.f32 %v1404, %v1409
    %v1414 = vtanh.pop %v1412
    %v1415 = vtanh.pop %v1413
    %v1416 = vld [vmem:[%s12] sm:$0x1]
    %v1418 = vperm.slane %v1416, 0
    %v1420 = vmul.f32 %v1414, %v1418
    %v1421 = vmul.f32 %v1415, %v1418
    %v1422 = vsel %vm186, %v1420, 0.0
    %1423 = vadd.xlane.f32.xlu0 %v1422
    %v1424 = vpop.xlane.xlu0 %1423
    %v1425 = vsel %vm186, %v1421, 0.0
    %1426 = vadd.xlane.f32.xlu0 %v1425
    %v1427 = vpop.xlane.xlu0 %1426
    %v1430 = vperm.slane %v1424, %v100
    %v1431 = vperm.slane %v1427, %v100
    %v1432 = vsel %vm161, %v1431, %v1430
    %vm1434 = vcmask 58368
    %v1435 = vsel %vm1434, %v1432, -inf
    %1436 = vmax.xlane.f32.xlu0 %v1435
    %v1437 = vpop.xlane.xlu0 %1436
    %v1439 = vperm.slane %v1437, 0
    %v1440 = vperm.slane %v1437, 1
    %v1443 = vsub.f32 %v1424, %v1439
    %v1444 = vsub.f32 %v1427, %v1440
    %v1445 = vmul.f32 %v1443, 1.442695
    %v1446 = vpow.pop %v1445
    %v1447 = vmul.f32 %v1444, 1.442695
    %v1448 = vpow.pop %v1447
    %1451 = vset.pattern.permute.xlu0 0
    %1452 = vperm.xlu0 %1451, %v1446
    %v1453 = vpop.permute.xlu0 %1452
    %1454 = vset.pattern.permute.xlu0 0
    %1455 = vperm.xlu0 %1454, %v1448
    %v1456 = vpop.permute.xlu0 %1455
    %v1457 = vperm.slane %v1453, %v100
    %v1458 = vperm.slane %v1456, %v100
    %v1459 = vsel %vm161, %v1458, %v1457
    %v1461 = vsel %vm1434, %v1459, 0.0
    %1462 = vadd.xlane.f32.xlu0 %v1461
    %v1463 = vpop.xlane.xlu0 %1462
    %v1465 = vperm.slane %v1463, 0
    %v1466 = vperm.slane %v1463, 1
    %v1469 = vrcp.pop %v1465
    %v1470 = vmul.f32 %v1465, %v1469
    %v1471 = vsub.f32 1.0, %v1470
    %v1472 = vmul.f32 %v1469, %v1471
    %v1473 = vadd.f32 %v1469, %v1472
    %vm1474 = vweird.f32 %v1465
    %vm1475 = vweird.f32 %v1469
    %vm1476 = vmor %vm1474, %vm1475
    %v1477 = vsel %vm1476, %v1469, %v1473
    %v1478 = vand.u32 2147483647, %v1465
    %vm1479 = vcmp.eq.f32.partialorder %v1478, 8.507059e+37
    %v1480 = vand.u32 %v1465, 2147483648
    %v1481 = vor.u32 1.1754944e-38, %v1480
    %v1482 = vsel %vm1479, %v1481, %v1477
    %v1483 = vmul.f32 %v1446, %v1482
    %v1484 = vrcp.pop %v1466
    %v1485 = vmul.f32 %v1466, %v1484
    %v1486 = vsub.f32 1.0, %v1485
    %v1487 = vmul.f32 %v1484, %v1486
    %v1488 = vadd.f32 %v1484, %v1487
    %vm1489 = vweird.f32 %v1466
    %vm1490 = vweird.f32 %v1484
    %vm1491 = vmor %vm1489, %vm1490
    %v1492 = vsel %vm1491, %v1484, %v1488
    %v1493 = vand.u32 2147483647, %v1466
    %vm1494 = vcmp.eq.f32.partialorder %v1493, 8.507059e+37
    %v1495 = vand.u32 %v1466, 2147483648
    %v1496 = vor.u32 1.1754944e-38, %v1495
    %v1497 = vsel %vm1494, %v1496, %v1492
    %v1498 = vmul.f32 %v1448, %v1497
    %1500 = vset.pattern.permute.xlu0 0
    %1501 = vperm.xlu0 %1500, %v1483
    %v1502 = vpop.permute.xlu0 %1501
    %1505 = vset.pattern.permute.xlu0 0
    %1506 = vperm.xlu0 %1505, %v1498
    %v1507 = vpop.permute.xlu0 %1506
    %v1509 = vmul.f32 %v1502, %v1294
    %v1510 = vmul.f32 %v1507, %v1295
    %v1511 = vsel %vm252, %v1509, 0.0
    %v1512 = vrot.slane %v1511, 4
    %v1513 = vadd.f32 %v1511, %v1512
    %v1514 = vrot.slane %v1513, 2
    %v1515 = vadd.f32 %v1513, %v1514
    %v1516 = vrot.slane %v1515, 1
    %v1517 = vadd.f32 %v1515, %v1516
    %v1518 = vsel %vm252, %v1510, 0.0
    %v1519 = vrot.slane %v1518, 4
    %v1520 = vadd.f32 %v1518, %v1519
    %v1521 = vrot.slane %v1520, 2
    %v1522 = vadd.f32 %v1520, %v1521
    %v1523 = vrot.slane %v1522, 1
    %v1524 = vadd.f32 %v1522, %v1523
    %v1525 = vld [vmem:[#allocation6] sm:$0xff]
    %v1526 = vld [vmem:[#allocation6 + $0x8] sm:$0xff]
    %v1527 = vld [vmem:[#allocation6 + $0x10] sm:$0xff]
    %v1528 = vld [vmem:[#allocation6 + $0x18] sm:$0xff]
    %v1529 = vld [vmem:[#allocation6 + $0x20] sm:$0xff]
    %v1530 = vld [vmem:[#allocation6 + $0x28] sm:$0xff]
    %v1531 = vld [vmem:[#allocation6 + $0x30] sm:$0xff]
    %v1532 = vld [vmem:[#allocation6 + $0x38] sm:$0xff]
    %v1535 = vsel %vm161, %v1524, %v1517
    %v1536 = vsel %vm252, %v1535, 0
    %1538 = vmatpush.msra.mxu0 0.0
    %1539 = vmatpush.msra.mxu0 0.0
    %1540 = vmatpush.msra.mxu0 0.0
    %1541 = vmatpush.msra.mxu0 0.0
    %1542 = vmatpush.msra.mxu0 0.0
    %1543 = vmatpush.msra.mxu0 0.0
    %1544 = vmatpush.msra.mxu0 0.0
    %1545 = vmatpush.msra.mxu0 0.0
    %1546 = vmatpush.msra.mxu0 %v1532
    %1547 = vmatpush.msra.mxu0 %v1531
    %1548 = vmatpush.msra.mxu0 %v1530
    %1549 = vmatpush.msra.mxu0 %v1529
    %1550 = vmatpush.msra.mxu0 %v1528
    %1551 = vmatpush.msra.mxu0 %v1527
    %1552 = vmatpush.msra.mxu0 %v1526
    %1553 = vmatpush.msra.mxu0 %v1525
    %1554 = vmatmul.f32.gmra.mxu0 %v1536
    %v1555 = vpop.f32.mrf.mxu0
    %v1556 = vadd.f32 0.0, %v1555
    %1557 = vdwg.mxu0
    %v1558 = vld [vmem:[%s16] sm:$0x1]
    %v1560 = vperm.slane %v1558, 0
    %v1562 = vadd.f32 %v1556, %v1560
    %v1563 = vld [vmem:[%s19] sm:$0x1]
    %v1565 = vperm.slane %v1563, 0
    %1566 = vrot.lane.b32.xlu0 %v1565, 96
    %v1567 = vpop.permute.xlu0 %1566
    %v1569 = vadd.f32 %v1556, %v1567
    %v1570 = vcvt.s32.f32 %v100
    %v1571 = vld [vmem:[%s1] sm:$0x3]
    %v1572 = vcvt.s32.f32 %v1571
    %v1573 = vld [vmem:[%s2] sm:$0x1]
    %1575 = vset.pattern.permute.xlu0 0
    %1576 = vperm.xlu0 %1575, %v1572
    %v1577 = vpop.permute.xlu0 %1576
    %vm1579 = vcmp.eq.f32.partialorder %v1577, %v1570
    %v1580 = vsel %vm1579, 1, 0
    %v1581 = vcvt.s32.f32 %v1580
    %v1582 = vld [vmem:[%s17] sm:$0xff]
    %v1583 = vld [vmem:[%s17 + $0x8] sm:$0xff]
    %v1584 = vld [vmem:[%s17 + $0x10] sm:$0xf]
    %v1586 = vsel %vm124, %v1581, 0
    %v1589 = vsel %vm131, %v1584, 0
    %1591 = vmatpush.msra.mxu0 0.0
    %1592 = vmatpush.msra.mxu0 0.0
    %1593 = vmatpush.msra.mxu0 0.0
    %1594 = vmatpush.msra.mxu0 0.0
    %1595 = vmatpush.msra.mxu0 0.0
    %1596 = vmatpush.msra.mxu0 0.0
    %1597 = vmatpush.msra.mxu0 0.0
    %1598 = vmatpush.msra.mxu0 0.0
    %1599 = vmatpush.msra.mxu0 0.0
    %1600 = vmatpush.msra.mxu0 0.0
    %1601 = vmatpush.msra.mxu0 0.0
    %1602 = vmatpush.msra.mxu0 0.0
    %1603 = vmatpush.msra.mxu0 0.0
    %1604 = vmatpush.msra.mxu0 %v1589
    %1605 = vmatpush.msra.mxu0 %v1583
    %1606 = vmatpush.msra.mxu0 %v1582
    %1607 = vmatmul.f32.gmra.mxu0 %v1586
    %v1608 = vpop.f32.mrf.mxu0
    %v1609 = vadd.f32 0.0, %v1608
    %1610 = vdwg.mxu0
    %v1611 = vadd.f32 %v1609, %v1562
    %1613 = vrot.lane.b32.xlu0 %v1364, 96
    %v1614 = vpop.permute.xlu0 %1613
    %v1616 = vadd.f32 %v1611, %v1614
    %v1617 = vxor.u32 %v1616, 2147483648
    %v1618 = vmul.f32 %v1617, 1.442695
    %v1619 = vpow.pop %v1618
    %v1620 = vadd.f32 %v1619, 1.0
    %v1621 = vrcp.pop %v1620
    %v1622 = vmul.f32 %v1620, %v1621
    %v1623 = vsub.f32 1.0, %v1622
    %v1624 = vmul.f32 %v1621, %v1623
    %v1625 = vadd.f32 %v1621, %v1624
    %vm1626 = vweird.f32 %v1620
    %vm1627 = vweird.f32 %v1621
    %vm1628 = vmor %vm1626, %vm1627
    %v1629 = vsel %vm1628, %v1621, %v1625
    %v1630 = vand.u32 2147483647, %v1620
    %vm1631 = vcmp.eq.f32.partialorder %v1630, 8.507059e+37
    %v1632 = vand.u32 %v1620, 2147483648
    %v1633 = vor.u32 1.1754944e-38, %v1632
    %v1634 = vsel %vm1631, %v1633, %v1629
    %v1635 = vmul.f32 1.0, %v1634
    %1636 = vrot.lane.b32.xlu0 %v1364, 32
    %v1637 = vpop.permute.xlu0 %1636
    %v1639 = vmul.f32 %v1635, %v1637
    %1641 = vrot.lane.b32.xlu0 %v1639, 64
    %v1642 = vpop.permute.xlu0 %1641
    %v1644 = vadd.f32 %v1611, %v1642
    %v1645 = vtanh.pop %v1644
    %v1646 = vsub.f32 1.0, %v1635
    %1648 = vrot.lane.b32.xlu0 %v1645, 96
    %v1649 = vpop.permute.xlu0 %1648
    %v1651 = vmul.f32 %v1646, %v1649
    %1652 = vrot.lane.b32.xlu0 %v1330, 32
    %v1653 = vpop.permute.xlu0 %1652
    %v1655 = vmul.f32 %v1635, %v1653
    %v1656 = vadd.f32 %v1651, %v1655
    %v1657 = vld [vmem:[%s18] sm:$0xff]
    %v1658 = vld [vmem:[%s18 + $0x8] sm:$0xff]
    %v1659 = vld [vmem:[%s18 + $0x10] sm:$0xff]
    %v1660 = vld [vmem:[%s18 + $0x18] sm:$0xff]
    %1662 = vrot.lane.b32.xlu0 %v1656, 96
    %v1663 = vpop.permute.xlu0 %1662
    %1665 = vrot.lane.b32.xlu0 %v1609, 32
    %v1666 = vpop.permute.xlu0 %1665
    %v1668 = vsel %vm186, %v1663, 0
    %1670 = vmatpush.msra.mxu0 0.0
    %1671 = vmatpush.msra.mxu0 0.0
    %1672 = vmatpush.msra.mxu0 0.0
    %1673 = vmatpush.msra.mxu0 0.0
    %1674 = vmatpush.msra.mxu0 0.0
    %1675 = vmatpush.msra.mxu0 0.0
    %1676 = vmatpush.msra.mxu0 0.0
    %1677 = vmatpush.msra.mxu0 0.0
    %1678 = vmatpush.msra.mxu0 0.0
    %1679 = vmatpush.msra.mxu0 0.0
    %1680 = vmatpush.msra.mxu0 0.0
    %1681 = vmatpush.msra.mxu0 0.0
    %1682 = vmatpush.msra.mxu0 %v1660
    %1683 = vmatpush.msra.mxu0 %v1659
    %1684 = vmatpush.msra.mxu0 %v1658
    %1685 = vmatpush.msra.mxu0 %v1657
    %1686 = vmatmul.f32.gmra.mxu0 %v1668
    %v1687 = vpop.f32.mrf.mxu0
    %v1688 = vadd.f32 %v1666, %v1687
    %1689 = vdwg.mxu0
    %1691 = vrot.lane.b32.xlu0 %v1569, 32
    %v1692 = vpop.permute.xlu0 %1691
    %v1694 = vadd.f32 %v1688, %v1692
    %vm1695 = vcmask 156672
    %v1696 = vsel %vm1695, %v1694, -inf
    %1697 = vmax.xlane.f32.xlu0 %v1696
    %v1698 = vpop.xlane.xlu0 %1697
    %vm1699 = vcmp.eq.f32.partialorder %v1694, %v1698
    %v1700 = vsel %vm1699, %v1570, 20.0
    %v1701 = vsel %vm1695, %v1700, inf
    %1702 = vmin.xlane.f32.xlu0 %v1701
    %v1703 = vpop.xlane.xlu0 %1702
    %v1705 = vperm.slane %v1573, 0
    %v1707 = vmul.f32 %v1705, %v1572
    %v1708 = vsub.f32 1.0, %v1573
    %v1710 = vperm.slane %v1708, 0
    %v1712 = vmul.f32 %v1710, %v1703
    %v1713 = vadd.f32 %v1707, %v1712
    %1715 = vset.pattern.permute.xlu0 1
    %1716 = vperm.xlu0 %1715, %v1713
    %v1717 = vpop.permute.xlu0 %1716
    %vm1719 = vcmp.eq.f32.partialorder %v1717, %v1570
    %v1720 = vsel %vm1719, 1, 0
    %v1721 = vcvt.s32.f32 %v1720
    %v1723 = vsel %vm124, %v1721, 0
    %1725 = vmatpush.msra.mxu0 0.0
    %1726 = vmatpush.msra.mxu0 0.0
    %1727 = vmatpush.msra.mxu0 0.0
    %1728 = vmatpush.msra.mxu0 0.0
    %1729 = vmatpush.msra.mxu0 0.0
    %1730 = vmatpush.msra.mxu0 0.0
    %1731 = vmatpush.msra.mxu0 0.0
    %1732 = vmatpush.msra.mxu0 0.0
    %1733 = vmatpush.msra.mxu0 0.0
    %1734 = vmatpush.msra.mxu0 0.0
    %1735 = vmatpush.msra.mxu0 0.0
    %1736 = vmatpush.msra.mxu0 0.0
    %1737 = vmatpush.msra.mxu0 0.0
    %1738 = vmatpush.msra.mxu0 %v1589
    %1739 = vmatpush.msra.mxu0 %v1583
    %1740 = vmatpush.msra.mxu0 %v1582
    %1741 = vmatmul.f32.gmra.mxu0 %v1723
    %v1742 = vpop.f32.mrf.mxu0
    %v1743 = vadd.f32 0.0, %v1742
    %1744 = vdwg.mxu0
    %v1745 = vadd.f32 %v1743, %v1562
    %v1746 = vadd.f32 %v1745, %v1614
    %v1747 = vxor.u32 %v1746, 2147483648
    %v1748 = vmul.f32 %v1747, 1.442695
    %v1749 = vpow.pop %v1748
    %v1750 = vadd.f32 %v1749, 1.0
    %v1751 = vrcp.pop %v1750
    %v1752 = vmul.f32 %v1750, %v1751
    %v1753 = vsub.f32 1.0, %v1752
    %v1754 = vmul.f32 %v1751, %v1753
    %v1755 = vadd.f32 %v1751, %v1754
    %vm1756 = vweird.f32 %v1750
    %vm1757 = vweird.f32 %v1751
    %vm1758 = vmor %vm1756, %vm1757
    %v1759 = vsel %vm1758, %v1751, %v1755
    %v1760 = vand.u32 2147483647, %v1750
    %vm1761 = vcmp.eq.f32.partialorder %v1760, 8.507059e+37
    %v1762 = vand.u32 %v1750, 2147483648
    %v1763 = vor.u32 1.1754944e-38, %v1762
    %v1764 = vsel %vm1761, %v1763, %v1759
    %v1765 = vmul.f32 1.0, %v1764
    %v1766 = vmul.f32 %v1765, %v1637
    %1768 = vrot.lane.b32.xlu0 %v1766, 64
    %v1769 = vpop.permute.xlu0 %1768
    %v1771 = vadd.f32 %v1745, %v1769
    %v1772 = vtanh.pop %v1771
    %v1773 = vsub.f32 1.0, %v1765
    %1775 = vrot.lane.b32.xlu0 %v1772, 96
    %v1776 = vpop.permute.xlu0 %1775
    %v1778 = vmul.f32 %v1773, %v1776
    %v1779 = vmul.f32 %v1765, %v1653
    %v1780 = vadd.f32 %v1778, %v1779
    %1782 = vrot.lane.b32.xlu0 %v1780, 96
    %v1783 = vpop.permute.xlu0 %1782
    %1785 = vrot.lane.b32.xlu0 %v1743, 32
    %v1786 = vpop.permute.xlu0 %1785
    %v1788 = vsel %vm186, %v1783, 0
    %1790 = vmatpush.msra.mxu0 0.0
    %1791 = vmatpush.msra.mxu0 0.0
    %1792 = vmatpush.msra.mxu0 0.0
    %1793 = vmatpush.msra.mxu0 0.0
    %1794 = vmatpush.msra.mxu0 0.0
    %1795 = vmatpush.msra.mxu0 0.0
    %1796 = vmatpush.msra.mxu0 0.0
    %1797 = vmatpush.msra.mxu0 0.0
    %1798 = vmatpush.msra.mxu0 0.0
    %1799 = vmatpush.msra.mxu0 0.0
    %1800 = vmatpush.msra.mxu0 0.0
    %1801 = vmatpush.msra.mxu0 0.0
    %1802 = vmatpush.msra.mxu0 %v1660
    %1803 = vmatpush.msra.mxu0 %v1659
    %1804 = vmatpush.msra.mxu0 %v1658
    %1805 = vmatpush.msra.mxu0 %v1657
    %1806 = vmatmul.f32.gmra.mxu0 %v1788
    %v1807 = vpop.f32.mrf.mxu0
    %v1808 = vadd.f32 %v1786, %v1807
    %1809 = vdwg.mxu0
    %v1810 = vadd.f32 %v1808, %v1692
    %v1811 = vsel %vm1695, %v1810, -inf
    %1812 = vmax.xlane.f32.xlu0 %v1811
    %v1813 = vpop.xlane.xlu0 %1812
    %vm1814 = vcmp.eq.f32.partialorder %v1810, %v1813
    %v1815 = vsel %vm1814, %v1570, 20.0
    %v1816 = vsel %vm1695, %v1815, inf
    %1817 = vmin.xlane.f32.xlu0 %v1816
    %v1818 = vpop.xlane.xlu0 %1817
    %v1819 = vmul.f32 %v1710, %v1818
    %v1820 = vadd.f32 %v1707, %v1819
    %1822 = vset.pattern.permute.xlu0 2
    %1823 = vperm.xlu0 %1822, %v1820
    %v1824 = vpop.permute.xlu0 %1823
    %vm1826 = vcmp.eq.f32.partialorder %v1824, %v1570
    %v1827 = vsel %vm1826, 1, 0
    %v1828 = vcvt.s32.f32 %v1827
    %v1830 = vsel %vm124, %v1828, 0
    %1832 = vmatpush.msra.mxu0 0.0
    %1833 = vmatpush.msra.mxu0 0.0
    %1834 = vmatpush.msra.mxu0 0.0
    %1835 = vmatpush.msra.mxu0 0.0
    %1836 = vmatpush.msra.mxu0 0.0
    %1837 = vmatpush.msra.mxu0 0.0
    %1838 = vmatpush.msra.mxu0 0.0
    %1839 = vmatpush.msra.mxu0 0.0
    %1840 = vmatpush.msra.mxu0 0.0
    %1841 = vmatpush.msra.mxu0 0.0
    %1842 = vmatpush.msra.mxu0 0.0
    %1843 = vmatpush.msra.mxu0 0.0
    %1844 = vmatpush.msra.mxu0 0.0
    %1845 = vmatpush.msra.mxu0 %v1589
    %1846 = vmatpush.msra.mxu0 %v1583
    %1847 = vmatpush.msra.mxu0 %v1582
    %1848 = vmatmul.f32.gmra.mxu0 %v1830
    %v1849 = vpop.f32.mrf.mxu0
    %v1850 = vadd.f32 0.0, %v1849
    %1851 = vdwg.mxu0
    %v1852 = vadd.f32 %v1850, %v1562
    %v1853 = vadd.f32 %v1852, %v1614
    %v1854 = vxor.u32 %v1853, 2147483648
    %v1855 = vmul.f32 %v1854, 1.442695
    %v1856 = vpow.pop %v1855
    %v1857 = vadd.f32 %v1856, 1.0
    %v1858 = vrcp.pop %v1857
    %v1859 = vmul.f32 %v1857, %v1858
    %v1860 = vsub.f32 1.0, %v1859
    %v1861 = vmul.f32 %v1858, %v1860
    %v1862 = vadd.f32 %v1858, %v1861
    %vm1863 = vweird.f32 %v1857
    %vm1864 = vweird.f32 %v1858
    %vm1865 = vmor %vm1863, %vm1864
    %v1866 = vsel %vm1865, %v1858, %v1862
    %v1867 = vand.u32 2147483647, %v1857
    %vm1868 = vcmp.eq.f32.partialorder %v1867, 8.507059e+37
    %v1869 = vand.u32 %v1857, 2147483648
    %v1870 = vor.u32 1.1754944e-38, %v1869
    %v1871 = vsel %vm1868, %v1870, %v1866
    %v1872 = vmul.f32 1.0, %v1871
    %v1873 = vmul.f32 %v1872, %v1637
    %1875 = vrot.lane.b32.xlu0 %v1873, 64
    %v1876 = vpop.permute.xlu0 %1875
    %v1878 = vadd.f32 %v1852, %v1876
    %v1879 = vtanh.pop %v1878
    %v1880 = vsub.f32 1.0, %v1872
    %1882 = vrot.lane.b32.xlu0 %v1879, 96
    %v1883 = vpop.permute.xlu0 %1882
    %v1885 = vmul.f32 %v1880, %v1883
    %v1886 = vmul.f32 %v1872, %v1653
    %v1887 = vadd.f32 %v1885, %v1886
    %1889 = vrot.lane.b32.xlu0 %v1887, 96
    %v1890 = vpop.permute.xlu0 %1889
    %1892 = vrot.lane.b32.xlu0 %v1850, 32
    %v1893 = vpop.permute.xlu0 %1892
    %v1895 = vsel %vm186, %v1890, 0
    %1897 = vmatpush.msra.mxu0 0.0
    %1898 = vmatpush.msra.mxu0 0.0
    %1899 = vmatpush.msra.mxu0 0.0
    %1900 = vmatpush.msra.mxu0 0.0
    %1901 = vmatpush.msra.mxu0 0.0
    %1902 = vmatpush.msra.mxu0 0.0
    %1903 = vmatpush.msra.mxu0 0.0
    %1904 = vmatpush.msra.mxu0 0.0
    %1905 = vmatpush.msra.mxu0 0.0
    %1906 = vmatpush.msra.mxu0 0.0
    %1907 = vmatpush.msra.mxu0 0.0
    %1908 = vmatpush.msra.mxu0 0.0
    %1909 = vmatpush.msra.mxu0 %v1660
    %1910 = vmatpush.msra.mxu0 %v1659
    %1911 = vmatpush.msra.mxu0 %v1658
    %1912 = vmatpush.msra.mxu0 %v1657
    %1913 = vmatmul.f32.gmra.mxu0 %v1895
    %v1914 = vpop.f32.mrf.mxu0
    %v1915 = vadd.f32 %v1893, %v1914
    %1916 = vdwg.mxu0
    %v1917 = vadd.f32 %v1915, %v1692
    %v1918 = vsel %vm1695, %v1917, -inf
    %1919 = vmax.xlane.f32.xlu0 %v1918
    %v1920 = vpop.xlane.xlu0 %1919
    %vm1921 = vcmp.eq.f32.partialorder %v1917, %v1920
    %v1922 = vsel %vm1921, %v1570, 20.0
    %v1923 = vsel %vm1695, %v1922, inf
    %1924 = vmin.xlane.f32.xlu0 %v1923
    %v1925 = vpop.xlane.xlu0 %1924
    %v1926 = vmul.f32 %v1710, %v1925
    %v1927 = vadd.f32 %v1707, %v1926
    %1929 = vset.pattern.permute.xlu0 3
    %1930 = vperm.xlu0 %1929, %v1927
    %v1931 = vpop.permute.xlu0 %1930
    %vm1933 = vcmp.eq.f32.partialorder %v1931, %v1570
    %v1934 = vsel %vm1933, 1, 0
    %v1935 = vcvt.s32.f32 %v1934
    %v1937 = vsel %vm124, %v1935, 0
    %1939 = vmatpush.msra.mxu0 0.0
    %1940 = vmatpush.msra.mxu0 0.0
    %1941 = vmatpush.msra.mxu0 0.0
    %1942 = vmatpush.msra.mxu0 0.0
    %1943 = vmatpush.msra.mxu0 0.0
    %1944 = vmatpush.msra.mxu0 0.0
    %1945 = vmatpush.msra.mxu0 0.0
    %1946 = vmatpush.msra.mxu0 0.0
    %1947 = vmatpush.msra.mxu0 0.0
    %1948 = vmatpush.msra.mxu0 0.0
    %1949 = vmatpush.msra.mxu0 0.0
    %1950 = vmatpush.msra.mxu0 0.0
    %1951 = vmatpush.msra.mxu0 0.0
    %1952 = vmatpush.msra.mxu0 %v1589
    %1953 = vmatpush.msra.mxu0 %v1583
    %1954 = vmatpush.msra.mxu0 %v1582
    %1955 = vmatmul.f32.gmra.mxu0 %v1937
    %v1956 = vpop.f32.mrf.mxu0
    %v1957 = vadd.f32 0.0, %v1956
    %1958 = vdwg.mxu0
    %v1959 = vadd.f32 %v1957, %v1562
    %v1960 = vadd.f32 %v1959, %v1614
    %v1961 = vxor.u32 %v1960, 2147483648
    %v1962 = vmul.f32 %v1961, 1.442695
    %v1963 = vpow.pop %v1962
    %v1964 = vadd.f32 %v1963, 1.0
    %v1965 = vrcp.pop %v1964
    %v1966 = vmul.f32 %v1964, %v1965
    %v1967 = vsub.f32 1.0, %v1966
    %v1968 = vmul.f32 %v1965, %v1967
    %v1969 = vadd.f32 %v1965, %v1968
    %vm1970 = vweird.f32 %v1964
    %vm1971 = vweird.f32 %v1965
    %vm1972 = vmor %vm1970, %vm1971
    %v1973 = vsel %vm1972, %v1965, %v1969
    %v1974 = vand.u32 2147483647, %v1964
    %vm1975 = vcmp.eq.f32.partialorder %v1974, 8.507059e+37
    %v1976 = vand.u32 %v1964, 2147483648
    %v1977 = vor.u32 1.1754944e-38, %v1976
    %v1978 = vsel %vm1975, %v1977, %v1973
    %v1979 = vmul.f32 1.0, %v1978
    %v1980 = vmul.f32 %v1979, %v1637
    %1982 = vrot.lane.b32.xlu0 %v1980, 64
    %v1983 = vpop.permute.xlu0 %1982
    %v1985 = vadd.f32 %v1959, %v1983
    %v1986 = vtanh.pop %v1985
    %v1987 = vsub.f32 1.0, %v1979
    %1989 = vrot.lane.b32.xlu0 %v1986, 96
    %v1990 = vpop.permute.xlu0 %1989
    %v1992 = vmul.f32 %v1987, %v1990
    %v1993 = vmul.f32 %v1979, %v1653
    %v1994 = vadd.f32 %v1992, %v1993
    %1996 = vrot.lane.b32.xlu0 %v1994, 96
    %v1997 = vpop.permute.xlu0 %1996
    %1999 = vrot.lane.b32.xlu0 %v1957, 32
    %v2000 = vpop.permute.xlu0 %1999
    %v2002 = vsel %vm186, %v1997, 0
    %2004 = vmatpush.msra.mxu0 0.0
    %2005 = vmatpush.msra.mxu0 0.0
    %2006 = vmatpush.msra.mxu0 0.0
    %2007 = vmatpush.msra.mxu0 0.0
    %2008 = vmatpush.msra.mxu0 0.0
    %2009 = vmatpush.msra.mxu0 0.0
    %2010 = vmatpush.msra.mxu0 0.0
    %2011 = vmatpush.msra.mxu0 0.0
    %2012 = vmatpush.msra.mxu0 0.0
    %2013 = vmatpush.msra.mxu0 0.0
    %2014 = vmatpush.msra.mxu0 0.0
    %2015 = vmatpush.msra.mxu0 0.0
    %2016 = vmatpush.msra.mxu0 %v1660
    %2017 = vmatpush.msra.mxu0 %v1659
    %2018 = vmatpush.msra.mxu0 %v1658
    %2019 = vmatpush.msra.mxu0 %v1657
    %2020 = vmatmul.f32.gmra.mxu0 %v2002
    %v2021 = vpop.f32.mrf.mxu0
    %v2022 = vadd.f32 %v2000, %v2021
    %2023 = vdwg.mxu0
    %v2024 = vadd.f32 %v2022, %v1692
    %v2025 = vsel %vm1695, %v2024, -inf
    %2026 = vmax.xlane.f32.xlu0 %v2025
    %v2027 = vpop.xlane.xlu0 %2026
    %vm2028 = vcmp.eq.f32.partialorder %v2024, %v2027
    %v2029 = vsel %vm2028, %v1570, 20.0
    %v2030 = vsel %vm1695, %v2029, inf
    %2031 = vmin.xlane.f32.xlu0 %v2030
    %v2032 = vpop.xlane.xlu0 %2031
    %v2033 = vmul.f32 %v1710, %v2032
    %v2034 = vadd.f32 %v1707, %v2033
    %2036 = vset.pattern.permute.xlu0 4
    %2037 = vperm.xlu0 %2036, %v2034
    %v2038 = vpop.permute.xlu0 %2037
    %vm2040 = vcmp.eq.f32.partialorder %v2038, %v1570
    %v2041 = vsel %vm2040, 1, 0
    %v2042 = vcvt.s32.f32 %v2041
    %v2044 = vsel %vm124, %v2042, 0
    %2046 = vmatpush.msra.mxu0 0.0
    %2047 = vmatpush.msra.mxu0 0.0
    %2048 = vmatpush.msra.mxu0 0.0
    %2049 = vmatpush.msra.mxu0 0.0
    %2050 = vmatpush.msra.mxu0 0.0
    %2051 = vmatpush.msra.mxu0 0.0
    %2052 = vmatpush.msra.mxu0 0.0
    %2053 = vmatpush.msra.mxu0 0.0
    %2054 = vmatpush.msra.mxu0 0.0
    %2055 = vmatpush.msra.mxu0 0.0
    %2056 = vmatpush.msra.mxu0 0.0
    %2057 = vmatpush.msra.mxu0 0.0
    %2058 = vmatpush.msra.mxu0 0.0
    %2059 = vmatpush.msra.mxu0 %v1589
    %2060 = vmatpush.msra.mxu0 %v1583
    %2061 = vmatpush.msra.mxu0 %v1582
    %2062 = vmatmul.f32.gmra.mxu0 %v2044
    %v2063 = vpop.f32.mrf.mxu0
    %v2064 = vadd.f32 0.0, %v2063
    %2065 = vdwg.mxu0
    %v2066 = vadd.f32 %v2064, %v1562
    %v2067 = vadd.f32 %v2066, %v1614
    %v2068 = vxor.u32 %v2067, 2147483648
    %v2069 = vmul.f32 %v2068, 1.442695
    %v2070 = vpow.pop %v2069
    %v2071 = vadd.f32 %v2070, 1.0
    %v2072 = vrcp.pop %v2071
    %v2073 = vmul.f32 %v2071, %v2072
    %v2074 = vsub.f32 1.0, %v2073
    %v2075 = vmul.f32 %v2072, %v2074
    %v2076 = vadd.f32 %v2072, %v2075
    %vm2077 = vweird.f32 %v2071
    %vm2078 = vweird.f32 %v2072
    %vm2079 = vmor %vm2077, %vm2078
    %v2080 = vsel %vm2079, %v2072, %v2076
    %v2081 = vand.u32 2147483647, %v2071
    %vm2082 = vcmp.eq.f32.partialorder %v2081, 8.507059e+37
    %v2083 = vand.u32 %v2071, 2147483648
    %v2084 = vor.u32 1.1754944e-38, %v2083
    %v2085 = vsel %vm2082, %v2084, %v2080
    %v2086 = vmul.f32 1.0, %v2085
    %v2087 = vmul.f32 %v2086, %v1637
    %2089 = vrot.lane.b32.xlu0 %v2087, 64
    %v2090 = vpop.permute.xlu0 %2089
    %v2092 = vadd.f32 %v2066, %v2090
    %v2093 = vtanh.pop %v2092
    %v2094 = vsub.f32 1.0, %v2086
    %2096 = vrot.lane.b32.xlu0 %v2093, 96
    %v2097 = vpop.permute.xlu0 %2096
    %v2099 = vmul.f32 %v2094, %v2097
    %v2100 = vmul.f32 %v2086, %v1653
    %v2101 = vadd.f32 %v2099, %v2100
    %2103 = vrot.lane.b32.xlu0 %v2101, 96
    %v2104 = vpop.permute.xlu0 %2103
    %2106 = vrot.lane.b32.xlu0 %v2064, 32
    %v2107 = vpop.permute.xlu0 %2106
    %v2109 = vsel %vm186, %v2104, 0
    %2111 = vmatpush.msra.mxu0 0.0
    %2112 = vmatpush.msra.mxu0 0.0
    %2113 = vmatpush.msra.mxu0 0.0
    %2114 = vmatpush.msra.mxu0 0.0
    %2115 = vmatpush.msra.mxu0 0.0
    %2116 = vmatpush.msra.mxu0 0.0
    %2117 = vmatpush.msra.mxu0 0.0
    %2118 = vmatpush.msra.mxu0 0.0
    %2119 = vmatpush.msra.mxu0 0.0
    %2120 = vmatpush.msra.mxu0 0.0
    %2121 = vmatpush.msra.mxu0 0.0
    %2122 = vmatpush.msra.mxu0 0.0
    %2123 = vmatpush.msra.mxu0 %v1660
    %2124 = vmatpush.msra.mxu0 %v1659
    %2125 = vmatpush.msra.mxu0 %v1658
    %2126 = vmatpush.msra.mxu0 %v1657
    %2127 = vmatmul.f32.gmra.mxu0 %v2109
    %v2128 = vpop.f32.mrf.mxu0
    %v2129 = vadd.f32 %v2107, %v2128
    %2130 = vdwg.mxu0
    %v2131 = vadd.f32 %v2129, %v1692
    %v2132 = vsel %vm1695, %v2131, -inf
    %2133 = vmax.xlane.f32.xlu0 %v2132
    %v2134 = vpop.xlane.xlu0 %2133
    %vm2135 = vcmp.eq.f32.partialorder %v2131, %v2134
    %v2136 = vsel %vm2135, %v1570, 20.0
    %v2137 = vsel %vm1695, %v2136, inf
    %2138 = vmin.xlane.f32.xlu0 %v2137
    %v2139 = vpop.xlane.xlu0 %2138
    %v2140 = vmul.f32 %v1710, %v2139
    %v2141 = vadd.f32 %v1707, %v2140
    %2143 = vset.pattern.permute.xlu0 5
    %2144 = vperm.xlu0 %2143, %v2141
    %v2145 = vpop.permute.xlu0 %2144
    %vm2147 = vcmp.eq.f32.partialorder %v2145, %v1570
    %v2148 = vsel %vm2147, 1, 0
    %v2149 = vcvt.s32.f32 %v2148
    %v2151 = vsel %vm124, %v2149, 0
    %2153 = vmatpush.msra.mxu0 0.0
    %2154 = vmatpush.msra.mxu0 0.0
    %2155 = vmatpush.msra.mxu0 0.0
    %2156 = vmatpush.msra.mxu0 0.0
    %2157 = vmatpush.msra.mxu0 0.0
    %2158 = vmatpush.msra.mxu0 0.0
    %2159 = vmatpush.msra.mxu0 0.0
    %2160 = vmatpush.msra.mxu0 0.0
    %2161 = vmatpush.msra.mxu0 0.0
    %2162 = vmatpush.msra.mxu0 0.0
    %2163 = vmatpush.msra.mxu0 0.0
    %2164 = vmatpush.msra.mxu0 0.0
    %2165 = vmatpush.msra.mxu0 0.0
    %2166 = vmatpush.msra.mxu0 %v1589
    %2167 = vmatpush.msra.mxu0 %v1583
    %2168 = vmatpush.msra.mxu0 %v1582
    %2169 = vmatmul.f32.gmra.mxu0 %v2151
    %v2170 = vpop.f32.mrf.mxu0
    %v2171 = vadd.f32 0.0, %v2170
    %2172 = vdwg.mxu0
    %v2173 = vadd.f32 %v2171, %v1562
    %v2174 = vadd.f32 %v2173, %v1614
    %v2175 = vxor.u32 %v2174, 2147483648
    %v2176 = vmul.f32 %v2175, 1.442695
    %v2177 = vpow.pop %v2176
    %v2178 = vadd.f32 %v2177, 1.0
    %v2179 = vrcp.pop %v2178
    %v2180 = vmul.f32 %v2178, %v2179
    %v2181 = vsub.f32 1.0, %v2180
    %v2182 = vmul.f32 %v2179, %v2181
    %v2183 = vadd.f32 %v2179, %v2182
    %vm2184 = vweird.f32 %v2178
    %vm2185 = vweird.f32 %v2179
    %vm2186 = vmor %vm2184, %vm2185
    %v2187 = vsel %vm2186, %v2179, %v2183
    %v2188 = vand.u32 2147483647, %v2178
    %vm2189 = vcmp.eq.f32.partialorder %v2188, 8.507059e+37
    %v2190 = vand.u32 %v2178, 2147483648
    %v2191 = vor.u32 1.1754944e-38, %v2190
    %v2192 = vsel %vm2189, %v2191, %v2187
    %v2193 = vmul.f32 1.0, %v2192
    %v2194 = vmul.f32 %v2193, %v1637
    %2196 = vrot.lane.b32.xlu0 %v2194, 64
    %v2197 = vpop.permute.xlu0 %2196
    %v2199 = vadd.f32 %v2173, %v2197
    %v2200 = vtanh.pop %v2199
    %v2201 = vsub.f32 1.0, %v2193
    %2203 = vrot.lane.b32.xlu0 %v2200, 96
    %v2204 = vpop.permute.xlu0 %2203
    %v2206 = vmul.f32 %v2201, %v2204
    %v2207 = vmul.f32 %v2193, %v1653
    %v2208 = vadd.f32 %v2206, %v2207
    %2210 = vrot.lane.b32.xlu0 %v2208, 96
    %v2211 = vpop.permute.xlu0 %2210
    %2213 = vrot.lane.b32.xlu0 %v2171, 32
    %v2214 = vpop.permute.xlu0 %2213
    %v2216 = vsel %vm186, %v2211, 0
    %2218 = vmatpush.msra.mxu0 0.0
    %2219 = vmatpush.msra.mxu0 0.0
    %2220 = vmatpush.msra.mxu0 0.0
    %2221 = vmatpush.msra.mxu0 0.0
    %2222 = vmatpush.msra.mxu0 0.0
    %2223 = vmatpush.msra.mxu0 0.0
    %2224 = vmatpush.msra.mxu0 0.0
    %2225 = vmatpush.msra.mxu0 0.0
    %2226 = vmatpush.msra.mxu0 0.0
    %2227 = vmatpush.msra.mxu0 0.0
    %2228 = vmatpush.msra.mxu0 0.0
    %2229 = vmatpush.msra.mxu0 0.0
    %2230 = vmatpush.msra.mxu0 %v1660
    %2231 = vmatpush.msra.mxu0 %v1659
    %2232 = vmatpush.msra.mxu0 %v1658
    %2233 = vmatpush.msra.mxu0 %v1657
    %2234 = vmatmul.f32.gmra.mxu0 %v2216
    %v2235 = vpop.f32.mrf.mxu0
    %v2236 = vadd.f32 %v2214, %v2235
    %2237 = vdwg.mxu0
    %v2238 = vadd.f32 %v2236, %v1692
    %v2239 = vsel %vm1695, %v2238, -inf
    %2240 = vmax.xlane.f32.xlu0 %v2239
    %v2241 = vpop.xlane.xlu0 %2240
    %vm2242 = vcmp.eq.f32.partialorder %v2238, %v2241
    %v2243 = vsel %vm2242, %v1570, 20.0
    %v2244 = vsel %vm1695, %v2243, inf
    %2245 = vmin.xlane.f32.xlu0 %v2244
    %v2246 = vpop.xlane.xlu0 %2245
    %v2247 = vmul.f32 %v1710, %v2246
    %v2248 = vadd.f32 %v1707, %v2247
    %2250 = vset.pattern.permute.xlu0 6
    %2251 = vperm.xlu0 %2250, %v2248
    %v2252 = vpop.permute.xlu0 %2251
    %vm2254 = vcmp.eq.f32.partialorder %v2252, %v1570
    %v2255 = vsel %vm2254, 1, 0
    %v2256 = vcvt.s32.f32 %v2255
    %v2258 = vsel %vm124, %v2256, 0
    %2260 = vmatpush.msra.mxu0 0.0
    %2261 = vmatpush.msra.mxu0 0.0
    %2262 = vmatpush.msra.mxu0 0.0
    %2263 = vmatpush.msra.mxu0 0.0
    %2264 = vmatpush.msra.mxu0 0.0
    %2265 = vmatpush.msra.mxu0 0.0
    %2266 = vmatpush.msra.mxu0 0.0
    %2267 = vmatpush.msra.mxu0 0.0
    %2268 = vmatpush.msra.mxu0 0.0
    %2269 = vmatpush.msra.mxu0 0.0
    %2270 = vmatpush.msra.mxu0 0.0
    %2271 = vmatpush.msra.mxu0 0.0
    %2272 = vmatpush.msra.mxu0 0.0
    %2273 = vmatpush.msra.mxu0 %v1589
    %2274 = vmatpush.msra.mxu0 %v1583
    %2275 = vmatpush.msra.mxu0 %v1582
    %2276 = vmatmul.f32.gmra.mxu0 %v2258
    %v2277 = vpop.f32.mrf.mxu0
    %v2278 = vadd.f32 0.0, %v2277
    %2279 = vdwg.mxu0
    %v2280 = vadd.f32 %v2278, %v1562
    %v2281 = vadd.f32 %v2280, %v1614
    %v2282 = vxor.u32 %v2281, 2147483648
    %v2283 = vmul.f32 %v2282, 1.442695
    %v2284 = vpow.pop %v2283
    %v2285 = vadd.f32 %v2284, 1.0
    %v2286 = vrcp.pop %v2285
    %v2287 = vmul.f32 %v2285, %v2286
    %v2288 = vsub.f32 1.0, %v2287
    %v2289 = vmul.f32 %v2286, %v2288
    %v2290 = vadd.f32 %v2286, %v2289
    %vm2291 = vweird.f32 %v2285
    %vm2292 = vweird.f32 %v2286
    %vm2293 = vmor %vm2291, %vm2292
    %v2294 = vsel %vm2293, %v2286, %v2290
    %v2295 = vand.u32 2147483647, %v2285
    %vm2296 = vcmp.eq.f32.partialorder %v2295, 8.507059e+37
    %v2297 = vand.u32 %v2285, 2147483648
    %v2298 = vor.u32 1.1754944e-38, %v2297
    %v2299 = vsel %vm2296, %v2298, %v2294
    %v2300 = vmul.f32 1.0, %v2299
    %v2301 = vmul.f32 %v2300, %v1637
    %2303 = vrot.lane.b32.xlu0 %v2301, 64
    %v2304 = vpop.permute.xlu0 %2303
    %v2306 = vadd.f32 %v2280, %v2304
    %v2307 = vtanh.pop %v2306
    %v2308 = vsub.f32 1.0, %v2300
    %2310 = vrot.lane.b32.xlu0 %v2307, 96
    %v2311 = vpop.permute.xlu0 %2310
    %v2313 = vmul.f32 %v2308, %v2311
    %v2314 = vmul.f32 %v2300, %v1653
    %v2315 = vadd.f32 %v2313, %v2314
    %2317 = vrot.lane.b32.xlu0 %v2315, 96
    %v2318 = vpop.permute.xlu0 %2317
    %2320 = vrot.lane.b32.xlu0 %v2278, 32
    %v2321 = vpop.permute.xlu0 %2320
    %v2323 = vsel %vm186, %v2318, 0
    %2325 = vmatpush.msra.mxu0 0.0
    %2326 = vmatpush.msra.mxu0 0.0
    %2327 = vmatpush.msra.mxu0 0.0
    %2328 = vmatpush.msra.mxu0 0.0
    %2329 = vmatpush.msra.mxu0 0.0
    %2330 = vmatpush.msra.mxu0 0.0
    %2331 = vmatpush.msra.mxu0 0.0
    %2332 = vmatpush.msra.mxu0 0.0
    %2333 = vmatpush.msra.mxu0 0.0
    %2334 = vmatpush.msra.mxu0 0.0
    %2335 = vmatpush.msra.mxu0 0.0
    %2336 = vmatpush.msra.mxu0 0.0
    %2337 = vmatpush.msra.mxu0 %v1660
    %2338 = vmatpush.msra.mxu0 %v1659
    %2339 = vmatpush.msra.mxu0 %v1658
    %2340 = vmatpush.msra.mxu0 %v1657
    %2341 = vmatmul.f32.gmra.mxu0 %v2323
    %v2342 = vpop.f32.mrf.mxu0
    %v2343 = vadd.f32 %v2321, %v2342
    %2344 = vdwg.mxu0
    %v2345 = vadd.f32 %v2343, %v1692
    %v2347 = vrot.slane %v1694, 6
    %v2350 = vrot.slane %v1810, 4
    %v2353 = vrot.slane %v1917, 2
    %v2356 = vrot.slane %v2131, 6
    %v2359 = vrot.slane %v2238, 4
    %v2362 = vrot.slane %v2345, 2
    %vm2364 = vcmask 1041408
    %v2365 = vsel %vm2364, 0.0, %v2347
    %v2366 = vsel %vm131, %v2365, %v2350
    %vm2367 = vcmask 1045504
    %v2368 = vsel %vm2367, %v2366, %v2353
    %v2369 = vsel %vm2364, %v2024, %v2356
    %v2370 = vsel %vm131, %v2369, %v2359
    %v2371 = vsel %vm2367, %v2370, %v2362
    %2372 = vst.msk [vmem:[#allocation8] sm:$0xff] %vm124, %v2368
    %2373 = vst.msk [vmem:[#allocation8 + $0x8] sm:$0xff] %vm124, %v2371
    // Predicated region
    $region90: #{seq2seq_pallas.1} parent=1 // pred_check
      _
    $region91: #{seq2seq_pallas.1} parent=1 // pred_check_branch
      %2375 = sbr.rel (0) target = $region93
    $region92: #{seq2seq_pallas.1} parent=1 // pred_region
      %2377 = vsyncadd [#allocation5], 0
      %s2378 = sshll.u32 [#allocation8], 4
      %s2379 = int_to_ptr.vmem [resolvable:$true] %s2378
      %s2380 = sshll.u32 %s20, 4
      %s2381 = int_to_ptr.hbm [resolvable:$true] %s2380
      %2386 = dma.vmem_to_hbm [thread:$0]  %s2379, 256, %s2381, [#allocation5], 128, 128, 8
    $region93: #{seq2seq_pallas.1} parent=1 // pred_fallthru
      _
    // Predicated region
    $region94: #{seq2seq_pallas.1} parent=1 // pred_check
      _
    $region95: #{seq2seq_pallas.1} parent=1 // pred_check_branch
      %2388 = sbr.rel (0) target = $region97
    $region96: #{seq2seq_pallas.1} parent=1 // pred_region
      %2390 = dma.done [#allocation5], 256
    $region97: #{seq2seq_pallas.1} parent=1 // pred_fallthru
      _
    %2391 = vsyncpa [#allocation4], 1
    %2392 = vsyncpa [#allocation7], 1
    %2393 = vsyncpa [#allocation5], 1

</llo_original>
